<compile_context>
chip_gen: v7x
topology: tpu7x:2x2x1
jax: 0.10.0
libtpu: 0.0.40
codegen_flags: <defaults>
</compile_context>

<pallas_src>
import functools

import jax
import jax.numpy as jnp
import numpy as np
from jax.experimental import pallas as pl
from jax.experimental.pallas import tpu as pltpu


def _resblock_kernel(x_ref, w1_ref, b1_ref, w2_ref, b2_ref, out_ref,
                     xs_ref, ys_ref, *, C, H, W, K, Nb):
    """One batch-block (Nb images) per grid step.

    x_ref   : VMEM (Nb, C, H*W)        f32  input block (spatial flattened -> lanes)
    w*_ref  : VMEM (K*K*C, C, 1)       f32  weight columns; row kk*C+co holds w[co, :, ky, kx]
    b*_ref  : SMEM (C,)                f32  biases (scalar reads)
    out_ref : VMEM (Nb, C, H*W)        f32  output block
    xs_ref  : VMEM (C, H*W + 2*pad)    f32  current image, flattened, with halo lanes
    ys_ref  : VMEM (C, H*W + 2*pad)    f32  relu(conv1) activation, same layout
    """
    HW = H * W
    P = K // 2
    pad = P * (W + 1)                      # covers the largest flattened tap offset

    # ---- column-validity masks (shared by every image and both convs) -----
    col = jax.lax.broadcasted_iota(jnp.int32, (C, HW), 1) % W
    col_mask = []
    for dx in range(K):
        odx = dx - P
        if odx == 0:
            col_mask.append(None)
        elif odx < 0:
            col_mask.append(col >= -odx)          # need x + odx >= 0
        else:
            col_mask.append(col < (W - odx))      # need x + odx <= W-1
    # (row over/underflow of a tap lands in the zero halo lanes, so only the
    #  column edges need a select.)

    # ---- zero ONLY the thin halo strips, once per grid step ----------------
    zhalo = jnp.zeros((C, pad), dtype=jnp.float32)
    xs_ref[:, 0:pad] = zhalo
    xs_ref[:, pad + HW:pad + HW + pad] = zhalo
    ys_ref[:, 0:pad] = zhalo
    ys_ref[:, pad + HW:pad + HW + pad] = zhalo

    def conv_same(src_ref, w_ref, b_ref, apply_relu):
        # Direct 'same' conv (PyTorch cross-correlation convention) on the
        # flattened, halo-padded scratch.  One per-output-channel accumulator
        # of shape (C_in, HW): each tap is a single FMA of a (C_in, 1) weight
        # column against the shifted (C_in, HW) window; input channels are
        # reduced over sublanes at the end.
        accs = [jnp.zeros((C, HW), dtype=jnp.float32) for _ in range(C)]
        for dy in range(K):
            for dx in range(K):
                off = (dy - P) * W + (dx - P)
                start = pad + off                       # static, >= 0
                taps = src_ref[:, start:start + HW]     # (C_in, HW)
                m = col_mask[dx]
                if m is not None:
                    taps = jnp.where(m, taps, 0.0)
                kk = dy * K + dx
                for co in range(C):
                    wvec = w_ref[kk * C + co]           # (C_in, 1)
                    accs[co] = accs[co] + wvec * taps
        rows = []
        for co in range(C):
            y = jnp.sum(accs[co], axis=0) + b_ref[co]   # (HW,)
            if apply_relu:
                y = jnp.maximum(y, 0.0)
            rows.append(y)
        return rows

    for n in range(Nb):
        # stage image n into the halo scratch (interior lanes only)
        xs_ref[:, pad:pad + HW] = x_ref[n].astype(jnp.float32)

        # conv1 + ReLU -> halo scratch (activation never leaves the chip)
        y1 = conv_same(xs_ref, w1_ref, b1_ref, apply_relu=True)
        for co in range(C):
            ys_ref[co, pad:pad + HW] = y1[co]

        # conv2 + residual add, lane-dense stores
        y2 = conv_same(ys_ref, w2_ref, b2_ref, apply_relu=False)
        for co in range(C):
            out_ref[n, co] = (y2[co] + xs_ref[co, pad:pad + HW]).astype(out_ref.dtype)


def resblock_forward(x, w1, b1, w2, b2):
    """x: (N, C, H, W) f32; w: (C, C, K, K) f32 (OIHW); b: (C,) f32.

    Returns conv2(relu(conv1(x))) + x with 'same' padding (PyTorch Conv2d
    semantics), matching ResBlock's default forward.
    """
    N, C, H, W = x.shape
    K = int(w1.shape[-1])
    P = K // 2
    HW = H * W
    pad = P * (W + 1)

    # wrapper-side layout plumbing only: flatten spatial onto the lane axis
    x_flat = x.reshape(N, C, HW)

    def pack_w(w):
        # (C_out, C_in, K, K) -> (K*K*C_out, C_in, 1): row kk*C_out + co is the
        # sublane-oriented weight column w[co, :, ky, kx].
        return jnp.transpose(w, (2, 3, 0, 1)).reshape(K * K * C, C, 1).astype(jnp.float32)

    w1p = pack_w(w1)
    w2p = pack_w(w2)

    # Batch blocking: a few images per grid step (cap the unrolled body at 8
    # images; tiles stay far under every generation's scoped-VMEM default).
    bytes_per_img = 2 * C * HW * 4          # input + output tile bytes
    Nb = max(1, min(8, N, (1 << 20) // max(bytes_per_img, 1)))
    while N % Nb:                           # keep N % Nb == 0 (no remainder step)
        Nb -= 1
    grid = (N // Nb,)

    kernel = functools.partial(_resblock_kernel, C=C, H=H, W=W, K=K, Nb=Nb)

    img_spec = pl.BlockSpec((Nb, C, HW), lambda i: (i, 0, 0))
    w_spec = pl.BlockSpec((K * K * C, C, 1), lambda i: (0, 0, 0))
    smem_spec = pl.BlockSpec(memory_space=pltpu.MemorySpace.SMEM)

    out_flat = pl.pallas_call(
        kernel,
        out_shape=jax.ShapeDtypeStruct((N, C, HW), x.dtype),
        grid=grid,
        in_specs=[
            img_spec,    # x (batch block, lane-dense)
            w_spec,      # conv1 weight columns
            smem_spec,   # conv1 bias
            w_spec,      # conv2 weight columns
            smem_spec,   # conv2 bias
        ],
        out_specs=img_spec,
        scratch_shapes=[
            pltpu.VMEM((C, HW + 2 * pad), jnp.float32),   # flattened input + halo
            pltpu.VMEM((C, HW + 2 * pad), jnp.float32),   # flattened relu(conv1) + halo
        ],
        compiler_params=pltpu.CompilerParams(
            dimension_semantics=("parallel",)),           # megacore split over batch blocks
    )(x_flat, w1p, b1.astype(jnp.float32), w2p, b2.astype(jnp.float32))

    return out_flat.reshape(N, C, H, W)


if __name__ == "__main__":
    key = jax.random.PRNGKey(0)
    N, C, H, W, K = 2, 4, 16, 16, 3

    k1, k2, k3, k4, k5 = jax.random.split(key, 5)
    x = jax.random.normal(k1, (N, C, H, W), dtype=jnp.float32)
    w1 = jax.random.normal(k2, (C, C, K, K), dtype=jnp.float32) * 0.1
    b1 = jax.random.normal(k3, (C,), dtype=jnp.float32) * 0.1
    w2 = jax.random.normal(k4, (C, C, K, K), dtype=jnp.float32) * 0.1
    b2 = jax.random.normal(k5, (C,), dtype=jnp.float32) * 0.1

    out = resblock_forward(x, w1, b1, w2, b2)
    jax.block_until_ready(out)

    # pure-JAX reference (mirrors the PyTorch forward: conv -> relu -> conv, +x)
    def ref_conv(inp, w, b):
        y = jax.lax.conv_general_dilated(
            inp, w, window_strides=(1, 1), padding="SAME",
            dimension_numbers=("NCHW", "OIHW", "NCHW"),
            precision=jax.lax.Precision.HIGHEST)
        return y + b[None, :, None, None]

    ref = ref_conv(jax.nn.relu(ref_conv(x, w1, b1)), w2, b2) + x

    assert np.allclose(np.asarray(out), np.asarray(ref), atol=1e-3, rtol=1e-3)
    print("KERNEL_OK")
</pallas_src>

<mosaic_0001>
module attributes {stable_mosaic.version = 11 : i64} {
  func.func @_resblock_kernel(%arg0: i32, %arg1: memref<2x4x256xf32, #tpu.memory_space<vmem>>, %arg2: memref<36x4x1xf32, #tpu.memory_space<vmem>>, %arg3: memref<4xf32, #tpu.memory_space<smem>>, %arg4: memref<36x4x1xf32, #tpu.memory_space<vmem>>, %arg5: memref<4xf32, #tpu.memory_space<smem>>, %arg6: memref<2x4x256xf32, #tpu.memory_space<vmem>>, %arg7: memref<4x290xf32, #tpu.memory_space<vmem>>, %arg8: memref<4x290xf32, #tpu.memory_space<vmem>>) attributes {dimension_semantics = [#tpu.dimension_semantics<parallel>], iteration_bounds = array<i64: 1>, scalar_prefetch = 0 : i64, scratch_operands = 2 : i64, tpu.core_type = #tpu.core_type<tc>, window_params = [{transform_indices = @transform_0, window_bounds = array<i64: 2, 4, 256>}, {pipeline_mode = #tpu.pipeline_mode<synchronous>, transform_indices = @transform_1, window_bounds = array<i64: 36, 4, 1>}, {transform_indices = @transform_2, window_bounds = array<i64: 4>}, {pipeline_mode = #tpu.pipeline_mode<synchronous>, transform_indices = @transform_3, window_bounds = array<i64: 36, 4, 1>}, {transform_indices = @transform_4, window_bounds = array<i64: 4>}, {transform_indices = @transform_5, window_bounds = array<i64: 2, 4, 256>}]} {
    %0 = tpu.iota {dimensions = array<i32: 1>} : vector<4x256xi32>
    %c16_i32 = arith.constant 16 : i32
    %c0_i32 = arith.constant 0 : i32
    %1 = arith.cmpi eq, %c16_i32, %c0_i32 : i32
    %c1_i32 = arith.constant 1 : i32
    %2 = arith.select %1, %c1_i32, %c16_i32 : i32
    %3 = vector.broadcast %2 : i32 to vector<4x256xi32>
    %4 = arith.remsi %0, %3 : vector<4x256xi32>
    %c0_i32_0 = arith.constant 0 : i32
    %5 = vector.broadcast %c0_i32_0 : i32 to vector<4x256xi32>
    %6 = arith.cmpi ne, %4, %5 : vector<4x256xi32>
    %c0_i32_1 = arith.constant 0 : i32
    %7 = vector.broadcast %c0_i32_1 : i32 to vector<4x256xi32>
    %8 = arith.cmpi slt, %4, %7 : vector<4x256xi32>
    %c0_i32_2 = arith.constant 0 : i32
    %9 = arith.cmpi slt, %2, %c0_i32_2 : i32
    %10 = vector.broadcast %9 : i1 to vector<4x256xi1>
    %11 = vector.broadcast %10 : vector<4x256xi1> to vector<4x256xi1>
    %12 = arith.xori %8, %11 : vector<4x256xi1>
    %13 = arith.andi %12, %6 : vector<4x256xi1>
    %14 = vector.broadcast %2 : i32 to vector<4x256xi32>
    %15 = arith.addi %4, %14 : vector<4x256xi32>
    %16 = arith.select %13, %15, %4 : vector<4x256xi1>, vector<4x256xi32>
    %c1_i32_3 = arith.constant 1 : i32
    %17 = vector.broadcast %c1_i32_3 : i32 to vector<4x256xi32>
    %18 = arith.cmpi sge, %16, %17 : vector<4x256xi32>
    %c15_i32 = arith.constant 15 : i32
    %19 = vector.broadcast %c15_i32 : i32 to vector<4x256xi32>
    %20 = arith.cmpi slt, %16, %19 : vector<4x256xi32>
    %cst = arith.constant 0.000000e+00 : f32
    %21 = vector.broadcast %cst : f32 to vector<4x17xf32>
    %c0 = arith.constant 0 : index
    %c0_4 = arith.constant 0 : index
    %22 = vector.load %arg7[%c0, %c0_4] : memref<4x290xf32, #tpu.memory_space<vmem>>, vector<4x17xf32>
    tpu.vector_store %arg7[%c0, %c0_4], %21 {strides = array<i32>} : memref<4x290xf32, #tpu.memory_space<vmem>>, vector<4x17xf32>,
    %c0_5 = arith.constant 0 : index
    %c273 = arith.constant 273 : index
    %23 = vector.load %arg7[%c0_5, %c273] : memref<4x290xf32, #tpu.memory_space<vmem>>, vector<4x17xf32>
    tpu.vector_store %arg7[%c0_5, %c273], %21 {strides = array<i32>} : memref<4x290xf32, #tpu.memory_space<vmem>>, vector<4x17xf32>,
    %c0_6 = arith.constant 0 : index
    %c0_7 = arith.constant 0 : index
    %24 = vector.load %arg8[%c0_6, %c0_7] : memref<4x290xf32, #tpu.memory_space<vmem>>, vector<4x17xf32>
    tpu.vector_store %arg8[%c0_6, %c0_7], %21 {strides = array<i32>} : memref<4x290xf32, #tpu.memory_space<vmem>>, vector<4x17xf32>,
    %c0_8 = arith.constant 0 : index
    %c273_9 = arith.constant 273 : index
    %25 = vector.load %arg8[%c0_8, %c273_9] : memref<4x290xf32, #tpu.memory_space<vmem>>, vector<4x17xf32>
    tpu.vector_store %arg8[%c0_8, %c273_9], %21 {strides = array<i32>} : memref<4x290xf32, #tpu.memory_space<vmem>>, vector<4x17xf32>,
    %c0_10 = arith.constant 0 : index
    %c0_11 = arith.constant 0 : index
    %c0_12 = arith.constant 0 : index
    %26 = vector.load %arg1[%c0_10, %c0_11, %c0_12] : memref<2x4x256xf32, #tpu.memory_space<vmem>>, vector<1x4x256xf32>
    %27 = vector.shape_cast %26 : vector<1x4x256xf32> to vector<4x256xf32>
    %c0_13 = arith.constant 0 : index
    %c17 = arith.constant 17 : index
    %28 = vector.load %arg7[%c0_13, %c17] : memref<4x290xf32, #tpu.memory_space<vmem>>, vector<4x256xf32>
    tpu.vector_store %arg7[%c0_13, %c17], %27 {strides = array<i32>} : memref<4x290xf32, #tpu.memory_space<vmem>>, vector<4x256xf32>,
    %cst_14 = arith.constant 0.000000e+00 : f32
    %29 = vector.broadcast %cst_14 : f32 to vector<4x256xf32>
    %cst_15 = arith.constant 0.000000e+00 : f32
    %30 = vector.broadcast %cst_15 : f32 to vector<4x256xf32>
    %cst_16 = arith.constant 0.000000e+00 : f32
    %31 = vector.broadcast %cst_16 : f32 to vector<4x256xf32>
    %cst_17 = arith.constant 0.000000e+00 : f32
    %32 = vector.broadcast %cst_17 : f32 to vector<4x256xf32>
    %c0_18 = arith.constant 0 : index
    %c0_19 = arith.constant 0 : index
    %33 = vector.load %arg7[%c0_18, %c0_19] : memref<4x290xf32, #tpu.memory_space<vmem>>, vector<4x256xf32>
    %cst_20 = arith.constant 0.000000e+00 : f32
    %34 = vector.broadcast %cst_20 : f32 to vector<4x256xf32>
    %35 = arith.select %18, %33, %34 : vector<4x256xi1>, vector<4x256xf32>
    %c0_21 = arith.constant 0 : index
    %c0_22 = arith.constant 0 : index
    %c0_23 = arith.constant 0 : index
    %36 = vector.load %arg2[%c0_21, %c0_22, %c0_23] : memref<36x4x1xf32, #tpu.memory_space<vmem>>, vector<1x4x1xf32>
    %37 = vector.shape_cast %36 : vector<1x4x1xf32> to vector<4x1xf32>
    %38 = vector.broadcast %37 : vector<4x1xf32> to vector<4x256xf32>
    %39 = arith.mulf %38, %35 : vector<4x256xf32>
    %40 = arith.addf %29, %39 : vector<4x256xf32>
    %c1 = arith.constant 1 : index
    %c0_24 = arith.constant 0 : index
    %c0_25 = arith.constant 0 : index
    %41 = vector.load %arg2[%c1, %c0_24, %c0_25] : memref<36x4x1xf32, #tpu.memory_space<vmem>>, vector<1x4x1xf32>
    %42 = vector.shape_cast %41 : vector<1x4x1xf32> to vector<4x1xf32>
    %43 = vector.broadcast %42 : vector<4x1xf32> to vector<4x256xf32>
    %44 = arith.mulf %43, %35 : vector<4x256xf32>
    %45 = arith.addf %30, %44 : vector<4x256xf32>
    %c2 = arith.constant 2 : index
    %c0_26 = arith.constant 0 : index
    %c0_27 = arith.constant 0 : index
    %46 = vector.load %arg2[%c2, %c0_26, %c0_27] : memref<36x4x1xf32, #tpu.memory_space<vmem>>, vector<1x4x1xf32>
    %47 = vector.shape_cast %46 : vector<1x4x1xf32> to vector<4x1xf32>
    %48 = vector.broadcast %47 : vector<4x1xf32> to vector<4x256xf32>
    %49 = arith.mulf %48, %35 : vector<4x256xf32>
    %50 = arith.addf %31, %49 : vector<4x256xf32>
    %c3 = arith.constant 3 : index
    %c0_28 = arith.constant 0 : index
    %c0_29 = arith.constant 0 : index
    %51 = vector.load %arg2[%c3, %c0_28, %c0_29] : memref<36x4x1xf32, #tpu.memory_space<vmem>>, vector<1x4x1xf32>
    %52 = vector.shape_cast %51 : vector<1x4x1xf32> to vector<4x1xf32>
    %53 = vector.broadcast %52 : vector<4x1xf32> to vector<4x256xf32>
    %54 = arith.mulf %53, %35 : vector<4x256xf32>
    %55 = arith.addf %32, %54 : vector<4x256xf32>
    %c0_30 = arith.constant 0 : index
    %c1_31 = arith.constant 1 : index
    %56 = vector.load %arg7[%c0_30, %c1_31] : memref<4x290xf32, #tpu.memory_space<vmem>>, vector<4x256xf32>
    %c4 = arith.constant 4 : index
    %c0_32 = arith.constant 0 : index
    %c0_33 = arith.constant 0 : index
    %57 = vector.load %arg2[%c4, %c0_32, %c0_33] : memref<36x4x1xf32, #tpu.memory_space<vmem>>, vector<1x4x1xf32>
    %58 = vector.shape_cast %57 : vector<1x4x1xf32> to vector<4x1xf32>
    %59 = vector.broadcast %58 : vector<4x1xf32> to vector<4x256xf32>
    %60 = arith.mulf %59, %56 : vector<4x256xf32>
    %61 = arith.addf %40, %60 : vector<4x256xf32>
    %c5 = arith.constant 5 : index
    %c0_34 = arith.constant 0 : index
    %c0_35 = arith.constant 0 : index
    %62 = vector.load %arg2[%c5, %c0_34, %c0_35] : memref<36x4x1xf32, #tpu.memory_space<vmem>>, vector<1x4x1xf32>
    %63 = vector.shape_cast %62 : vector<1x4x1xf32> to vector<4x1xf32>
    %64 = vector.broadcast %63 : vector<4x1xf32> to vector<4x256xf32>
    %65 = arith.mulf %64, %56 : vector<4x256xf32>
    %66 = arith.addf %45, %65 : vector<4x256xf32>
    %c6 = arith.constant 6 : index
    %c0_36 = arith.constant 0 : index
    %c0_37 = arith.constant 0 : index
    %67 = vector.load %arg2[%c6, %c0_36, %c0_37] : memref<36x4x1xf32, #tpu.memory_space<vmem>>, vector<1x4x1xf32>
    %68 = vector.shape_cast %67 : vector<1x4x1xf32> to vector<4x1xf32>
    %69 = vector.broadcast %68 : vector<4x1xf32> to vector<4x256xf32>
    %70 = arith.mulf %69, %56 : vector<4x256xf32>
    %71 = arith.addf %50, %70 : vector<4x256xf32>
    %c7 = arith.constant 7 : index
    %c0_38 = arith.constant 0 : index
    %c0_39 = arith.constant 0 : index
    %72 = vector.load %arg2[%c7, %c0_38, %c0_39] : memref<36x4x1xf32, #tpu.memory_space<vmem>>, vector<1x4x1xf32>
    %73 = vector.shape_cast %72 : vector<1x4x1xf32> to vector<4x1xf32>
    %74 = vector.broadcast %73 : vector<4x1xf32> to vector<4x256xf32>
    %75 = arith.mulf %74, %56 : vector<4x256xf32>
    %76 = arith.addf %55, %75 : vector<4x256xf32>
    %c0_40 = arith.constant 0 : index
    %c2_41 = arith.constant 2 : index
    %77 = vector.load %arg7[%c0_40, %c2_41] : memref<4x290xf32, #tpu.memory_space<vmem>>, vector<4x256xf32>
    %cst_42 = arith.constant 0.000000e+00 : f32
    %78 = vector.broadcast %cst_42 : f32 to vector<4x256xf32>
    %79 = arith.select %20, %77, %78 : vector<4x256xi1>, vector<4x256xf32>
    %c8 = arith.constant 8 : index
    %c0_43 = arith.constant 0 : index
    %c0_44 = arith.constant 0 : index
    %80 = vector.load %arg2[%c8, %c0_43, %c0_44] : memref<36x4x1xf32, #tpu.memory_space<vmem>>, vector<1x4x1xf32>
    %81 = vector.shape_cast %80 : vector<1x4x1xf32> to vector<4x1xf32>
    %82 = vector.broadcast %81 : vector<4x1xf32> to vector<4x256xf32>
    %83 = arith.mulf %82, %79 : vector<4x256xf32>
    %84 = arith.addf %61, %83 : vector<4x256xf32>
    %c9 = arith.constant 9 : index
    %c0_45 = arith.constant 0 : index
    %c0_46 = arith.constant 0 : index
    %85 = vector.load %arg2[%c9, %c0_45, %c0_46] : memref<36x4x1xf32, #tpu.memory_space<vmem>>, vector<1x4x1xf32>
    %86 = vector.shape_cast %85 : vector<1x4x1xf32> to vector<4x1xf32>
    %87 = vector.broadcast %86 : vector<4x1xf32> to vector<4x256xf32>
    %88 = arith.mulf %87, %79 : vector<4x256xf32>
    %89 = arith.addf %66, %88 : vector<4x256xf32>
    %c10 = arith.constant 10 : index
    %c0_47 = arith.constant 0 : index
    %c0_48 = arith.constant 0 : index
    %90 = vector.load %arg2[%c10, %c0_47, %c0_48] : memref<36x4x1xf32, #tpu.memory_space<vmem>>, vector<1x4x1xf32>
    %91 = vector.shape_cast %90 : vector<1x4x1xf32> to vector<4x1xf32>
    %92 = vector.broadcast %91 : vector<4x1xf32> to vector<4x256xf32>
    %93 = arith.mulf %92, %79 : vector<4x256xf32>
    %94 = arith.addf %71, %93 : vector<4x256xf32>
    %c11 = arith.constant 11 : index
    %c0_49 = arith.constant 0 : index
    %c0_50 = arith.constant 0 : index
    %95 = vector.load %arg2[%c11, %c0_49, %c0_50] : memref<36x4x1xf32, #tpu.memory_space<vmem>>, vector<1x4x1xf32>
    %96 = vector.shape_cast %95 : vector<1x4x1xf32> to vector<4x1xf32>
    %97 = vector.broadcast %96 : vector<4x1xf32> to vector<4x256xf32>
    %98 = arith.mulf %97, %79 : vector<4x256xf32>
    %99 = arith.addf %76, %98 : vector<4x256xf32>
    %c0_51 = arith.constant 0 : index
    %c16 = arith.constant 16 : index
    %100 = vector.load %arg7[%c0_51, %c16] : memref<4x290xf32, #tpu.memory_space<vmem>>, vector<4x256xf32>
    %cst_52 = arith.constant 0.000000e+00 : f32
    %101 = vector.broadcast %cst_52 : f32 to vector<4x256xf32>
    %102 = arith.select %18, %100, %101 : vector<4x256xi1>, vector<4x256xf32>
    %c12 = arith.constant 12 : index
    %c0_53 = arith.constant 0 : index
    %c0_54 = arith.constant 0 : index
    %103 = vector.load %arg2[%c12, %c0_53, %c0_54] : memref<36x4x1xf32, #tpu.memory_space<vmem>>, vector<1x4x1xf32>
    %104 = vector.shape_cast %103 : vector<1x4x1xf32> to vector<4x1xf32>
    %105 = vector.broadcast %104 : vector<4x1xf32> to vector<4x256xf32>
    %106 = arith.mulf %105, %102 : vector<4x256xf32>
    %107 = arith.addf %84, %106 : vector<4x256xf32>
    %c13 = arith.constant 13 : index
    %c0_55 = arith.constant 0 : index
    %c0_56 = arith.constant 0 : index
    %108 = vector.load %arg2[%c13, %c0_55, %c0_56] : memref<36x4x1xf32, #tpu.memory_space<vmem>>, vector<1x4x1xf32>
    %109 = vector.shape_cast %108 : vector<1x4x1xf32> to vector<4x1xf32>
    %110 = vector.broadcast %109 : vector<4x1xf32> to vector<4x256xf32>
    %111 = arith.mulf %110, %102 : vector<4x256xf32>
    %112 = arith.addf %89, %111 : vector<4x256xf32>
    %c14 = arith.constant 14 : index
    %c0_57 = arith.constant 0 : index
    %c0_58 = arith.constant 0 : index
    %113 = vector.load %arg2[%c14, %c0_57, %c0_58] : memref<36x4x1xf32, #tpu.memory_space<vmem>>, vector<1x4x1xf32>
    %114 = vector.shape_cast %113 : vector<1x4x1xf32> to vector<4x1xf32>
    %115 = vector.broadcast %114 : vector<4x1xf32> to vector<4x256xf32>
    %116 = arith.mulf %115, %102 : vector<4x256xf32>
    %117 = arith.addf %94, %116 : vector<4x256xf32>
    %c15 = arith.constant 15 : index
    %c0_59 = arith.constant 0 : index
    %c0_60 = arith.constant 0 : index
    %118 = vector.load %arg2[%c15, %c0_59, %c0_60] : memref<36x4x1xf32, #tpu.memory_space<vmem>>, vector<1x4x1xf32>
    %119 = vector.shape_cast %118 : vector<1x4x1xf32> to vector<4x1xf32>
    %120 = vector.broadcast %119 : vector<4x1xf32> to vector<4x256xf32>
    %121 = arith.mulf %120, %102 : vector<4x256xf32>
    %122 = arith.addf %99, %121 : vector<4x256xf32>
    %c0_61 = arith.constant 0 : index
    %c17_62 = arith.constant 17 : index
    %123 = vector.load %arg7[%c0_61, %c17_62] : memref<4x290xf32, #tpu.memory_space<vmem>>, vector<4x256xf32>
    %c16_63 = arith.constant 16 : index
    %c0_64 = arith.constant 0 : index
    %c0_65 = arith.constant 0 : index
    %124 = vector.load %arg2[%c16_63, %c0_64, %c0_65] : memref<36x4x1xf32, #tpu.memory_space<vmem>>, vector<1x4x1xf32>
    %125 = vector.shape_cast %124 : vector<1x4x1xf32> to vector<4x1xf32>
    %126 = vector.broadcast %125 : vector<4x1xf32> to vector<4x256xf32>
    %127 = arith.mulf %126, %123 : vector<4x256xf32>
    %128 = arith.addf %107, %127 : vector<4x256xf32>
    %c17_66 = arith.constant 17 : index
    %c0_67 = arith.constant 0 : index
    %c0_68 = arith.constant 0 : index
    %129 = vector.load %arg2[%c17_66, %c0_67, %c0_68] : memref<36x4x1xf32, #tpu.memory_space<vmem>>, vector<1x4x1xf32>
    %130 = vector.shape_cast %129 : vector<1x4x1xf32> to vector<4x1xf32>
    %131 = vector.broadcast %130 : vector<4x1xf32> to vector<4x256xf32>
    %132 = arith.mulf %131, %123 : vector<4x256xf32>
    %133 = arith.addf %112, %132 : vector<4x256xf32>
    %c18 = arith.constant 18 : index
    %c0_69 = arith.constant 0 : index
    %c0_70 = arith.constant 0 : index
    %134 = vector.load %arg2[%c18, %c0_69, %c0_70] : memref<36x4x1xf32, #tpu.memory_space<vmem>>, vector<1x4x1xf32>
    %135 = vector.shape_cast %134 : vector<1x4x1xf32> to vector<4x1xf32>
    %136 = vector.broadcast %135 : vector<4x1xf32> to vector<4x256xf32>
    %137 = arith.mulf %136, %123 : vector<4x256xf32>
    %138 = arith.addf %117, %137 : vector<4x256xf32>
    %c19 = arith.constant 19 : index
    %c0_71 = arith.constant 0 : index
    %c0_72 = arith.constant 0 : index
    %139 = vector.load %arg2[%c19, %c0_71, %c0_72] : memref<36x4x1xf32, #tpu.memory_space<vmem>>, vector<1x4x1xf32>
    %140 = vector.shape_cast %139 : vector<1x4x1xf32> to vector<4x1xf32>
    %141 = vector.broadcast %140 : vector<4x1xf32> to vector<4x256xf32>
    %142 = arith.mulf %141, %123 : vector<4x256xf32>
    %143 = arith.addf %122, %142 : vector<4x256xf32>
    %c0_73 = arith.constant 0 : index
    %c18_74 = arith.constant 18 : index
    %144 = vector.load %arg7[%c0_73, %c18_74] : memref<4x290xf32, #tpu.memory_space<vmem>>, vector<4x256xf32>
    %cst_75 = arith.constant 0.000000e+00 : f32
    %145 = vector.broadcast %cst_75 : f32 to vector<4x256xf32>
    %146 = arith.select %20, %144, %145 : vector<4x256xi1>, vector<4x256xf32>
    %c20 = arith.constant 20 : index
    %c0_76 = arith.constant 0 : index
    %c0_77 = arith.constant 0 : index
    %147 = vector.load %arg2[%c20, %c0_76, %c0_77] : memref<36x4x1xf32, #tpu.memory_space<vmem>>, vector<1x4x1xf32>
    %148 = vector.shape_cast %147 : vector<1x4x1xf32> to vector<4x1xf32>
    %149 = vector.broadcast %148 : vector<4x1xf32> to vector<4x256xf32>
    %150 = arith.mulf %149, %146 : vector<4x256xf32>
    %151 = arith.addf %128, %150 : vector<4x256xf32>
    %c21 = arith.constant 21 : index
    %c0_78 = arith.constant 0 : index
    %c0_79 = arith.constant 0 : index
    %152 = vector.load %arg2[%c21, %c0_78, %c0_79] : memref<36x4x1xf32, #tpu.memory_space<vmem>>, vector<1x4x1xf32>
    %153 = vector.shape_cast %152 : vector<1x4x1xf32> to vector<4x1xf32>
    %154 = vector.broadcast %153 : vector<4x1xf32> to vector<4x256xf32>
    %155 = arith.mulf %154, %146 : vector<4x256xf32>
    %156 = arith.addf %133, %155 : vector<4x256xf32>
    %c22 = arith.constant 22 : index
    %c0_80 = arith.constant 0 : index
    %c0_81 = arith.constant 0 : index
    %157 = vector.load %arg2[%c22, %c0_80, %c0_81] : memref<36x4x1xf32, #tpu.memory_space<vmem>>, vector<1x4x1xf32>
    %158 = vector.shape_cast %157 : vector<1x4x1xf32> to vector<4x1xf32>
    %159 = vector.broadcast %158 : vector<4x1xf32> to vector<4x256xf32>
    %160 = arith.mulf %159, %146 : vector<4x256xf32>
    %161 = arith.addf %138, %160 : vector<4x256xf32>
    %c23 = arith.constant 23 : index
    %c0_82 = arith.constant 0 : index
    %c0_83 = arith.constant 0 : index
    %162 = vector.load %arg2[%c23, %c0_82, %c0_83] : memref<36x4x1xf32, #tpu.memory_space<vmem>>, vector<1x4x1xf32>
    %163 = vector.shape_cast %162 : vector<1x4x1xf32> to vector<4x1xf32>
    %164 = vector.broadcast %163 : vector<4x1xf32> to vector<4x256xf32>
    %165 = arith.mulf %164, %146 : vector<4x256xf32>
    %166 = arith.addf %143, %165 : vector<4x256xf32>
    %c0_84 = arith.constant 0 : index
    %c32 = arith.constant 32 : index
    %167 = vector.load %arg7[%c0_84, %c32] : memref<4x290xf32, #tpu.memory_space<vmem>>, vector<4x256xf32>
    %cst_85 = arith.constant 0.000000e+00 : f32
    %168 = vector.broadcast %cst_85 : f32 to vector<4x256xf32>
    %169 = arith.select %18, %167, %168 : vector<4x256xi1>, vector<4x256xf32>
    %c24 = arith.constant 24 : index
    %c0_86 = arith.constant 0 : index
    %c0_87 = arith.constant 0 : index
    %170 = vector.load %arg2[%c24, %c0_86, %c0_87] : memref<36x4x1xf32, #tpu.memory_space<vmem>>, vector<1x4x1xf32>
    %171 = vector.shape_cast %170 : vector<1x4x1xf32> to vector<4x1xf32>
    %172 = vector.broadcast %171 : vector<4x1xf32> to vector<4x256xf32>
    %173 = arith.mulf %172, %169 : vector<4x256xf32>
    %174 = arith.addf %151, %173 : vector<4x256xf32>
    %c25 = arith.constant 25 : index
    %c0_88 = arith.constant 0 : index
    %c0_89 = arith.constant 0 : index
    %175 = vector.load %arg2[%c25, %c0_88, %c0_89] : memref<36x4x1xf32, #tpu.memory_space<vmem>>, vector<1x4x1xf32>
    %176 = vector.shape_cast %175 : vector<1x4x1xf32> to vector<4x1xf32>
    %177 = vector.broadcast %176 : vector<4x1xf32> to vector<4x256xf32>
    %178 = arith.mulf %177, %169 : vector<4x256xf32>
    %179 = arith.addf %156, %178 : vector<4x256xf32>
    %c26 = arith.constant 26 : index
    %c0_90 = arith.constant 0 : index
    %c0_91 = arith.constant 0 : index
    %180 = vector.load %arg2[%c26, %c0_90, %c0_91] : memref<36x4x1xf32, #tpu.memory_space<vmem>>, vector<1x4x1xf32>
    %181 = vector.shape_cast %180 : vector<1x4x1xf32> to vector<4x1xf32>
    %182 = vector.broadcast %181 : vector<4x1xf32> to vector<4x256xf32>
    %183 = arith.mulf %182, %169 : vector<4x256xf32>
    %184 = arith.addf %161, %183 : vector<4x256xf32>
    %c27 = arith.constant 27 : index
    %c0_92 = arith.constant 0 : index
    %c0_93 = arith.constant 0 : index
    %185 = vector.load %arg2[%c27, %c0_92, %c0_93] : memref<36x4x1xf32, #tpu.memory_space<vmem>>, vector<1x4x1xf32>
    %186 = vector.shape_cast %185 : vector<1x4x1xf32> to vector<4x1xf32>
    %187 = vector.broadcast %186 : vector<4x1xf32> to vector<4x256xf32>
    %188 = arith.mulf %187, %169 : vector<4x256xf32>
    %189 = arith.addf %166, %188 : vector<4x256xf32>
    %c0_94 = arith.constant 0 : index
    %c33 = arith.constant 33 : index
    %190 = vector.load %arg7[%c0_94, %c33] : memref<4x290xf32, #tpu.memory_space<vmem>>, vector<4x256xf32>
    %c28 = arith.constant 28 : index
    %c0_95 = arith.constant 0 : index
    %c0_96 = arith.constant 0 : index
    %191 = vector.load %arg2[%c28, %c0_95, %c0_96] : memref<36x4x1xf32, #tpu.memory_space<vmem>>, vector<1x4x1xf32>
    %192 = vector.shape_cast %191 : vector<1x4x1xf32> to vector<4x1xf32>
    %193 = vector.broadcast %192 : vector<4x1xf32> to vector<4x256xf32>
    %194 = arith.mulf %193, %190 : vector<4x256xf32>
    %195 = arith.addf %174, %194 : vector<4x256xf32>
    %c29 = arith.constant 29 : index
    %c0_97 = arith.constant 0 : index
    %c0_98 = arith.constant 0 : index
    %196 = vector.load %arg2[%c29, %c0_97, %c0_98] : memref<36x4x1xf32, #tpu.memory_space<vmem>>, vector<1x4x1xf32>
    %197 = vector.shape_cast %196 : vector<1x4x1xf32> to vector<4x1xf32>
    %198 = vector.broadcast %197 : vector<4x1xf32> to vector<4x256xf32>
    %199 = arith.mulf %198, %190 : vector<4x256xf32>
    %200 = arith.addf %179, %199 : vector<4x256xf32>
    %c30 = arith.constant 30 : index
    %c0_99 = arith.constant 0 : index
    %c0_100 = arith.constant 0 : index
    %201 = vector.load %arg2[%c30, %c0_99, %c0_100] : memref<36x4x1xf32, #tpu.memory_space<vmem>>, vector<1x4x1xf32>
    %202 = vector.shape_cast %201 : vector<1x4x1xf32> to vector<4x1xf32>
    %203 = vector.broadcast %202 : vector<4x1xf32> to vector<4x256xf32>
    %204 = arith.mulf %203, %190 : vector<4x256xf32>
    %205 = arith.addf %184, %204 : vector<4x256xf32>
    %c31 = arith.constant 31 : index
    %c0_101 = arith.constant 0 : index
    %c0_102 = arith.constant 0 : index
    %206 = vector.load %arg2[%c31, %c0_101, %c0_102] : memref<36x4x1xf32, #tpu.memory_space<vmem>>, vector<1x4x1xf32>
    %207 = vector.shape_cast %206 : vector<1x4x1xf32> to vector<4x1xf32>
    %208 = vector.broadcast %207 : vector<4x1xf32> to vector<4x256xf32>
    %209 = arith.mulf %208, %190 : vector<4x256xf32>
    %210 = arith.addf %189, %209 : vector<4x256xf32>
    %c0_103 = arith.constant 0 : index
    %c34 = arith.constant 34 : index
    %211 = vector.load %arg7[%c0_103, %c34] : memref<4x290xf32, #tpu.memory_space<vmem>>, vector<4x256xf32>
    %cst_104 = arith.constant 0.000000e+00 : f32
    %212 = vector.broadcast %cst_104 : f32 to vector<4x256xf32>
    %213 = arith.select %20, %211, %212 : vector<4x256xi1>, vector<4x256xf32>
    %c32_105 = arith.constant 32 : index
    %c0_106 = arith.constant 0 : index
    %c0_107 = arith.constant 0 : index
    %214 = vector.load %arg2[%c32_105, %c0_106, %c0_107] : memref<36x4x1xf32, #tpu.memory_space<vmem>>, vector<1x4x1xf32>
    %215 = vector.shape_cast %214 : vector<1x4x1xf32> to vector<4x1xf32>
    %216 = vector.broadcast %215 : vector<4x1xf32> to vector<4x256xf32>
    %217 = arith.mulf %216, %213 : vector<4x256xf32>
    %218 = arith.addf %195, %217 : vector<4x256xf32>
    %c33_108 = arith.constant 33 : index
    %c0_109 = arith.constant 0 : index
    %c0_110 = arith.constant 0 : index
    %219 = vector.load %arg2[%c33_108, %c0_109, %c0_110] : memref<36x4x1xf32, #tpu.memory_space<vmem>>, vector<1x4x1xf32>
    %220 = vector.shape_cast %219 : vector<1x4x1xf32> to vector<4x1xf32>
    %221 = vector.broadcast %220 : vector<4x1xf32> to vector<4x256xf32>
    %222 = arith.mulf %221, %213 : vector<4x256xf32>
    %223 = arith.addf %200, %222 : vector<4x256xf32>
    %c34_111 = arith.constant 34 : index
    %c0_112 = arith.constant 0 : index
    %c0_113 = arith.constant 0 : index
    %224 = vector.load %arg2[%c34_111, %c0_112, %c0_113] : memref<36x4x1xf32, #tpu.memory_space<vmem>>, vector<1x4x1xf32>
    %225 = vector.shape_cast %224 : vector<1x4x1xf32> to vector<4x1xf32>
    %226 = vector.broadcast %225 : vector<4x1xf32> to vector<4x256xf32>
    %227 = arith.mulf %226, %213 : vector<4x256xf32>
    %228 = arith.addf %205, %227 : vector<4x256xf32>
    %c35 = arith.constant 35 : index
    %c0_114 = arith.constant 0 : index
    %c0_115 = arith.constant 0 : index
    %229 = vector.load %arg2[%c35, %c0_114, %c0_115] : memref<36x4x1xf32, #tpu.memory_space<vmem>>, vector<1x4x1xf32>
    %230 = vector.shape_cast %229 : vector<1x4x1xf32> to vector<4x1xf32>
    %231 = vector.broadcast %230 : vector<4x1xf32> to vector<4x256xf32>
    %232 = arith.mulf %231, %213 : vector<4x256xf32>
    %233 = arith.addf %210, %232 : vector<4x256xf32>
    %cst_116 = arith.constant dense<0.000000e+00> : vector<256xf32>
    %234 = vector.multi_reduction <add>, %218, %cst_116 [0] : vector<4x256xf32> to vector<256xf32>
    %c0_117 = arith.constant 0 : index
    %235 = memref.load %arg3[%c0_117] : memref<4xf32, #tpu.memory_space<smem>>
    %236 = vector.broadcast %235 : f32 to vector<256xf32>
    %237 = arith.addf %234, %236 : vector<256xf32>
    %cst_118 = arith.constant 0.000000e+00 : f32
    %238 = vector.broadcast %cst_118 : f32 to vector<256xf32>
    %239 = arith.maximumf %237, %238 : vector<256xf32>
    %cst_119 = arith.constant dense<0.000000e+00> : vector<256xf32>
    %240 = vector.multi_reduction <add>, %223, %cst_119 [0] : vector<4x256xf32> to vector<256xf32>
    %c1_120 = arith.constant 1 : index
    %241 = memref.load %arg3[%c1_120] : memref<4xf32, #tpu.memory_space<smem>>
    %242 = vector.broadcast %241 : f32 to vector<256xf32>
    %243 = arith.addf %240, %242 : vector<256xf32>
    %cst_121 = arith.constant 0.000000e+00 : f32
    %244 = vector.broadcast %cst_121 : f32 to vector<256xf32>
    %245 = arith.maximumf %243, %244 : vector<256xf32>
    %cst_122 = arith.constant dense<0.000000e+00> : vector<256xf32>
    %246 = vector.multi_reduction <add>, %228, %cst_122 [0] : vector<4x256xf32> to vector<256xf32>
    %c2_123 = arith.constant 2 : index
    %247 = memref.load %arg3[%c2_123] : memref<4xf32, #tpu.memory_space<smem>>
    %248 = vector.broadcast %247 : f32 to vector<256xf32>
    %249 = arith.addf %246, %248 : vector<256xf32>
    %cst_124 = arith.constant 0.000000e+00 : f32
    %250 = vector.broadcast %cst_124 : f32 to vector<256xf32>
    %251 = arith.maximumf %249, %250 : vector<256xf32>
    %cst_125 = arith.constant dense<0.000000e+00> : vector<256xf32>
    %252 = vector.multi_reduction <add>, %233, %cst_125 [0] : vector<4x256xf32> to vector<256xf32>
    %c3_126 = arith.constant 3 : index
    %253 = memref.load %arg3[%c3_126] : memref<4xf32, #tpu.memory_space<smem>>
    %254 = vector.broadcast %253 : f32 to vector<256xf32>
    %255 = arith.addf %252, %254 : vector<256xf32>
    %cst_127 = arith.constant 0.000000e+00 : f32
    %256 = vector.broadcast %cst_127 : f32 to vector<256xf32>
    %257 = arith.maximumf %255, %256 : vector<256xf32>
    %c0_128 = arith.constant 0 : index
    %c17_129 = arith.constant 17 : index
    %258 = vector.load %arg8[%c0_128, %c17_129] : memref<4x290xf32, #tpu.memory_space<vmem>>, vector<1x256xf32>
    %259 = vector.shape_cast %258 : vector<1x256xf32> to vector<256xf32>
    %260 = vector.shape_cast %239 : vector<256xf32> to vector<1x256xf32>
    tpu.vector_store %arg8[%c0_128, %c17_129], %260 {strides = array<i32>} : memref<4x290xf32, #tpu.memory_space<vmem>>, vector<1x256xf32>,
    %c1_130 = arith.constant 1 : index
    %c17_131 = arith.constant 17 : index
    %261 = vector.load %arg8[%c1_130, %c17_131] : memref<4x290xf32, #tpu.memory_space<vmem>>, vector<1x256xf32>
    %262 = vector.shape_cast %261 : vector<1x256xf32> to vector<256xf32>
    %263 = vector.shape_cast %245 : vector<256xf32> to vector<1x256xf32>
    tpu.vector_store %arg8[%c1_130, %c17_131], %263 {strides = array<i32>} : memref<4x290xf32, #tpu.memory_space<vmem>>, vector<1x256xf32>,
    %c2_132 = arith.constant 2 : index
    %c17_133 = arith.constant 17 : index
    %264 = vector.load %arg8[%c2_132, %c17_133] : memref<4x290xf32, #tpu.memory_space<vmem>>, vector<1x256xf32>
    %265 = vector.shape_cast %264 : vector<1x256xf32> to vector<256xf32>
    %266 = vector.shape_cast %251 : vector<256xf32> to vector<1x256xf32>
    tpu.vector_store %arg8[%c2_132, %c17_133], %266 {strides = array<i32>} : memref<4x290xf32, #tpu.memory_space<vmem>>, vector<1x256xf32>,
    %c3_134 = arith.constant 3 : index
    %c17_135 = arith.constant 17 : index
    %267 = vector.load %arg8[%c3_134, %c17_135] : memref<4x290xf32, #tpu.memory_space<vmem>>, vector<1x256xf32>
    %268 = vector.shape_cast %267 : vector<1x256xf32> to vector<256xf32>
    %269 = vector.shape_cast %257 : vector<256xf32> to vector<1x256xf32>
    tpu.vector_store %arg8[%c3_134, %c17_135], %269 {strides = array<i32>} : memref<4x290xf32, #tpu.memory_space<vmem>>, vector<1x256xf32>,
    %cst_136 = arith.constant 0.000000e+00 : f32
    %270 = vector.broadcast %cst_136 : f32 to vector<4x256xf32>
    %cst_137 = arith.constant 0.000000e+00 : f32
    %271 = vector.broadcast %cst_137 : f32 to vector<4x256xf32>
    %cst_138 = arith.constant 0.000000e+00 : f32
    %272 = vector.broadcast %cst_138 : f32 to vector<4x256xf32>
    %cst_139 = arith.constant 0.000000e+00 : f32
    %273 = vector.broadcast %cst_139 : f32 to vector<4x256xf32>
    %c0_140 = arith.constant 0 : index
    %c0_141 = arith.constant 0 : index
    %274 = vector.load %arg8[%c0_140, %c0_141] : memref<4x290xf32, #tpu.memory_space<vmem>>, vector<4x256xf32>
    %cst_142 = arith.constant 0.000000e+00 : f32
    %275 = vector.broadcast %cst_142 : f32 to vector<4x256xf32>
    %276 = arith.select %18, %274, %275 : vector<4x256xi1>, vector<4x256xf32>
    %c0_143 = arith.constant 0 : index
    %c0_144 = arith.constant 0 : index
    %c0_145 = arith.constant 0 : index
    %277 = vector.load %arg4[%c0_143, %c0_144, %c0_145] : memref<36x4x1xf32, #tpu.memory_space<vmem>>, vector<1x4x1xf32>
    %278 = vector.shape_cast %277 : vector<1x4x1xf32> to vector<4x1xf32>
    %279 = vector.broadcast %278 : vector<4x1xf32> to vector<4x256xf32>
    %280 = arith.mulf %279, %276 : vector<4x256xf32>
    %281 = arith.addf %270, %280 : vector<4x256xf32>
    %c1_146 = arith.constant 1 : index
    %c0_147 = arith.constant 0 : index
    %c0_148 = arith.constant 0 : index
    %282 = vector.load %arg4[%c1_146, %c0_147, %c0_148] : memref<36x4x1xf32, #tpu.memory_space<vmem>>, vector<1x4x1xf32>
    %283 = vector.shape_cast %282 : vector<1x4x1xf32> to vector<4x1xf32>
    %284 = vector.broadcast %283 : vector<4x1xf32> to vector<4x256xf32>
    %285 = arith.mulf %284, %276 : vector<4x256xf32>
    %286 = arith.addf %271, %285 : vector<4x256xf32>
    %c2_149 = arith.constant 2 : index
    %c0_150 = arith.constant 0 : index
    %c0_151 = arith.constant 0 : index
    %287 = vector.load %arg4[%c2_149, %c0_150, %c0_151] : memref<36x4x1xf32, #tpu.memory_space<vmem>>, vector<1x4x1xf32>
    %288 = vector.shape_cast %287 : vector<1x4x1xf32> to vector<4x1xf32>
    %289 = vector.broadcast %288 : vector<4x1xf32> to vector<4x256xf32>
    %290 = arith.mulf %289, %276 : vector<4x256xf32>
    %291 = arith.addf %272, %290 : vector<4x256xf32>
    %c3_152 = arith.constant 3 : index
    %c0_153 = arith.constant 0 : index
    %c0_154 = arith.constant 0 : index
    %292 = vector.load %arg4[%c3_152, %c0_153, %c0_154] : memref<36x4x1xf32, #tpu.memory_space<vmem>>, vector<1x4x1xf32>
    %293 = vector.shape_cast %292 : vector<1x4x1xf32> to vector<4x1xf32>
    %294 = vector.broadcast %293 : vector<4x1xf32> to vector<4x256xf32>
    %295 = arith.mulf %294, %276 : vector<4x256xf32>
    %296 = arith.addf %273, %295 : vector<4x256xf32>
    %c0_155 = arith.constant 0 : index
    %c1_156 = arith.constant 1 : index
    %297 = vector.load %arg8[%c0_155, %c1_156] : memref<4x290xf32, #tpu.memory_space<vmem>>, vector<4x256xf32>
    %c4_157 = arith.constant 4 : index
    %c0_158 = arith.constant 0 : index
    %c0_159 = arith.constant 0 : index
    %298 = vector.load %arg4[%c4_157, %c0_158, %c0_159] : memref<36x4x1xf32, #tpu.memory_space<vmem>>, vector<1x4x1xf32>
    %299 = vector.shape_cast %298 : vector<1x4x1xf32> to vector<4x1xf32>
    %300 = vector.broadcast %299 : vector<4x1xf32> to vector<4x256xf32>
    %301 = arith.mulf %300, %297 : vector<4x256xf32>
    %302 = arith.addf %281, %301 : vector<4x256xf32>
    %c5_160 = arith.constant 5 : index
    %c0_161 = arith.constant 0 : index
    %c0_162 = arith.constant 0 : index
    %303 = vector.load %arg4[%c5_160, %c0_161, %c0_162] : memref<36x4x1xf32, #tpu.memory_space<vmem>>, vector<1x4x1xf32>
    %304 = vector.shape_cast %303 : vector<1x4x1xf32> to vector<4x1xf32>
    %305 = vector.broadcast %304 : vector<4x1xf32> to vector<4x256xf32>
    %306 = arith.mulf %305, %297 : vector<4x256xf32>
    %307 = arith.addf %286, %306 : vector<4x256xf32>
    %c6_163 = arith.constant 6 : index
    %c0_164 = arith.constant 0 : index
    %c0_165 = arith.constant 0 : index
    %308 = vector.load %arg4[%c6_163, %c0_164, %c0_165] : memref<36x4x1xf32, #tpu.memory_space<vmem>>, vector<1x4x1xf32>
    %309 = vector.shape_cast %308 : vector<1x4x1xf32> to vector<4x1xf32>
    %310 = vector.broadcast %309 : vector<4x1xf32> to vector<4x256xf32>
    %311 = arith.mulf %310, %297 : vector<4x256xf32>
    %312 = arith.addf %291, %311 : vector<4x256xf32>
    %c7_166 = arith.constant 7 : index
    %c0_167 = arith.constant 0 : index
    %c0_168 = arith.constant 0 : index
    %313 = vector.load %arg4[%c7_166, %c0_167, %c0_168] : memref<36x4x1xf32, #tpu.memory_space<vmem>>, vector<1x4x1xf32>
    %314 = vector.shape_cast %313 : vector<1x4x1xf32> to vector<4x1xf32>
    %315 = vector.broadcast %314 : vector<4x1xf32> to vector<4x256xf32>
    %316 = arith.mulf %315, %297 : vector<4x256xf32>
    %317 = arith.addf %296, %316 : vector<4x256xf32>
    %c0_169 = arith.constant 0 : index
    %c2_170 = arith.constant 2 : index
    %318 = vector.load %arg8[%c0_169, %c2_170] : memref<4x290xf32, #tpu.memory_space<vmem>>, vector<4x256xf32>
    %cst_171 = arith.constant 0.000000e+00 : f32
    %319 = vector.broadcast %cst_171 : f32 to vector<4x256xf32>
    %320 = arith.select %20, %318, %319 : vector<4x256xi1>, vector<4x256xf32>
    %c8_172 = arith.constant 8 : index
    %c0_173 = arith.constant 0 : index
    %c0_174 = arith.constant 0 : index
    %321 = vector.load %arg4[%c8_172, %c0_173, %c0_174] : memref<36x4x1xf32, #tpu.memory_space<vmem>>, vector<1x4x1xf32>
    %322 = vector.shape_cast %321 : vector<1x4x1xf32> to vector<4x1xf32>
    %323 = vector.broadcast %322 : vector<4x1xf32> to vector<4x256xf32>
    %324 = arith.mulf %323, %320 : vector<4x256xf32>
    %325 = arith.addf %302, %324 : vector<4x256xf32>
    %c9_175 = arith.constant 9 : index
    %c0_176 = arith.constant 0 : index
    %c0_177 = arith.constant 0 : index
    %326 = vector.load %arg4[%c9_175, %c0_176, %c0_177] : memref<36x4x1xf32, #tpu.memory_space<vmem>>, vector<1x4x1xf32>
    %327 = vector.shape_cast %326 : vector<1x4x1xf32> to vector<4x1xf32>
    %328 = vector.broadcast %327 : vector<4x1xf32> to vector<4x256xf32>
    %329 = arith.mulf %328, %320 : vector<4x256xf32>
    %330 = arith.addf %307, %329 : vector<4x256xf32>
    %c10_178 = arith.constant 10 : index
    %c0_179 = arith.constant 0 : index
    %c0_180 = arith.constant 0 : index
    %331 = vector.load %arg4[%c10_178, %c0_179, %c0_180] : memref<36x4x1xf32, #tpu.memory_space<vmem>>, vector<1x4x1xf32>
    %332 = vector.shape_cast %331 : vector<1x4x1xf32> to vector<4x1xf32>
    %333 = vector.broadcast %332 : vector<4x1xf32> to vector<4x256xf32>
    %334 = arith.mulf %333, %320 : vector<4x256xf32>
    %335 = arith.addf %312, %334 : vector<4x256xf32>
    %c11_181 = arith.constant 11 : index
    %c0_182 = arith.constant 0 : index
    %c0_183 = arith.constant 0 : index
    %336 = vector.load %arg4[%c11_181, %c0_182, %c0_183] : memref<36x4x1xf32, #tpu.memory_space<vmem>>, vector<1x4x1xf32>
    %337 = vector.shape_cast %336 : vector<1x4x1xf32> to vector<4x1xf32>
    %338 = vector.broadcast %337 : vector<4x1xf32> to vector<4x256xf32>
    %339 = arith.mulf %338, %320 : vector<4x256xf32>
    %340 = arith.addf %317, %339 : vector<4x256xf32>
    %c0_184 = arith.constant 0 : index
    %c16_185 = arith.constant 16 : index
    %341 = vector.load %arg8[%c0_184, %c16_185] : memref<4x290xf32, #tpu.memory_space<vmem>>, vector<4x256xf32>
    %cst_186 = arith.constant 0.000000e+00 : f32
    %342 = vector.broadcast %cst_186 : f32 to vector<4x256xf32>
    %343 = arith.select %18, %341, %342 : vector<4x256xi1>, vector<4x256xf32>
    %c12_187 = arith.constant 12 : index
    %c0_188 = arith.constant 0 : index
    %c0_189 = arith.constant 0 : index
    %344 = vector.load %arg4[%c12_187, %c0_188, %c0_189] : memref<36x4x1xf32, #tpu.memory_space<vmem>>, vector<1x4x1xf32>
    %345 = vector.shape_cast %344 : vector<1x4x1xf32> to vector<4x1xf32>
    %346 = vector.broadcast %345 : vector<4x1xf32> to vector<4x256xf32>
    %347 = arith.mulf %346, %343 : vector<4x256xf32>
    %348 = arith.addf %325, %347 : vector<4x256xf32>
    %c13_190 = arith.constant 13 : index
    %c0_191 = arith.constant 0 : index
    %c0_192 = arith.constant 0 : index
    %349 = vector.load %arg4[%c13_190, %c0_191, %c0_192] : memref<36x4x1xf32, #tpu.memory_space<vmem>>, vector<1x4x1xf32>
    %350 = vector.shape_cast %349 : vector<1x4x1xf32> to vector<4x1xf32>
    %351 = vector.broadcast %350 : vector<4x1xf32> to vector<4x256xf32>
    %352 = arith.mulf %351, %343 : vector<4x256xf32>
    %353 = arith.addf %330, %352 : vector<4x256xf32>
    %c14_193 = arith.constant 14 : index
    %c0_194 = arith.constant 0 : index
    %c0_195 = arith.constant 0 : index
    %354 = vector.load %arg4[%c14_193, %c0_194, %c0_195] : memref<36x4x1xf32, #tpu.memory_space<vmem>>, vector<1x4x1xf32>
    %355 = vector.shape_cast %354 : vector<1x4x1xf32> to vector<4x1xf32>
    %356 = vector.broadcast %355 : vector<4x1xf32> to vector<4x256xf32>
    %357 = arith.mulf %356, %343 : vector<4x256xf32>
    %358 = arith.addf %335, %357 : vector<4x256xf32>
    %c15_196 = arith.constant 15 : index
    %c0_197 = arith.constant 0 : index
    %c0_198 = arith.constant 0 : index
    %359 = vector.load %arg4[%c15_196, %c0_197, %c0_198] : memref<36x4x1xf32, #tpu.memory_space<vmem>>, vector<1x4x1xf32>
    %360 = vector.shape_cast %359 : vector<1x4x1xf32> to vector<4x1xf32>
    %361 = vector.broadcast %360 : vector<4x1xf32> to vector<4x256xf32>
    %362 = arith.mulf %361, %343 : vector<4x256xf32>
    %363 = arith.addf %340, %362 : vector<4x256xf32>
    %c0_199 = arith.constant 0 : index
    %c17_200 = arith.constant 17 : index
    %364 = vector.load %arg8[%c0_199, %c17_200] : memref<4x290xf32, #tpu.memory_space<vmem>>, vector<4x256xf32>
    %c16_201 = arith.constant 16 : index
    %c0_202 = arith.constant 0 : index
    %c0_203 = arith.constant 0 : index
    %365 = vector.load %arg4[%c16_201, %c0_202, %c0_203] : memref<36x4x1xf32, #tpu.memory_space<vmem>>, vector<1x4x1xf32>
    %366 = vector.shape_cast %365 : vector<1x4x1xf32> to vector<4x1xf32>
    %367 = vector.broadcast %366 : vector<4x1xf32> to vector<4x256xf32>
    %368 = arith.mulf %367, %364 : vector<4x256xf32>
    %369 = arith.addf %348, %368 : vector<4x256xf32>
    %c17_204 = arith.constant 17 : index
    %c0_205 = arith.constant 0 : index
    %c0_206 = arith.constant 0 : index
    %370 = vector.load %arg4[%c17_204, %c0_205, %c0_206] : memref<36x4x1xf32, #tpu.memory_space<vmem>>, vector<1x4x1xf32>
    %371 = vector.shape_cast %370 : vector<1x4x1xf32> to vector<4x1xf32>
    %372 = vector.broadcast %371 : vector<4x1xf32> to vector<4x256xf32>
    %373 = arith.mulf %372, %364 : vector<4x256xf32>
    %374 = arith.addf %353, %373 : vector<4x256xf32>
    %c18_207 = arith.constant 18 : index
    %c0_208 = arith.constant 0 : index
    %c0_209 = arith.constant 0 : index
    %375 = vector.load %arg4[%c18_207, %c0_208, %c0_209] : memref<36x4x1xf32, #tpu.memory_space<vmem>>, vector<1x4x1xf32>
    %376 = vector.shape_cast %375 : vector<1x4x1xf32> to vector<4x1xf32>
    %377 = vector.broadcast %376 : vector<4x1xf32> to vector<4x256xf32>
    %378 = arith.mulf %377, %364 : vector<4x256xf32>
    %379 = arith.addf %358, %378 : vector<4x256xf32>
    %c19_210 = arith.constant 19 : index
    %c0_211 = arith.constant 0 : index
    %c0_212 = arith.constant 0 : index
    %380 = vector.load %arg4[%c19_210, %c0_211, %c0_212] : memref<36x4x1xf32, #tpu.memory_space<vmem>>, vector<1x4x1xf32>
    %381 = vector.shape_cast %380 : vector<1x4x1xf32> to vector<4x1xf32>
    %382 = vector.broadcast %381 : vector<4x1xf32> to vector<4x256xf32>
    %383 = arith.mulf %382, %364 : vector<4x256xf32>
    %384 = arith.addf %363, %383 : vector<4x256xf32>
    %c0_213 = arith.constant 0 : index
    %c18_214 = arith.constant 18 : index
    %385 = vector.load %arg8[%c0_213, %c18_214] : memref<4x290xf32, #tpu.memory_space<vmem>>, vector<4x256xf32>
    %cst_215 = arith.constant 0.000000e+00 : f32
    %386 = vector.broadcast %cst_215 : f32 to vector<4x256xf32>
    %387 = arith.select %20, %385, %386 : vector<4x256xi1>, vector<4x256xf32>
    %c20_216 = arith.constant 20 : index
    %c0_217 = arith.constant 0 : index
    %c0_218 = arith.constant 0 : index
    %388 = vector.load %arg4[%c20_216, %c0_217, %c0_218] : memref<36x4x1xf32, #tpu.memory_space<vmem>>, vector<1x4x1xf32>
    %389 = vector.shape_cast %388 : vector<1x4x1xf32> to vector<4x1xf32>
    %390 = vector.broadcast %389 : vector<4x1xf32> to vector<4x256xf32>
    %391 = arith.mulf %390, %387 : vector<4x256xf32>
    %392 = arith.addf %369, %391 : vector<4x256xf32>
    %c21_219 = arith.constant 21 : index
    %c0_220 = arith.constant 0 : index
    %c0_221 = arith.constant 0 : index
    %393 = vector.load %arg4[%c21_219, %c0_220, %c0_221] : memref<36x4x1xf32, #tpu.memory_space<vmem>>, vector<1x4x1xf32>
    %394 = vector.shape_cast %393 : vector<1x4x1xf32> to vector<4x1xf32>
    %395 = vector.broadcast %394 : vector<4x1xf32> to vector<4x256xf32>
    %396 = arith.mulf %395, %387 : vector<4x256xf32>
    %397 = arith.addf %374, %396 : vector<4x256xf32>
    %c22_222 = arith.constant 22 : index
    %c0_223 = arith.constant 0 : index
    %c0_224 = arith.constant 0 : index
    %398 = vector.load %arg4[%c22_222, %c0_223, %c0_224] : memref<36x4x1xf32, #tpu.memory_space<vmem>>, vector<1x4x1xf32>
    %399 = vector.shape_cast %398 : vector<1x4x1xf32> to vector<4x1xf32>
    %400 = vector.broadcast %399 : vector<4x1xf32> to vector<4x256xf32>
    %401 = arith.mulf %400, %387 : vector<4x256xf32>
    %402 = arith.addf %379, %401 : vector<4x256xf32>
    %c23_225 = arith.constant 23 : index
    %c0_226 = arith.constant 0 : index
    %c0_227 = arith.constant 0 : index
    %403 = vector.load %arg4[%c23_225, %c0_226, %c0_227] : memref<36x4x1xf32, #tpu.memory_space<vmem>>, vector<1x4x1xf32>
    %404 = vector.shape_cast %403 : vector<1x4x1xf32> to vector<4x1xf32>
    %405 = vector.broadcast %404 : vector<4x1xf32> to vector<4x256xf32>
    %406 = arith.mulf %405, %387 : vector<4x256xf32>
    %407 = arith.addf %384, %406 : vector<4x256xf32>
    %c0_228 = arith.constant 0 : index
    %c32_229 = arith.constant 32 : index
    %408 = vector.load %arg8[%c0_228, %c32_229] : memref<4x290xf32, #tpu.memory_space<vmem>>, vector<4x256xf32>
    %cst_230 = arith.constant 0.000000e+00 : f32
    %409 = vector.broadcast %cst_230 : f32 to vector<4x256xf32>
    %410 = arith.select %18, %408, %409 : vector<4x256xi1>, vector<4x256xf32>
    %c24_231 = arith.constant 24 : index
    %c0_232 = arith.constant 0 : index
    %c0_233 = arith.constant 0 : index
    %411 = vector.load %arg4[%c24_231, %c0_232, %c0_233] : memref<36x4x1xf32, #tpu.memory_space<vmem>>, vector<1x4x1xf32>
    %412 = vector.shape_cast %411 : vector<1x4x1xf32> to vector<4x1xf32>
    %413 = vector.broadcast %412 : vector<4x1xf32> to vector<4x256xf32>
    %414 = arith.mulf %413, %410 : vector<4x256xf32>
    %415 = arith.addf %392, %414 : vector<4x256xf32>
    %c25_234 = arith.constant 25 : index
    %c0_235 = arith.constant 0 : index
    %c0_236 = arith.constant 0 : index
    %416 = vector.load %arg4[%c25_234, %c0_235, %c0_236] : memref<36x4x1xf32, #tpu.memory_space<vmem>>, vector<1x4x1xf32>
    %417 = vector.shape_cast %416 : vector<1x4x1xf32> to vector<4x1xf32>
    %418 = vector.broadcast %417 : vector<4x1xf32> to vector<4x256xf32>
    %419 = arith.mulf %418, %410 : vector<4x256xf32>
    %420 = arith.addf %397, %419 : vector<4x256xf32>
    %c26_237 = arith.constant 26 : index
    %c0_238 = arith.constant 0 : index
    %c0_239 = arith.constant 0 : index
    %421 = vector.load %arg4[%c26_237, %c0_238, %c0_239] : memref<36x4x1xf32, #tpu.memory_space<vmem>>, vector<1x4x1xf32>
    %422 = vector.shape_cast %421 : vector<1x4x1xf32> to vector<4x1xf32>
    %423 = vector.broadcast %422 : vector<4x1xf32> to vector<4x256xf32>
    %424 = arith.mulf %423, %410 : vector<4x256xf32>
    %425 = arith.addf %402, %424 : vector<4x256xf32>
    %c27_240 = arith.constant 27 : index
    %c0_241 = arith.constant 0 : index
    %c0_242 = arith.constant 0 : index
    %426 = vector.load %arg4[%c27_240, %c0_241, %c0_242] : memref<36x4x1xf32, #tpu.memory_space<vmem>>, vector<1x4x1xf32>
    %427 = vector.shape_cast %426 : vector<1x4x1xf32> to vector<4x1xf32>
    %428 = vector.broadcast %427 : vector<4x1xf32> to vector<4x256xf32>
    %429 = arith.mulf %428, %410 : vector<4x256xf32>
    %430 = arith.addf %407, %429 : vector<4x256xf32>
    %c0_243 = arith.constant 0 : index
    %c33_244 = arith.constant 33 : index
    %431 = vector.load %arg8[%c0_243, %c33_244] : memref<4x290xf32, #tpu.memory_space<vmem>>, vector<4x256xf32>
    %c28_245 = arith.constant 28 : index
    %c0_246 = arith.constant 0 : index
    %c0_247 = arith.constant 0 : index
    %432 = vector.load %arg4[%c28_245, %c0_246, %c0_247] : memref<36x4x1xf32, #tpu.memory_space<vmem>>, vector<1x4x1xf32>
    %433 = vector.shape_cast %432 : vector<1x4x1xf32> to vector<4x1xf32>
    %434 = vector.broadcast %433 : vector<4x1xf32> to vector<4x256xf32>
    %435 = arith.mulf %434, %431 : vector<4x256xf32>
    %436 = arith.addf %415, %435 : vector<4x256xf32>
    %c29_248 = arith.constant 29 : index
    %c0_249 = arith.constant 0 : index
    %c0_250 = arith.constant 0 : index
    %437 = vector.load %arg4[%c29_248, %c0_249, %c0_250] : memref<36x4x1xf32, #tpu.memory_space<vmem>>, vector<1x4x1xf32>
    %438 = vector.shape_cast %437 : vector<1x4x1xf32> to vector<4x1xf32>
    %439 = vector.broadcast %438 : vector<4x1xf32> to vector<4x256xf32>
    %440 = arith.mulf %439, %431 : vector<4x256xf32>
    %441 = arith.addf %420, %440 : vector<4x256xf32>
    %c30_251 = arith.constant 30 : index
    %c0_252 = arith.constant 0 : index
    %c0_253 = arith.constant 0 : index
    %442 = vector.load %arg4[%c30_251, %c0_252, %c0_253] : memref<36x4x1xf32, #tpu.memory_space<vmem>>, vector<1x4x1xf32>
    %443 = vector.shape_cast %442 : vector<1x4x1xf32> to vector<4x1xf32>
    %444 = vector.broadcast %443 : vector<4x1xf32> to vector<4x256xf32>
    %445 = arith.mulf %444, %431 : vector<4x256xf32>
    %446 = arith.addf %425, %445 : vector<4x256xf32>
    %c31_254 = arith.constant 31 : index
    %c0_255 = arith.constant 0 : index
    %c0_256 = arith.constant 0 : index
    %447 = vector.load %arg4[%c31_254, %c0_255, %c0_256] : memref<36x4x1xf32, #tpu.memory_space<vmem>>, vector<1x4x1xf32>
    %448 = vector.shape_cast %447 : vector<1x4x1xf32> to vector<4x1xf32>
    %449 = vector.broadcast %448 : vector<4x1xf32> to vector<4x256xf32>
    %450 = arith.mulf %449, %431 : vector<4x256xf32>
    %451 = arith.addf %430, %450 : vector<4x256xf32>
    %c0_257 = arith.constant 0 : index
    %c34_258 = arith.constant 34 : index
    %452 = vector.load %arg8[%c0_257, %c34_258] : memref<4x290xf32, #tpu.memory_space<vmem>>, vector<4x256xf32>
    %cst_259 = arith.constant 0.000000e+00 : f32
    %453 = vector.broadcast %cst_259 : f32 to vector<4x256xf32>
    %454 = arith.select %20, %452, %453 : vector<4x256xi1>, vector<4x256xf32>
    %c32_260 = arith.constant 32 : index
    %c0_261 = arith.constant 0 : index
    %c0_262 = arith.constant 0 : index
    %455 = vector.load %arg4[%c32_260, %c0_261, %c0_262] : memref<36x4x1xf32, #tpu.memory_space<vmem>>, vector<1x4x1xf32>
    %456 = vector.shape_cast %455 : vector<1x4x1xf32> to vector<4x1xf32>
    %457 = vector.broadcast %456 : vector<4x1xf32> to vector<4x256xf32>
    %458 = arith.mulf %457, %454 : vector<4x256xf32>
    %459 = arith.addf %436, %458 : vector<4x256xf32>
    %c33_263 = arith.constant 33 : index
    %c0_264 = arith.constant 0 : index
    %c0_265 = arith.constant 0 : index
    %460 = vector.load %arg4[%c33_263, %c0_264, %c0_265] : memref<36x4x1xf32, #tpu.memory_space<vmem>>, vector<1x4x1xf32>
    %461 = vector.shape_cast %460 : vector<1x4x1xf32> to vector<4x1xf32>
    %462 = vector.broadcast %461 : vector<4x1xf32> to vector<4x256xf32>
    %463 = arith.mulf %462, %454 : vector<4x256xf32>
    %464 = arith.addf %441, %463 : vector<4x256xf32>
    %c34_266 = arith.constant 34 : index
    %c0_267 = arith.constant 0 : index
    %c0_268 = arith.constant 0 : index
    %465 = vector.load %arg4[%c34_266, %c0_267, %c0_268] : memref<36x4x1xf32, #tpu.memory_space<vmem>>, vector<1x4x1xf32>
    %466 = vector.shape_cast %465 : vector<1x4x1xf32> to vector<4x1xf32>
    %467 = vector.broadcast %466 : vector<4x1xf32> to vector<4x256xf32>
    %468 = arith.mulf %467, %454 : vector<4x256xf32>
    %469 = arith.addf %446, %468 : vector<4x256xf32>
    %c35_269 = arith.constant 35 : index
    %c0_270 = arith.constant 0 : index
    %c0_271 = arith.constant 0 : index
    %470 = vector.load %arg4[%c35_269, %c0_270, %c0_271] : memref<36x4x1xf32, #tpu.memory_space<vmem>>, vector<1x4x1xf32>
    %471 = vector.shape_cast %470 : vector<1x4x1xf32> to vector<4x1xf32>
    %472 = vector.broadcast %471 : vector<4x1xf32> to vector<4x256xf32>
    %473 = arith.mulf %472, %454 : vector<4x256xf32>
    %474 = arith.addf %451, %473 : vector<4x256xf32>
    %cst_272 = arith.constant dense<0.000000e+00> : vector<256xf32>
    %475 = vector.multi_reduction <add>, %459, %cst_272 [0] : vector<4x256xf32> to vector<256xf32>
    %c0_273 = arith.constant 0 : index
    %476 = memref.load %arg5[%c0_273] : memref<4xf32, #tpu.memory_space<smem>>
    %477 = vector.broadcast %476 : f32 to vector<256xf32>
    %478 = arith.addf %475, %477 : vector<256xf32>
    %cst_274 = arith.constant dense<0.000000e+00> : vector<256xf32>
    %479 = vector.multi_reduction <add>, %464, %cst_274 [0] : vector<4x256xf32> to vector<256xf32>
    %c1_275 = arith.constant 1 : index
    %480 = memref.load %arg5[%c1_275] : memref<4xf32, #tpu.memory_space<smem>>
    %481 = vector.broadcast %480 : f32 to vector<256xf32>
    %482 = arith.addf %479, %481 : vector<256xf32>
    %cst_276 = arith.constant dense<0.000000e+00> : vector<256xf32>
    %483 = vector.multi_reduction <add>, %469, %cst_276 [0] : vector<4x256xf32> to vector<256xf32>
    %c2_277 = arith.constant 2 : index
    %484 = memref.load %arg5[%c2_277] : memref<4xf32, #tpu.memory_space<smem>>
    %485 = vector.broadcast %484 : f32 to vector<256xf32>
    %486 = arith.addf %483, %485 : vector<256xf32>
    %cst_278 = arith.constant dense<0.000000e+00> : vector<256xf32>
    %487 = vector.multi_reduction <add>, %474, %cst_278 [0] : vector<4x256xf32> to vector<256xf32>
    %c3_279 = arith.constant 3 : index
    %488 = memref.load %arg5[%c3_279] : memref<4xf32, #tpu.memory_space<smem>>
    %489 = vector.broadcast %488 : f32 to vector<256xf32>
    %490 = arith.addf %487, %489 : vector<256xf32>
    %c0_280 = arith.constant 0 : index
    %c17_281 = arith.constant 17 : index
    %491 = vector.load %arg7[%c0_280, %c17_281] : memref<4x290xf32, #tpu.memory_space<vmem>>, vector<1x256xf32>
    %492 = vector.shape_cast %491 : vector<1x256xf32> to vector<256xf32>
    %493 = arith.addf %478, %492 : vector<256xf32>
    %c0_282 = arith.constant 0 : index
    %c0_283 = arith.constant 0 : index
    %c0_284 = arith.constant 0 : index
    %494 = vector.load %arg6[%c0_282, %c0_283, %c0_284] : memref<2x4x256xf32, #tpu.memory_space<vmem>>, vector<1x1x256xf32>
    %495 = vector.shape_cast %494 : vector<1x1x256xf32> to vector<256xf32>
    %496 = vector.shape_cast %493 : vector<256xf32> to vector<1x1x256xf32>
    tpu.vector_store %arg6[%c0_282, %c0_283, %c0_284], %496 {strides = array<i32>} : memref<2x4x256xf32, #tpu.memory_space<vmem>>, vector<1x1x256xf32>,
    %c1_285 = arith.constant 1 : index
    %c17_286 = arith.constant 17 : index
    %497 = vector.load %arg7[%c1_285, %c17_286] : memref<4x290xf32, #tpu.memory_space<vmem>>, vector<1x256xf32>
    %498 = vector.shape_cast %497 : vector<1x256xf32> to vector<256xf32>
    %499 = arith.addf %482, %498 : vector<256xf32>
    %c0_287 = arith.constant 0 : index
    %c1_288 = arith.constant 1 : index
    %c0_289 = arith.constant 0 : index
    %500 = vector.load %arg6[%c0_287, %c1_288, %c0_289] : memref<2x4x256xf32, #tpu.memory_space<vmem>>, vector<1x1x256xf32>
    %501 = vector.shape_cast %500 : vector<1x1x256xf32> to vector<256xf32>
    %502 = vector.shape_cast %499 : vector<256xf32> to vector<1x1x256xf32>
    tpu.vector_store %arg6[%c0_287, %c1_288, %c0_289], %502 {strides = array<i32>} : memref<2x4x256xf32, #tpu.memory_space<vmem>>, vector<1x1x256xf32>,
    %c2_290 = arith.constant 2 : index
    %c17_291 = arith.constant 17 : index
    %503 = vector.load %arg7[%c2_290, %c17_291] : memref<4x290xf32, #tpu.memory_space<vmem>>, vector<1x256xf32>
    %504 = vector.shape_cast %503 : vector<1x256xf32> to vector<256xf32>
    %505 = arith.addf %486, %504 : vector<256xf32>
    %c0_292 = arith.constant 0 : index
    %c2_293 = arith.constant 2 : index
    %c0_294 = arith.constant 0 : index
    %506 = vector.load %arg6[%c0_292, %c2_293, %c0_294] : memref<2x4x256xf32, #tpu.memory_space<vmem>>, vector<1x1x256xf32>
    %507 = vector.shape_cast %506 : vector<1x1x256xf32> to vector<256xf32>
    %508 = vector.shape_cast %505 : vector<256xf32> to vector<1x1x256xf32>
    tpu.vector_store %arg6[%c0_292, %c2_293, %c0_294], %508 {strides = array<i32>} : memref<2x4x256xf32, #tpu.memory_space<vmem>>, vector<1x1x256xf32>,
    %c3_295 = arith.constant 3 : index
    %c17_296 = arith.constant 17 : index
    %509 = vector.load %arg7[%c3_295, %c17_296] : memref<4x290xf32, #tpu.memory_space<vmem>>, vector<1x256xf32>
    %510 = vector.shape_cast %509 : vector<1x256xf32> to vector<256xf32>
    %511 = arith.addf %490, %510 : vector<256xf32>
    %c0_297 = arith.constant 0 : index
    %c3_298 = arith.constant 3 : index
    %c0_299 = arith.constant 0 : index
    %512 = vector.load %arg6[%c0_297, %c3_298, %c0_299] : memref<2x4x256xf32, #tpu.memory_space<vmem>>, vector<1x1x256xf32>
    %513 = vector.shape_cast %512 : vector<1x1x256xf32> to vector<256xf32>
    %514 = vector.shape_cast %511 : vector<256xf32> to vector<1x1x256xf32>
    tpu.vector_store %arg6[%c0_297, %c3_298, %c0_299], %514 {strides = array<i32>} : memref<2x4x256xf32, #tpu.memory_space<vmem>>, vector<1x1x256xf32>,
    %c1_300 = arith.constant 1 : index
    %c0_301 = arith.constant 0 : index
    %c0_302 = arith.constant 0 : index
    %515 = vector.load %arg1[%c1_300, %c0_301, %c0_302] : memref<2x4x256xf32, #tpu.memory_space<vmem>>, vector<1x4x256xf32>
    %516 = vector.shape_cast %515 : vector<1x4x256xf32> to vector<4x256xf32>
    %c0_303 = arith.constant 0 : index
    %c17_304 = arith.constant 17 : index
    %517 = vector.load %arg7[%c0_303, %c17_304] : memref<4x290xf32, #tpu.memory_space<vmem>>, vector<4x256xf32>
    tpu.vector_store %arg7[%c0_303, %c17_304], %516 {strides = array<i32>} : memref<4x290xf32, #tpu.memory_space<vmem>>, vector<4x256xf32>,
    %cst_305 = arith.constant 0.000000e+00 : f32
    %518 = vector.broadcast %cst_305 : f32 to vector<4x256xf32>
    %cst_306 = arith.constant 0.000000e+00 : f32
    %519 = vector.broadcast %cst_306 : f32 to vector<4x256xf32>
    %cst_307 = arith.constant 0.000000e+00 : f32
    %520 = vector.broadcast %cst_307 : f32 to vector<4x256xf32>
    %cst_308 = arith.constant 0.000000e+00 : f32
    %521 = vector.broadcast %cst_308 : f32 to vector<4x256xf32>
    %c0_309 = arith.constant 0 : index
    %c0_310 = arith.constant 0 : index
    %522 = vector.load %arg7[%c0_309, %c0_310] : memref<4x290xf32, #tpu.memory_space<vmem>>, vector<4x256xf32>
    %cst_311 = arith.constant 0.000000e+00 : f32
    %523 = vector.broadcast %cst_311 : f32 to vector<4x256xf32>
    %524 = arith.select %18, %522, %523 : vector<4x256xi1>, vector<4x256xf32>
    %c0_312 = arith.constant 0 : index
    %c0_313 = arith.constant 0 : index
    %c0_314 = arith.constant 0 : index
    %525 = vector.load %arg2[%c0_312, %c0_313, %c0_314] : memref<36x4x1xf32, #tpu.memory_space<vmem>>, vector<1x4x1xf32>
    %526 = vector.shape_cast %525 : vector<1x4x1xf32> to vector<4x1xf32>
    %527 = vector.broadcast %526 : vector<4x1xf32> to vector<4x256xf32>
    %528 = arith.mulf %527, %524 : vector<4x256xf32>
    %529 = arith.addf %518, %528 : vector<4x256xf32>
    %c1_315 = arith.constant 1 : index
    %c0_316 = arith.constant 0 : index
    %c0_317 = arith.constant 0 : index
    %530 = vector.load %arg2[%c1_315, %c0_316, %c0_317] : memref<36x4x1xf32, #tpu.memory_space<vmem>>, vector<1x4x1xf32>
    %531 = vector.shape_cast %530 : vector<1x4x1xf32> to vector<4x1xf32>
    %532 = vector.broadcast %531 : vector<4x1xf32> to vector<4x256xf32>
    %533 = arith.mulf %532, %524 : vector<4x256xf32>
    %534 = arith.addf %519, %533 : vector<4x256xf32>
    %c2_318 = arith.constant 2 : index
    %c0_319 = arith.constant 0 : index
    %c0_320 = arith.constant 0 : index
    %535 = vector.load %arg2[%c2_318, %c0_319, %c0_320] : memref<36x4x1xf32, #tpu.memory_space<vmem>>, vector<1x4x1xf32>
    %536 = vector.shape_cast %535 : vector<1x4x1xf32> to vector<4x1xf32>
    %537 = vector.broadcast %536 : vector<4x1xf32> to vector<4x256xf32>
    %538 = arith.mulf %537, %524 : vector<4x256xf32>
    %539 = arith.addf %520, %538 : vector<4x256xf32>
    %c3_321 = arith.constant 3 : index
    %c0_322 = arith.constant 0 : index
    %c0_323 = arith.constant 0 : index
    %540 = vector.load %arg2[%c3_321, %c0_322, %c0_323] : memref<36x4x1xf32, #tpu.memory_space<vmem>>, vector<1x4x1xf32>
    %541 = vector.shape_cast %540 : vector<1x4x1xf32> to vector<4x1xf32>
    %542 = vector.broadcast %541 : vector<4x1xf32> to vector<4x256xf32>
    %543 = arith.mulf %542, %524 : vector<4x256xf32>
    %544 = arith.addf %521, %543 : vector<4x256xf32>
    %c0_324 = arith.constant 0 : index
    %c1_325 = arith.constant 1 : index
    %545 = vector.load %arg7[%c0_324, %c1_325] : memref<4x290xf32, #tpu.memory_space<vmem>>, vector<4x256xf32>
    %c4_326 = arith.constant 4 : index
    %c0_327 = arith.constant 0 : index
    %c0_328 = arith.constant 0 : index
    %546 = vector.load %arg2[%c4_326, %c0_327, %c0_328] : memref<36x4x1xf32, #tpu.memory_space<vmem>>, vector<1x4x1xf32>
    %547 = vector.shape_cast %546 : vector<1x4x1xf32> to vector<4x1xf32>
    %548 = vector.broadcast %547 : vector<4x1xf32> to vector<4x256xf32>
    %549 = arith.mulf %548, %545 : vector<4x256xf32>
    %550 = arith.addf %529, %549 : vector<4x256xf32>
    %c5_329 = arith.constant 5 : index
    %c0_330 = arith.constant 0 : index
    %c0_331 = arith.constant 0 : index
    %551 = vector.load %arg2[%c5_329, %c0_330, %c0_331] : memref<36x4x1xf32, #tpu.memory_space<vmem>>, vector<1x4x1xf32>
    %552 = vector.shape_cast %551 : vector<1x4x1xf32> to vector<4x1xf32>
    %553 = vector.broadcast %552 : vector<4x1xf32> to vector<4x256xf32>
    %554 = arith.mulf %553, %545 : vector<4x256xf32>
    %555 = arith.addf %534, %554 : vector<4x256xf32>
    %c6_332 = arith.constant 6 : index
    %c0_333 = arith.constant 0 : index
    %c0_334 = arith.constant 0 : index
    %556 = vector.load %arg2[%c6_332, %c0_333, %c0_334] : memref<36x4x1xf32, #tpu.memory_space<vmem>>, vector<1x4x1xf32>
    %557 = vector.shape_cast %556 : vector<1x4x1xf32> to vector<4x1xf32>
    %558 = vector.broadcast %557 : vector<4x1xf32> to vector<4x256xf32>
    %559 = arith.mulf %558, %545 : vector<4x256xf32>
    %560 = arith.addf %539, %559 : vector<4x256xf32>
    %c7_335 = arith.constant 7 : index
    %c0_336 = arith.constant 0 : index
    %c0_337 = arith.constant 0 : index
    %561 = vector.load %arg2[%c7_335, %c0_336, %c0_337] : memref<36x4x1xf32, #tpu.memory_space<vmem>>, vector<1x4x1xf32>
    %562 = vector.shape_cast %561 : vector<1x4x1xf32> to vector<4x1xf32>
    %563 = vector.broadcast %562 : vector<4x1xf32> to vector<4x256xf32>
    %564 = arith.mulf %563, %545 : vector<4x256xf32>
    %565 = arith.addf %544, %564 : vector<4x256xf32>
    %c0_338 = arith.constant 0 : index
    %c2_339 = arith.constant 2 : index
    %566 = vector.load %arg7[%c0_338, %c2_339] : memref<4x290xf32, #tpu.memory_space<vmem>>, vector<4x256xf32>
    %cst_340 = arith.constant 0.000000e+00 : f32
    %567 = vector.broadcast %cst_340 : f32 to vector<4x256xf32>
    %568 = arith.select %20, %566, %567 : vector<4x256xi1>, vector<4x256xf32>
    %c8_341 = arith.constant 8 : index
    %c0_342 = arith.constant 0 : index
    %c0_343 = arith.constant 0 : index
    %569 = vector.load %arg2[%c8_341, %c0_342, %c0_343] : memref<36x4x1xf32, #tpu.memory_space<vmem>>, vector<1x4x1xf32>
    %570 = vector.shape_cast %569 : vector<1x4x1xf32> to vector<4x1xf32>
    %571 = vector.broadcast %570 : vector<4x1xf32> to vector<4x256xf32>
    %572 = arith.mulf %571, %568 : vector<4x256xf32>
    %573 = arith.addf %550, %572 : vector<4x256xf32>
    %c9_344 = arith.constant 9 : index
    %c0_345 = arith.constant 0 : index
    %c0_346 = arith.constant 0 : index
    %574 = vector.load %arg2[%c9_344, %c0_345, %c0_346] : memref<36x4x1xf32, #tpu.memory_space<vmem>>, vector<1x4x1xf32>
    %575 = vector.shape_cast %574 : vector<1x4x1xf32> to vector<4x1xf32>
    %576 = vector.broadcast %575 : vector<4x1xf32> to vector<4x256xf32>
    %577 = arith.mulf %576, %568 : vector<4x256xf32>
    %578 = arith.addf %555, %577 : vector<4x256xf32>
    %c10_347 = arith.constant 10 : index
    %c0_348 = arith.constant 0 : index
    %c0_349 = arith.constant 0 : index
    %579 = vector.load %arg2[%c10_347, %c0_348, %c0_349] : memref<36x4x1xf32, #tpu.memory_space<vmem>>, vector<1x4x1xf32>
    %580 = vector.shape_cast %579 : vector<1x4x1xf32> to vector<4x1xf32>
    %581 = vector.broadcast %580 : vector<4x1xf32> to vector<4x256xf32>
    %582 = arith.mulf %581, %568 : vector<4x256xf32>
    %583 = arith.addf %560, %582 : vector<4x256xf32>
    %c11_350 = arith.constant 11 : index
    %c0_351 = arith.constant 0 : index
    %c0_352 = arith.constant 0 : index
    %584 = vector.load %arg2[%c11_350, %c0_351, %c0_352] : memref<36x4x1xf32, #tpu.memory_space<vmem>>, vector<1x4x1xf32>
    %585 = vector.shape_cast %584 : vector<1x4x1xf32> to vector<4x1xf32>
    %586 = vector.broadcast %585 : vector<4x1xf32> to vector<4x256xf32>
    %587 = arith.mulf %586, %568 : vector<4x256xf32>
    %588 = arith.addf %565, %587 : vector<4x256xf32>
    %c0_353 = arith.constant 0 : index
    %c16_354 = arith.constant 16 : index
    %589 = vector.load %arg7[%c0_353, %c16_354] : memref<4x290xf32, #tpu.memory_space<vmem>>, vector<4x256xf32>
    %cst_355 = arith.constant 0.000000e+00 : f32
    %590 = vector.broadcast %cst_355 : f32 to vector<4x256xf32>
    %591 = arith.select %18, %589, %590 : vector<4x256xi1>, vector<4x256xf32>
    %c12_356 = arith.constant 12 : index
    %c0_357 = arith.constant 0 : index
    %c0_358 = arith.constant 0 : index
    %592 = vector.load %arg2[%c12_356, %c0_357, %c0_358] : memref<36x4x1xf32, #tpu.memory_space<vmem>>, vector<1x4x1xf32>
    %593 = vector.shape_cast %592 : vector<1x4x1xf32> to vector<4x1xf32>
    %594 = vector.broadcast %593 : vector<4x1xf32> to vector<4x256xf32>
    %595 = arith.mulf %594, %591 : vector<4x256xf32>
    %596 = arith.addf %573, %595 : vector<4x256xf32>
    %c13_359 = arith.constant 13 : index
    %c0_360 = arith.constant 0 : index
    %c0_361 = arith.constant 0 : index
    %597 = vector.load %arg2[%c13_359, %c0_360, %c0_361] : memref<36x4x1xf32, #tpu.memory_space<vmem>>, vector<1x4x1xf32>
    %598 = vector.shape_cast %597 : vector<1x4x1xf32> to vector<4x1xf32>
    %599 = vector.broadcast %598 : vector<4x1xf32> to vector<4x256xf32>
    %600 = arith.mulf %599, %591 : vector<4x256xf32>
    %601 = arith.addf %578, %600 : vector<4x256xf32>
    %c14_362 = arith.constant 14 : index
    %c0_363 = arith.constant 0 : index
    %c0_364 = arith.constant 0 : index
    %602 = vector.load %arg2[%c14_362, %c0_363, %c0_364] : memref<36x4x1xf32, #tpu.memory_space<vmem>>, vector<1x4x1xf32>
    %603 = vector.shape_cast %602 : vector<1x4x1xf32> to vector<4x1xf32>
    %604 = vector.broadcast %603 : vector<4x1xf32> to vector<4x256xf32>
    %605 = arith.mulf %604, %591 : vector<4x256xf32>
    %606 = arith.addf %583, %605 : vector<4x256xf32>
    %c15_365 = arith.constant 15 : index
    %c0_366 = arith.constant 0 : index
    %c0_367 = arith.constant 0 : index
    %607 = vector.load %arg2[%c15_365, %c0_366, %c0_367] : memref<36x4x1xf32, #tpu.memory_space<vmem>>, vector<1x4x1xf32>
    %608 = vector.shape_cast %607 : vector<1x4x1xf32> to vector<4x1xf32>
    %609 = vector.broadcast %608 : vector<4x1xf32> to vector<4x256xf32>
    %610 = arith.mulf %609, %591 : vector<4x256xf32>
    %611 = arith.addf %588, %610 : vector<4x256xf32>
    %c0_368 = arith.constant 0 : index
    %c17_369 = arith.constant 17 : index
    %612 = vector.load %arg7[%c0_368, %c17_369] : memref<4x290xf32, #tpu.memory_space<vmem>>, vector<4x256xf32>
    %c16_370 = arith.constant 16 : index
    %c0_371 = arith.constant 0 : index
    %c0_372 = arith.constant 0 : index
    %613 = vector.load %arg2[%c16_370, %c0_371, %c0_372] : memref<36x4x1xf32, #tpu.memory_space<vmem>>, vector<1x4x1xf32>
    %614 = vector.shape_cast %613 : vector<1x4x1xf32> to vector<4x1xf32>
    %615 = vector.broadcast %614 : vector<4x1xf32> to vector<4x256xf32>
    %616 = arith.mulf %615, %612 : vector<4x256xf32>
    %617 = arith.addf %596, %616 : vector<4x256xf32>
    %c17_373 = arith.constant 17 : index
    %c0_374 = arith.constant 0 : index
    %c0_375 = arith.constant 0 : index
    %618 = vector.load %arg2[%c17_373, %c0_374, %c0_375] : memref<36x4x1xf32, #tpu.memory_space<vmem>>, vector<1x4x1xf32>
    %619 = vector.shape_cast %618 : vector<1x4x1xf32> to vector<4x1xf32>
    %620 = vector.broadcast %619 : vector<4x1xf32> to vector<4x256xf32>
    %621 = arith.mulf %620, %612 : vector<4x256xf32>
    %622 = arith.addf %601, %621 : vector<4x256xf32>
    %c18_376 = arith.constant 18 : index
    %c0_377 = arith.constant 0 : index
    %c0_378 = arith.constant 0 : index
    %623 = vector.load %arg2[%c18_376, %c0_377, %c0_378] : memref<36x4x1xf32, #tpu.memory_space<vmem>>, vector<1x4x1xf32>
    %624 = vector.shape_cast %623 : vector<1x4x1xf32> to vector<4x1xf32>
    %625 = vector.broadcast %624 : vector<4x1xf32> to vector<4x256xf32>
    %626 = arith.mulf %625, %612 : vector<4x256xf32>
    %627 = arith.addf %606, %626 : vector<4x256xf32>
    %c19_379 = arith.constant 19 : index
    %c0_380 = arith.constant 0 : index
    %c0_381 = arith.constant 0 : index
    %628 = vector.load %arg2[%c19_379, %c0_380, %c0_381] : memref<36x4x1xf32, #tpu.memory_space<vmem>>, vector<1x4x1xf32>
    %629 = vector.shape_cast %628 : vector<1x4x1xf32> to vector<4x1xf32>
    %630 = vector.broadcast %629 : vector<4x1xf32> to vector<4x256xf32>
    %631 = arith.mulf %630, %612 : vector<4x256xf32>
    %632 = arith.addf %611, %631 : vector<4x256xf32>
    %c0_382 = arith.constant 0 : index
    %c18_383 = arith.constant 18 : index
    %633 = vector.load %arg7[%c0_382, %c18_383] : memref<4x290xf32, #tpu.memory_space<vmem>>, vector<4x256xf32>
    %cst_384 = arith.constant 0.000000e+00 : f32
    %634 = vector.broadcast %cst_384 : f32 to vector<4x256xf32>
    %635 = arith.select %20, %633, %634 : vector<4x256xi1>, vector<4x256xf32>
    %c20_385 = arith.constant 20 : index
    %c0_386 = arith.constant 0 : index
    %c0_387 = arith.constant 0 : index
    %636 = vector.load %arg2[%c20_385, %c0_386, %c0_387] : memref<36x4x1xf32, #tpu.memory_space<vmem>>, vector<1x4x1xf32>
    %637 = vector.shape_cast %636 : vector<1x4x1xf32> to vector<4x1xf32>
    %638 = vector.broadcast %637 : vector<4x1xf32> to vector<4x256xf32>
    %639 = arith.mulf %638, %635 : vector<4x256xf32>
    %640 = arith.addf %617, %639 : vector<4x256xf32>
    %c21_388 = arith.constant 21 : index
    %c0_389 = arith.constant 0 : index
    %c0_390 = arith.constant 0 : index
    %641 = vector.load %arg2[%c21_388, %c0_389, %c0_390] : memref<36x4x1xf32, #tpu.memory_space<vmem>>, vector<1x4x1xf32>
    %642 = vector.shape_cast %641 : vector<1x4x1xf32> to vector<4x1xf32>
    %643 = vector.broadcast %642 : vector<4x1xf32> to vector<4x256xf32>
    %644 = arith.mulf %643, %635 : vector<4x256xf32>
    %645 = arith.addf %622, %644 : vector<4x256xf32>
    %c22_391 = arith.constant 22 : index
    %c0_392 = arith.constant 0 : index
    %c0_393 = arith.constant 0 : index
    %646 = vector.load %arg2[%c22_391, %c0_392, %c0_393] : memref<36x4x1xf32, #tpu.memory_space<vmem>>, vector<1x4x1xf32>
    %647 = vector.shape_cast %646 : vector<1x4x1xf32> to vector<4x1xf32>
    %648 = vector.broadcast %647 : vector<4x1xf32> to vector<4x256xf32>
    %649 = arith.mulf %648, %635 : vector<4x256xf32>
    %650 = arith.addf %627, %649 : vector<4x256xf32>
    %c23_394 = arith.constant 23 : index
    %c0_395 = arith.constant 0 : index
    %c0_396 = arith.constant 0 : index
    %651 = vector.load %arg2[%c23_394, %c0_395, %c0_396] : memref<36x4x1xf32, #tpu.memory_space<vmem>>, vector<1x4x1xf32>
    %652 = vector.shape_cast %651 : vector<1x4x1xf32> to vector<4x1xf32>
    %653 = vector.broadcast %652 : vector<4x1xf32> to vector<4x256xf32>
    %654 = arith.mulf %653, %635 : vector<4x256xf32>
    %655 = arith.addf %632, %654 : vector<4x256xf32>
    %c0_397 = arith.constant 0 : index
    %c32_398 = arith.constant 32 : index
    %656 = vector.load %arg7[%c0_397, %c32_398] : memref<4x290xf32, #tpu.memory_space<vmem>>, vector<4x256xf32>
    %cst_399 = arith.constant 0.000000e+00 : f32
    %657 = vector.broadcast %cst_399 : f32 to vector<4x256xf32>
    %658 = arith.select %18, %656, %657 : vector<4x256xi1>, vector<4x256xf32>
    %c24_400 = arith.constant 24 : index
    %c0_401 = arith.constant 0 : index
    %c0_402 = arith.constant 0 : index
    %659 = vector.load %arg2[%c24_400, %c0_401, %c0_402] : memref<36x4x1xf32, #tpu.memory_space<vmem>>, vector<1x4x1xf32>
    %660 = vector.shape_cast %659 : vector<1x4x1xf32> to vector<4x1xf32>
    %661 = vector.broadcast %660 : vector<4x1xf32> to vector<4x256xf32>
    %662 = arith.mulf %661, %658 : vector<4x256xf32>
    %663 = arith.addf %640, %662 : vector<4x256xf32>
    %c25_403 = arith.constant 25 : index
    %c0_404 = arith.constant 0 : index
    %c0_405 = arith.constant 0 : index
    %664 = vector.load %arg2[%c25_403, %c0_404, %c0_405] : memref<36x4x1xf32, #tpu.memory_space<vmem>>, vector<1x4x1xf32>
    %665 = vector.shape_cast %664 : vector<1x4x1xf32> to vector<4x1xf32>
    %666 = vector.broadcast %665 : vector<4x1xf32> to vector<4x256xf32>
    %667 = arith.mulf %666, %658 : vector<4x256xf32>
    %668 = arith.addf %645, %667 : vector<4x256xf32>
    %c26_406 = arith.constant 26 : index
    %c0_407 = arith.constant 0 : index
    %c0_408 = arith.constant 0 : index
    %669 = vector.load %arg2[%c26_406, %c0_407, %c0_408] : memref<36x4x1xf32, #tpu.memory_space<vmem>>, vector<1x4x1xf32>
    %670 = vector.shape_cast %669 : vector<1x4x1xf32> to vector<4x1xf32>
    %671 = vector.broadcast %670 : vector<4x1xf32> to vector<4x256xf32>
    %672 = arith.mulf %671, %658 : vector<4x256xf32>
    %673 = arith.addf %650, %672 : vector<4x256xf32>
    %c27_409 = arith.constant 27 : index
    %c0_410 = arith.constant 0 : index
    %c0_411 = arith.constant 0 : index
    %674 = vector.load %arg2[%c27_409, %c0_410, %c0_411] : memref<36x4x1xf32, #tpu.memory_space<vmem>>, vector<1x4x1xf32>
    %675 = vector.shape_cast %674 : vector<1x4x1xf32> to vector<4x1xf32>
    %676 = vector.broadcast %675 : vector<4x1xf32> to vector<4x256xf32>
    %677 = arith.mulf %676, %658 : vector<4x256xf32>
    %678 = arith.addf %655, %677 : vector<4x256xf32>
    %c0_412 = arith.constant 0 : index
    %c33_413 = arith.constant 33 : index
    %679 = vector.load %arg7[%c0_412, %c33_413] : memref<4x290xf32, #tpu.memory_space<vmem>>, vector<4x256xf32>
    %c28_414 = arith.constant 28 : index
    %c0_415 = arith.constant 0 : index
    %c0_416 = arith.constant 0 : index
    %680 = vector.load %arg2[%c28_414, %c0_415, %c0_416] : memref<36x4x1xf32, #tpu.memory_space<vmem>>, vector<1x4x1xf32>
    %681 = vector.shape_cast %680 : vector<1x4x1xf32> to vector<4x1xf32>
    %682 = vector.broadcast %681 : vector<4x1xf32> to vector<4x256xf32>
    %683 = arith.mulf %682, %679 : vector<4x256xf32>
    %684 = arith.addf %663, %683 : vector<4x256xf32>
    %c29_417 = arith.constant 29 : index
    %c0_418 = arith.constant 0 : index
    %c0_419 = arith.constant 0 : index
    %685 = vector.load %arg2[%c29_417, %c0_418, %c0_419] : memref<36x4x1xf32, #tpu.memory_space<vmem>>, vector<1x4x1xf32>
    %686 = vector.shape_cast %685 : vector<1x4x1xf32> to vector<4x1xf32>
    %687 = vector.broadcast %686 : vector<4x1xf32> to vector<4x256xf32>
    %688 = arith.mulf %687, %679 : vector<4x256xf32>
    %689 = arith.addf %668, %688 : vector<4x256xf32>
    %c30_420 = arith.constant 30 : index
    %c0_421 = arith.constant 0 : index
    %c0_422 = arith.constant 0 : index
    %690 = vector.load %arg2[%c30_420, %c0_421, %c0_422] : memref<36x4x1xf32, #tpu.memory_space<vmem>>, vector<1x4x1xf32>
    %691 = vector.shape_cast %690 : vector<1x4x1xf32> to vector<4x1xf32>
    %692 = vector.broadcast %691 : vector<4x1xf32> to vector<4x256xf32>
    %693 = arith.mulf %692, %679 : vector<4x256xf32>
    %694 = arith.addf %673, %693 : vector<4x256xf32>
    %c31_423 = arith.constant 31 : index
    %c0_424 = arith.constant 0 : index
    %c0_425 = arith.constant 0 : index
    %695 = vector.load %arg2[%c31_423, %c0_424, %c0_425] : memref<36x4x1xf32, #tpu.memory_space<vmem>>, vector<1x4x1xf32>
    %696 = vector.shape_cast %695 : vector<1x4x1xf32> to vector<4x1xf32>
    %697 = vector.broadcast %696 : vector<4x1xf32> to vector<4x256xf32>
    %698 = arith.mulf %697, %679 : vector<4x256xf32>
    %699 = arith.addf %678, %698 : vector<4x256xf32>
    %c0_426 = arith.constant 0 : index
    %c34_427 = arith.constant 34 : index
    %700 = vector.load %arg7[%c0_426, %c34_427] : memref<4x290xf32, #tpu.memory_space<vmem>>, vector<4x256xf32>
    %cst_428 = arith.constant 0.000000e+00 : f32
    %701 = vector.broadcast %cst_428 : f32 to vector<4x256xf32>
    %702 = arith.select %20, %700, %701 : vector<4x256xi1>, vector<4x256xf32>
    %c32_429 = arith.constant 32 : index
    %c0_430 = arith.constant 0 : index
    %c0_431 = arith.constant 0 : index
    %703 = vector.load %arg2[%c32_429, %c0_430, %c0_431] : memref<36x4x1xf32, #tpu.memory_space<vmem>>, vector<1x4x1xf32>
    %704 = vector.shape_cast %703 : vector<1x4x1xf32> to vector<4x1xf32>
    %705 = vector.broadcast %704 : vector<4x1xf32> to vector<4x256xf32>
    %706 = arith.mulf %705, %702 : vector<4x256xf32>
    %707 = arith.addf %684, %706 : vector<4x256xf32>
    %c33_432 = arith.constant 33 : index
    %c0_433 = arith.constant 0 : index
    %c0_434 = arith.constant 0 : index
    %708 = vector.load %arg2[%c33_432, %c0_433, %c0_434] : memref<36x4x1xf32, #tpu.memory_space<vmem>>, vector<1x4x1xf32>
    %709 = vector.shape_cast %708 : vector<1x4x1xf32> to vector<4x1xf32>
    %710 = vector.broadcast %709 : vector<4x1xf32> to vector<4x256xf32>
    %711 = arith.mulf %710, %702 : vector<4x256xf32>
    %712 = arith.addf %689, %711 : vector<4x256xf32>
    %c34_435 = arith.constant 34 : index
    %c0_436 = arith.constant 0 : index
    %c0_437 = arith.constant 0 : index
    %713 = vector.load %arg2[%c34_435, %c0_436, %c0_437] : memref<36x4x1xf32, #tpu.memory_space<vmem>>, vector<1x4x1xf32>
    %714 = vector.shape_cast %713 : vector<1x4x1xf32> to vector<4x1xf32>
    %715 = vector.broadcast %714 : vector<4x1xf32> to vector<4x256xf32>
    %716 = arith.mulf %715, %702 : vector<4x256xf32>
    %717 = arith.addf %694, %716 : vector<4x256xf32>
    %c35_438 = arith.constant 35 : index
    %c0_439 = arith.constant 0 : index
    %c0_440 = arith.constant 0 : index
    %718 = vector.load %arg2[%c35_438, %c0_439, %c0_440] : memref<36x4x1xf32, #tpu.memory_space<vmem>>, vector<1x4x1xf32>
    %719 = vector.shape_cast %718 : vector<1x4x1xf32> to vector<4x1xf32>
    %720 = vector.broadcast %719 : vector<4x1xf32> to vector<4x256xf32>
    %721 = arith.mulf %720, %702 : vector<4x256xf32>
    %722 = arith.addf %699, %721 : vector<4x256xf32>
    %cst_441 = arith.constant dense<0.000000e+00> : vector<256xf32>
    %723 = vector.multi_reduction <add>, %707, %cst_441 [0] : vector<4x256xf32> to vector<256xf32>
    %c0_442 = arith.constant 0 : index
    %724 = memref.load %arg3[%c0_442] : memref<4xf32, #tpu.memory_space<smem>>
    %725 = vector.broadcast %724 : f32 to vector<256xf32>
    %726 = arith.addf %723, %725 : vector<256xf32>
    %cst_443 = arith.constant 0.000000e+00 : f32
    %727 = vector.broadcast %cst_443 : f32 to vector<256xf32>
    %728 = arith.maximumf %726, %727 : vector<256xf32>
    %cst_444 = arith.constant dense<0.000000e+00> : vector<256xf32>
    %729 = vector.multi_reduction <add>, %712, %cst_444 [0] : vector<4x256xf32> to vector<256xf32>
    %c1_445 = arith.constant 1 : index
    %730 = memref.load %arg3[%c1_445] : memref<4xf32, #tpu.memory_space<smem>>
    %731 = vector.broadcast %730 : f32 to vector<256xf32>
    %732 = arith.addf %729, %731 : vector<256xf32>
    %cst_446 = arith.constant 0.000000e+00 : f32
    %733 = vector.broadcast %cst_446 : f32 to vector<256xf32>
    %734 = arith.maximumf %732, %733 : vector<256xf32>
    %cst_447 = arith.constant dense<0.000000e+00> : vector<256xf32>
    %735 = vector.multi_reduction <add>, %717, %cst_447 [0] : vector<4x256xf32> to vector<256xf32>
    %c2_448 = arith.constant 2 : index
    %736 = memref.load %arg3[%c2_448] : memref<4xf32, #tpu.memory_space<smem>>
    %737 = vector.broadcast %736 : f32 to vector<256xf32>
    %738 = arith.addf %735, %737 : vector<256xf32>
    %cst_449 = arith.constant 0.000000e+00 : f32
    %739 = vector.broadcast %cst_449 : f32 to vector<256xf32>
    %740 = arith.maximumf %738, %739 : vector<256xf32>
    %cst_450 = arith.constant dense<0.000000e+00> : vector<256xf32>
    %741 = vector.multi_reduction <add>, %722, %cst_450 [0] : vector<4x256xf32> to vector<256xf32>
    %c3_451 = arith.constant 3 : index
    %742 = memref.load %arg3[%c3_451] : memref<4xf32, #tpu.memory_space<smem>>
    %743 = vector.broadcast %742 : f32 to vector<256xf32>
    %744 = arith.addf %741, %743 : vector<256xf32>
    %cst_452 = arith.constant 0.000000e+00 : f32
    %745 = vector.broadcast %cst_452 : f32 to vector<256xf32>
    %746 = arith.maximumf %744, %745 : vector<256xf32>
    %c0_453 = arith.constant 0 : index
    %c17_454 = arith.constant 17 : index
    %747 = vector.load %arg8[%c0_453, %c17_454] : memref<4x290xf32, #tpu.memory_space<vmem>>, vector<1x256xf32>
    %748 = vector.shape_cast %747 : vector<1x256xf32> to vector<256xf32>
    %749 = vector.shape_cast %728 : vector<256xf32> to vector<1x256xf32>
    tpu.vector_store %arg8[%c0_453, %c17_454], %749 {strides = array<i32>} : memref<4x290xf32, #tpu.memory_space<vmem>>, vector<1x256xf32>,
    %c1_455 = arith.constant 1 : index
    %c17_456 = arith.constant 17 : index
    %750 = vector.load %arg8[%c1_455, %c17_456] : memref<4x290xf32, #tpu.memory_space<vmem>>, vector<1x256xf32>
    %751 = vector.shape_cast %750 : vector<1x256xf32> to vector<256xf32>
    %752 = vector.shape_cast %734 : vector<256xf32> to vector<1x256xf32>
    tpu.vector_store %arg8[%c1_455, %c17_456], %752 {strides = array<i32>} : memref<4x290xf32, #tpu.memory_space<vmem>>, vector<1x256xf32>,
    %c2_457 = arith.constant 2 : index
    %c17_458 = arith.constant 17 : index
    %753 = vector.load %arg8[%c2_457, %c17_458] : memref<4x290xf32, #tpu.memory_space<vmem>>, vector<1x256xf32>
    %754 = vector.shape_cast %753 : vector<1x256xf32> to vector<256xf32>
    %755 = vector.shape_cast %740 : vector<256xf32> to vector<1x256xf32>
    tpu.vector_store %arg8[%c2_457, %c17_458], %755 {strides = array<i32>} : memref<4x290xf32, #tpu.memory_space<vmem>>, vector<1x256xf32>,
    %c3_459 = arith.constant 3 : index
    %c17_460 = arith.constant 17 : index
    %756 = vector.load %arg8[%c3_459, %c17_460] : memref<4x290xf32, #tpu.memory_space<vmem>>, vector<1x256xf32>
    %757 = vector.shape_cast %756 : vector<1x256xf32> to vector<256xf32>
    %758 = vector.shape_cast %746 : vector<256xf32> to vector<1x256xf32>
    tpu.vector_store %arg8[%c3_459, %c17_460], %758 {strides = array<i32>} : memref<4x290xf32, #tpu.memory_space<vmem>>, vector<1x256xf32>,
    %cst_461 = arith.constant 0.000000e+00 : f32
    %759 = vector.broadcast %cst_461 : f32 to vector<4x256xf32>
    %cst_462 = arith.constant 0.000000e+00 : f32
    %760 = vector.broadcast %cst_462 : f32 to vector<4x256xf32>
    %cst_463 = arith.constant 0.000000e+00 : f32
    %761 = vector.broadcast %cst_463 : f32 to vector<4x256xf32>
    %cst_464 = arith.constant 0.000000e+00 : f32
    %762 = vector.broadcast %cst_464 : f32 to vector<4x256xf32>
    %c0_465 = arith.constant 0 : index
    %c0_466 = arith.constant 0 : index
    %763 = vector.load %arg8[%c0_465, %c0_466] : memref<4x290xf32, #tpu.memory_space<vmem>>, vector<4x256xf32>
    %cst_467 = arith.constant 0.000000e+00 : f32
    %764 = vector.broadcast %cst_467 : f32 to vector<4x256xf32>
    %765 = arith.select %18, %763, %764 : vector<4x256xi1>, vector<4x256xf32>
    %c0_468 = arith.constant 0 : index
    %c0_469 = arith.constant 0 : index
    %c0_470 = arith.constant 0 : index
    %766 = vector.load %arg4[%c0_468, %c0_469, %c0_470] : memref<36x4x1xf32, #tpu.memory_space<vmem>>, vector<1x4x1xf32>
    %767 = vector.shape_cast %766 : vector<1x4x1xf32> to vector<4x1xf32>
    %768 = vector.broadcast %767 : vector<4x1xf32> to vector<4x256xf32>
    %769 = arith.mulf %768, %765 : vector<4x256xf32>
    %770 = arith.addf %759, %769 : vector<4x256xf32>
    %c1_471 = arith.constant 1 : index
    %c0_472 = arith.constant 0 : index
    %c0_473 = arith.constant 0 : index
    %771 = vector.load %arg4[%c1_471, %c0_472, %c0_473] : memref<36x4x1xf32, #tpu.memory_space<vmem>>, vector<1x4x1xf32>
    %772 = vector.shape_cast %771 : vector<1x4x1xf32> to vector<4x1xf32>
    %773 = vector.broadcast %772 : vector<4x1xf32> to vector<4x256xf32>
    %774 = arith.mulf %773, %765 : vector<4x256xf32>
    %775 = arith.addf %760, %774 : vector<4x256xf32>
    %c2_474 = arith.constant 2 : index
    %c0_475 = arith.constant 0 : index
    %c0_476 = arith.constant 0 : index
    %776 = vector.load %arg4[%c2_474, %c0_475, %c0_476] : memref<36x4x1xf32, #tpu.memory_space<vmem>>, vector<1x4x1xf32>
    %777 = vector.shape_cast %776 : vector<1x4x1xf32> to vector<4x1xf32>
    %778 = vector.broadcast %777 : vector<4x1xf32> to vector<4x256xf32>
    %779 = arith.mulf %778, %765 : vector<4x256xf32>
    %780 = arith.addf %761, %779 : vector<4x256xf32>
    %c3_477 = arith.constant 3 : index
    %c0_478 = arith.constant 0 : index
    %c0_479 = arith.constant 0 : index
    %781 = vector.load %arg4[%c3_477, %c0_478, %c0_479] : memref<36x4x1xf32, #tpu.memory_space<vmem>>, vector<1x4x1xf32>
    %782 = vector.shape_cast %781 : vector<1x4x1xf32> to vector<4x1xf32>
    %783 = vector.broadcast %782 : vector<4x1xf32> to vector<4x256xf32>
    %784 = arith.mulf %783, %765 : vector<4x256xf32>
    %785 = arith.addf %762, %784 : vector<4x256xf32>
    %c0_480 = arith.constant 0 : index
    %c1_481 = arith.constant 1 : index
    %786 = vector.load %arg8[%c0_480, %c1_481] : memref<4x290xf32, #tpu.memory_space<vmem>>, vector<4x256xf32>
    %c4_482 = arith.constant 4 : index
    %c0_483 = arith.constant 0 : index
    %c0_484 = arith.constant 0 : index
    %787 = vector.load %arg4[%c4_482, %c0_483, %c0_484] : memref<36x4x1xf32, #tpu.memory_space<vmem>>, vector<1x4x1xf32>
    %788 = vector.shape_cast %787 : vector<1x4x1xf32> to vector<4x1xf32>
    %789 = vector.broadcast %788 : vector<4x1xf32> to vector<4x256xf32>
    %790 = arith.mulf %789, %786 : vector<4x256xf32>
    %791 = arith.addf %770, %790 : vector<4x256xf32>
    %c5_485 = arith.constant 5 : index
    %c0_486 = arith.constant 0 : index
    %c0_487 = arith.constant 0 : index
    %792 = vector.load %arg4[%c5_485, %c0_486, %c0_487] : memref<36x4x1xf32, #tpu.memory_space<vmem>>, vector<1x4x1xf32>
    %793 = vector.shape_cast %792 : vector<1x4x1xf32> to vector<4x1xf32>
    %794 = vector.broadcast %793 : vector<4x1xf32> to vector<4x256xf32>
    %795 = arith.mulf %794, %786 : vector<4x256xf32>
    %796 = arith.addf %775, %795 : vector<4x256xf32>
    %c6_488 = arith.constant 6 : index
    %c0_489 = arith.constant 0 : index
    %c0_490 = arith.constant 0 : index
    %797 = vector.load %arg4[%c6_488, %c0_489, %c0_490] : memref<36x4x1xf32, #tpu.memory_space<vmem>>, vector<1x4x1xf32>
    %798 = vector.shape_cast %797 : vector<1x4x1xf32> to vector<4x1xf32>
    %799 = vector.broadcast %798 : vector<4x1xf32> to vector<4x256xf32>
    %800 = arith.mulf %799, %786 : vector<4x256xf32>
    %801 = arith.addf %780, %800 : vector<4x256xf32>
    %c7_491 = arith.constant 7 : index
    %c0_492 = arith.constant 0 : index
    %c0_493 = arith.constant 0 : index
    %802 = vector.load %arg4[%c7_491, %c0_492, %c0_493] : memref<36x4x1xf32, #tpu.memory_space<vmem>>, vector<1x4x1xf32>
    %803 = vector.shape_cast %802 : vector<1x4x1xf32> to vector<4x1xf32>
    %804 = vector.broadcast %803 : vector<4x1xf32> to vector<4x256xf32>
    %805 = arith.mulf %804, %786 : vector<4x256xf32>
    %806 = arith.addf %785, %805 : vector<4x256xf32>
    %c0_494 = arith.constant 0 : index
    %c2_495 = arith.constant 2 : index
    %807 = vector.load %arg8[%c0_494, %c2_495] : memref<4x290xf32, #tpu.memory_space<vmem>>, vector<4x256xf32>
    %cst_496 = arith.constant 0.000000e+00 : f32
    %808 = vector.broadcast %cst_496 : f32 to vector<4x256xf32>
    %809 = arith.select %20, %807, %808 : vector<4x256xi1>, vector<4x256xf32>
    %c8_497 = arith.constant 8 : index
    %c0_498 = arith.constant 0 : index
    %c0_499 = arith.constant 0 : index
    %810 = vector.load %arg4[%c8_497, %c0_498, %c0_499] : memref<36x4x1xf32, #tpu.memory_space<vmem>>, vector<1x4x1xf32>
    %811 = vector.shape_cast %810 : vector<1x4x1xf32> to vector<4x1xf32>
    %812 = vector.broadcast %811 : vector<4x1xf32> to vector<4x256xf32>
    %813 = arith.mulf %812, %809 : vector<4x256xf32>
    %814 = arith.addf %791, %813 : vector<4x256xf32>
    %c9_500 = arith.constant 9 : index
    %c0_501 = arith.constant 0 : index
    %c0_502 = arith.constant 0 : index
    %815 = vector.load %arg4[%c9_500, %c0_501, %c0_502] : memref<36x4x1xf32, #tpu.memory_space<vmem>>, vector<1x4x1xf32>
    %816 = vector.shape_cast %815 : vector<1x4x1xf32> to vector<4x1xf32>
    %817 = vector.broadcast %816 : vector<4x1xf32> to vector<4x256xf32>
    %818 = arith.mulf %817, %809 : vector<4x256xf32>
    %819 = arith.addf %796, %818 : vector<4x256xf32>
    %c10_503 = arith.constant 10 : index
    %c0_504 = arith.constant 0 : index
    %c0_505 = arith.constant 0 : index
    %820 = vector.load %arg4[%c10_503, %c0_504, %c0_505] : memref<36x4x1xf32, #tpu.memory_space<vmem>>, vector<1x4x1xf32>
    %821 = vector.shape_cast %820 : vector<1x4x1xf32> to vector<4x1xf32>
    %822 = vector.broadcast %821 : vector<4x1xf32> to vector<4x256xf32>
    %823 = arith.mulf %822, %809 : vector<4x256xf32>
    %824 = arith.addf %801, %823 : vector<4x256xf32>
    %c11_506 = arith.constant 11 : index
    %c0_507 = arith.constant 0 : index
    %c0_508 = arith.constant 0 : index
    %825 = vector.load %arg4[%c11_506, %c0_507, %c0_508] : memref<36x4x1xf32, #tpu.memory_space<vmem>>, vector<1x4x1xf32>
    %826 = vector.shape_cast %825 : vector<1x4x1xf32> to vector<4x1xf32>
    %827 = vector.broadcast %826 : vector<4x1xf32> to vector<4x256xf32>
    %828 = arith.mulf %827, %809 : vector<4x256xf32>
    %829 = arith.addf %806, %828 : vector<4x256xf32>
    %c0_509 = arith.constant 0 : index
    %c16_510 = arith.constant 16 : index
    %830 = vector.load %arg8[%c0_509, %c16_510] : memref<4x290xf32, #tpu.memory_space<vmem>>, vector<4x256xf32>
    %cst_511 = arith.constant 0.000000e+00 : f32
    %831 = vector.broadcast %cst_511 : f32 to vector<4x256xf32>
    %832 = arith.select %18, %830, %831 : vector<4x256xi1>, vector<4x256xf32>
    %c12_512 = arith.constant 12 : index
    %c0_513 = arith.constant 0 : index
    %c0_514 = arith.constant 0 : index
    %833 = vector.load %arg4[%c12_512, %c0_513, %c0_514] : memref<36x4x1xf32, #tpu.memory_space<vmem>>, vector<1x4x1xf32>
    %834 = vector.shape_cast %833 : vector<1x4x1xf32> to vector<4x1xf32>
    %835 = vector.broadcast %834 : vector<4x1xf32> to vector<4x256xf32>
    %836 = arith.mulf %835, %832 : vector<4x256xf32>
    %837 = arith.addf %814, %836 : vector<4x256xf32>
    %c13_515 = arith.constant 13 : index
    %c0_516 = arith.constant 0 : index
    %c0_517 = arith.constant 0 : index
    %838 = vector.load %arg4[%c13_515, %c0_516, %c0_517] : memref<36x4x1xf32, #tpu.memory_space<vmem>>, vector<1x4x1xf32>
    %839 = vector.shape_cast %838 : vector<1x4x1xf32> to vector<4x1xf32>
    %840 = vector.broadcast %839 : vector<4x1xf32> to vector<4x256xf32>
    %841 = arith.mulf %840, %832 : vector<4x256xf32>
    %842 = arith.addf %819, %841 : vector<4x256xf32>
    %c14_518 = arith.constant 14 : index
    %c0_519 = arith.constant 0 : index
    %c0_520 = arith.constant 0 : index
    %843 = vector.load %arg4[%c14_518, %c0_519, %c0_520] : memref<36x4x1xf32, #tpu.memory_space<vmem>>, vector<1x4x1xf32>
    %844 = vector.shape_cast %843 : vector<1x4x1xf32> to vector<4x1xf32>
    %845 = vector.broadcast %844 : vector<4x1xf32> to vector<4x256xf32>
    %846 = arith.mulf %845, %832 : vector<4x256xf32>
    %847 = arith.addf %824, %846 : vector<4x256xf32>
    %c15_521 = arith.constant 15 : index
    %c0_522 = arith.constant 0 : index
    %c0_523 = arith.constant 0 : index
    %848 = vector.load %arg4[%c15_521, %c0_522, %c0_523] : memref<36x4x1xf32, #tpu.memory_space<vmem>>, vector<1x4x1xf32>
    %849 = vector.shape_cast %848 : vector<1x4x1xf32> to vector<4x1xf32>
    %850 = vector.broadcast %849 : vector<4x1xf32> to vector<4x256xf32>
    %851 = arith.mulf %850, %832 : vector<4x256xf32>
    %852 = arith.addf %829, %851 : vector<4x256xf32>
    %c0_524 = arith.constant 0 : index
    %c17_525 = arith.constant 17 : index
    %853 = vector.load %arg8[%c0_524, %c17_525] : memref<4x290xf32, #tpu.memory_space<vmem>>, vector<4x256xf32>
    %c16_526 = arith.constant 16 : index
    %c0_527 = arith.constant 0 : index
    %c0_528 = arith.constant 0 : index
    %854 = vector.load %arg4[%c16_526, %c0_527, %c0_528] : memref<36x4x1xf32, #tpu.memory_space<vmem>>, vector<1x4x1xf32>
    %855 = vector.shape_cast %854 : vector<1x4x1xf32> to vector<4x1xf32>
    %856 = vector.broadcast %855 : vector<4x1xf32> to vector<4x256xf32>
    %857 = arith.mulf %856, %853 : vector<4x256xf32>
    %858 = arith.addf %837, %857 : vector<4x256xf32>
    %c17_529 = arith.constant 17 : index
    %c0_530 = arith.constant 0 : index
    %c0_531 = arith.constant 0 : index
    %859 = vector.load %arg4[%c17_529, %c0_530, %c0_531] : memref<36x4x1xf32, #tpu.memory_space<vmem>>, vector<1x4x1xf32>
    %860 = vector.shape_cast %859 : vector<1x4x1xf32> to vector<4x1xf32>
    %861 = vector.broadcast %860 : vector<4x1xf32> to vector<4x256xf32>
    %862 = arith.mulf %861, %853 : vector<4x256xf32>
    %863 = arith.addf %842, %862 : vector<4x256xf32>
    %c18_532 = arith.constant 18 : index
    %c0_533 = arith.constant 0 : index
    %c0_534 = arith.constant 0 : index
    %864 = vector.load %arg4[%c18_532, %c0_533, %c0_534] : memref<36x4x1xf32, #tpu.memory_space<vmem>>, vector<1x4x1xf32>
    %865 = vector.shape_cast %864 : vector<1x4x1xf32> to vector<4x1xf32>
    %866 = vector.broadcast %865 : vector<4x1xf32> to vector<4x256xf32>
    %867 = arith.mulf %866, %853 : vector<4x256xf32>
    %868 = arith.addf %847, %867 : vector<4x256xf32>
    %c19_535 = arith.constant 19 : index
    %c0_536 = arith.constant 0 : index
    %c0_537 = arith.constant 0 : index
    %869 = vector.load %arg4[%c19_535, %c0_536, %c0_537] : memref<36x4x1xf32, #tpu.memory_space<vmem>>, vector<1x4x1xf32>
    %870 = vector.shape_cast %869 : vector<1x4x1xf32> to vector<4x1xf32>
    %871 = vector.broadcast %870 : vector<4x1xf32> to vector<4x256xf32>
    %872 = arith.mulf %871, %853 : vector<4x256xf32>
    %873 = arith.addf %852, %872 : vector<4x256xf32>
    %c0_538 = arith.constant 0 : index
    %c18_539 = arith.constant 18 : index
    %874 = vector.load %arg8[%c0_538, %c18_539] : memref<4x290xf32, #tpu.memory_space<vmem>>, vector<4x256xf32>
    %cst_540 = arith.constant 0.000000e+00 : f32
    %875 = vector.broadcast %cst_540 : f32 to vector<4x256xf32>
    %876 = arith.select %20, %874, %875 : vector<4x256xi1>, vector<4x256xf32>
    %c20_541 = arith.constant 20 : index
    %c0_542 = arith.constant 0 : index
    %c0_543 = arith.constant 0 : index
    %877 = vector.load %arg4[%c20_541, %c0_542, %c0_543] : memref<36x4x1xf32, #tpu.memory_space<vmem>>, vector<1x4x1xf32>
    %878 = vector.shape_cast %877 : vector<1x4x1xf32> to vector<4x1xf32>
    %879 = vector.broadcast %878 : vector<4x1xf32> to vector<4x256xf32>
    %880 = arith.mulf %879, %876 : vector<4x256xf32>
    %881 = arith.addf %858, %880 : vector<4x256xf32>
    %c21_544 = arith.constant 21 : index
    %c0_545 = arith.constant 0 : index
    %c0_546 = arith.constant 0 : index
    %882 = vector.load %arg4[%c21_544, %c0_545, %c0_546] : memref<36x4x1xf32, #tpu.memory_space<vmem>>, vector<1x4x1xf32>
    %883 = vector.shape_cast %882 : vector<1x4x1xf32> to vector<4x1xf32>
    %884 = vector.broadcast %883 : vector<4x1xf32> to vector<4x256xf32>
    %885 = arith.mulf %884, %876 : vector<4x256xf32>
    %886 = arith.addf %863, %885 : vector<4x256xf32>
    %c22_547 = arith.constant 22 : index
    %c0_548 = arith.constant 0 : index
    %c0_549 = arith.constant 0 : index
    %887 = vector.load %arg4[%c22_547, %c0_548, %c0_549] : memref<36x4x1xf32, #tpu.memory_space<vmem>>, vector<1x4x1xf32>
    %888 = vector.shape_cast %887 : vector<1x4x1xf32> to vector<4x1xf32>
    %889 = vector.broadcast %888 : vector<4x1xf32> to vector<4x256xf32>
    %890 = arith.mulf %889, %876 : vector<4x256xf32>
    %891 = arith.addf %868, %890 : vector<4x256xf32>
    %c23_550 = arith.constant 23 : index
    %c0_551 = arith.constant 0 : index
    %c0_552 = arith.constant 0 : index
    %892 = vector.load %arg4[%c23_550, %c0_551, %c0_552] : memref<36x4x1xf32, #tpu.memory_space<vmem>>, vector<1x4x1xf32>
    %893 = vector.shape_cast %892 : vector<1x4x1xf32> to vector<4x1xf32>
    %894 = vector.broadcast %893 : vector<4x1xf32> to vector<4x256xf32>
    %895 = arith.mulf %894, %876 : vector<4x256xf32>
    %896 = arith.addf %873, %895 : vector<4x256xf32>
    %c0_553 = arith.constant 0 : index
    %c32_554 = arith.constant 32 : index
    %897 = vector.load %arg8[%c0_553, %c32_554] : memref<4x290xf32, #tpu.memory_space<vmem>>, vector<4x256xf32>
    %cst_555 = arith.constant 0.000000e+00 : f32
    %898 = vector.broadcast %cst_555 : f32 to vector<4x256xf32>
    %899 = arith.select %18, %897, %898 : vector<4x256xi1>, vector<4x256xf32>
    %c24_556 = arith.constant 24 : index
    %c0_557 = arith.constant 0 : index
    %c0_558 = arith.constant 0 : index
    %900 = vector.load %arg4[%c24_556, %c0_557, %c0_558] : memref<36x4x1xf32, #tpu.memory_space<vmem>>, vector<1x4x1xf32>
    %901 = vector.shape_cast %900 : vector<1x4x1xf32> to vector<4x1xf32>
    %902 = vector.broadcast %901 : vector<4x1xf32> to vector<4x256xf32>
    %903 = arith.mulf %902, %899 : vector<4x256xf32>
    %904 = arith.addf %881, %903 : vector<4x256xf32>
    %c25_559 = arith.constant 25 : index
    %c0_560 = arith.constant 0 : index
    %c0_561 = arith.constant 0 : index
    %905 = vector.load %arg4[%c25_559, %c0_560, %c0_561] : memref<36x4x1xf32, #tpu.memory_space<vmem>>, vector<1x4x1xf32>
    %906 = vector.shape_cast %905 : vector<1x4x1xf32> to vector<4x1xf32>
    %907 = vector.broadcast %906 : vector<4x1xf32> to vector<4x256xf32>
    %908 = arith.mulf %907, %899 : vector<4x256xf32>
    %909 = arith.addf %886, %908 : vector<4x256xf32>
    %c26_562 = arith.constant 26 : index
    %c0_563 = arith.constant 0 : index
    %c0_564 = arith.constant 0 : index
    %910 = vector.load %arg4[%c26_562, %c0_563, %c0_564] : memref<36x4x1xf32, #tpu.memory_space<vmem>>, vector<1x4x1xf32>
    %911 = vector.shape_cast %910 : vector<1x4x1xf32> to vector<4x1xf32>
    %912 = vector.broadcast %911 : vector<4x1xf32> to vector<4x256xf32>
    %913 = arith.mulf %912, %899 : vector<4x256xf32>
    %914 = arith.addf %891, %913 : vector<4x256xf32>
    %c27_565 = arith.constant 27 : index
    %c0_566 = arith.constant 0 : index
    %c0_567 = arith.constant 0 : index
    %915 = vector.load %arg4[%c27_565, %c0_566, %c0_567] : memref<36x4x1xf32, #tpu.memory_space<vmem>>, vector<1x4x1xf32>
    %916 = vector.shape_cast %915 : vector<1x4x1xf32> to vector<4x1xf32>
    %917 = vector.broadcast %916 : vector<4x1xf32> to vector<4x256xf32>
    %918 = arith.mulf %917, %899 : vector<4x256xf32>
    %919 = arith.addf %896, %918 : vector<4x256xf32>
    %c0_568 = arith.constant 0 : index
    %c33_569 = arith.constant 33 : index
    %920 = vector.load %arg8[%c0_568, %c33_569] : memref<4x290xf32, #tpu.memory_space<vmem>>, vector<4x256xf32>
    %c28_570 = arith.constant 28 : index
    %c0_571 = arith.constant 0 : index
    %c0_572 = arith.constant 0 : index
    %921 = vector.load %arg4[%c28_570, %c0_571, %c0_572] : memref<36x4x1xf32, #tpu.memory_space<vmem>>, vector<1x4x1xf32>
    %922 = vector.shape_cast %921 : vector<1x4x1xf32> to vector<4x1xf32>
    %923 = vector.broadcast %922 : vector<4x1xf32> to vector<4x256xf32>
    %924 = arith.mulf %923, %920 : vector<4x256xf32>
    %925 = arith.addf %904, %924 : vector<4x256xf32>
    %c29_573 = arith.constant 29 : index
    %c0_574 = arith.constant 0 : index
    %c0_575 = arith.constant 0 : index
    %926 = vector.load %arg4[%c29_573, %c0_574, %c0_575] : memref<36x4x1xf32, #tpu.memory_space<vmem>>, vector<1x4x1xf32>
    %927 = vector.shape_cast %926 : vector<1x4x1xf32> to vector<4x1xf32>
    %928 = vector.broadcast %927 : vector<4x1xf32> to vector<4x256xf32>
    %929 = arith.mulf %928, %920 : vector<4x256xf32>
    %930 = arith.addf %909, %929 : vector<4x256xf32>
    %c30_576 = arith.constant 30 : index
    %c0_577 = arith.constant 0 : index
    %c0_578 = arith.constant 0 : index
    %931 = vector.load %arg4[%c30_576, %c0_577, %c0_578] : memref<36x4x1xf32, #tpu.memory_space<vmem>>, vector<1x4x1xf32>
    %932 = vector.shape_cast %931 : vector<1x4x1xf32> to vector<4x1xf32>
    %933 = vector.broadcast %932 : vector<4x1xf32> to vector<4x256xf32>
    %934 = arith.mulf %933, %920 : vector<4x256xf32>
    %935 = arith.addf %914, %934 : vector<4x256xf32>
    %c31_579 = arith.constant 31 : index
    %c0_580 = arith.constant 0 : index
    %c0_581 = arith.constant 0 : index
    %936 = vector.load %arg4[%c31_579, %c0_580, %c0_581] : memref<36x4x1xf32, #tpu.memory_space<vmem>>, vector<1x4x1xf32>
    %937 = vector.shape_cast %936 : vector<1x4x1xf32> to vector<4x1xf32>
    %938 = vector.broadcast %937 : vector<4x1xf32> to vector<4x256xf32>
    %939 = arith.mulf %938, %920 : vector<4x256xf32>
    %940 = arith.addf %919, %939 : vector<4x256xf32>
    %c0_582 = arith.constant 0 : index
    %c34_583 = arith.constant 34 : index
    %941 = vector.load %arg8[%c0_582, %c34_583] : memref<4x290xf32, #tpu.memory_space<vmem>>, vector<4x256xf32>
    %cst_584 = arith.constant 0.000000e+00 : f32
    %942 = vector.broadcast %cst_584 : f32 to vector<4x256xf32>
    %943 = arith.select %20, %941, %942 : vector<4x256xi1>, vector<4x256xf32>
    %c32_585 = arith.constant 32 : index
    %c0_586 = arith.constant 0 : index
    %c0_587 = arith.constant 0 : index
    %944 = vector.load %arg4[%c32_585, %c0_586, %c0_587] : memref<36x4x1xf32, #tpu.memory_space<vmem>>, vector<1x4x1xf32>
    %945 = vector.shape_cast %944 : vector<1x4x1xf32> to vector<4x1xf32>
    %946 = vector.broadcast %945 : vector<4x1xf32> to vector<4x256xf32>
    %947 = arith.mulf %946, %943 : vector<4x256xf32>
    %948 = arith.addf %925, %947 : vector<4x256xf32>
    %c33_588 = arith.constant 33 : index
    %c0_589 = arith.constant 0 : index
    %c0_590 = arith.constant 0 : index
    %949 = vector.load %arg4[%c33_588, %c0_589, %c0_590] : memref<36x4x1xf32, #tpu.memory_space<vmem>>, vector<1x4x1xf32>
    %950 = vector.shape_cast %949 : vector<1x4x1xf32> to vector<4x1xf32>
    %951 = vector.broadcast %950 : vector<4x1xf32> to vector<4x256xf32>
    %952 = arith.mulf %951, %943 : vector<4x256xf32>
    %953 = arith.addf %930, %952 : vector<4x256xf32>
    %c34_591 = arith.constant 34 : index
    %c0_592 = arith.constant 0 : index
    %c0_593 = arith.constant 0 : index
    %954 = vector.load %arg4[%c34_591, %c0_592, %c0_593] : memref<36x4x1xf32, #tpu.memory_space<vmem>>, vector<1x4x1xf32>
    %955 = vector.shape_cast %954 : vector<1x4x1xf32> to vector<4x1xf32>
    %956 = vector.broadcast %955 : vector<4x1xf32> to vector<4x256xf32>
    %957 = arith.mulf %956, %943 : vector<4x256xf32>
    %958 = arith.addf %935, %957 : vector<4x256xf32>
    %c35_594 = arith.constant 35 : index
    %c0_595 = arith.constant 0 : index
    %c0_596 = arith.constant 0 : index
    %959 = vector.load %arg4[%c35_594, %c0_595, %c0_596] : memref<36x4x1xf32, #tpu.memory_space<vmem>>, vector<1x4x1xf32>
    %960 = vector.shape_cast %959 : vector<1x4x1xf32> to vector<4x1xf32>
    %961 = vector.broadcast %960 : vector<4x1xf32> to vector<4x256xf32>
    %962 = arith.mulf %961, %943 : vector<4x256xf32>
    %963 = arith.addf %940, %962 : vector<4x256xf32>
    %cst_597 = arith.constant dense<0.000000e+00> : vector<256xf32>
    %964 = vector.multi_reduction <add>, %948, %cst_597 [0] : vector<4x256xf32> to vector<256xf32>
    %c0_598 = arith.constant 0 : index
    %965 = memref.load %arg5[%c0_598] : memref<4xf32, #tpu.memory_space<smem>>
    %966 = vector.broadcast %965 : f32 to vector<256xf32>
    %967 = arith.addf %964, %966 : vector<256xf32>
    %cst_599 = arith.constant dense<0.000000e+00> : vector<256xf32>
    %968 = vector.multi_reduction <add>, %953, %cst_599 [0] : vector<4x256xf32> to vector<256xf32>
    %c1_600 = arith.constant 1 : index
    %969 = memref.load %arg5[%c1_600] : memref<4xf32, #tpu.memory_space<smem>>
    %970 = vector.broadcast %969 : f32 to vector<256xf32>
    %971 = arith.addf %968, %970 : vector<256xf32>
    %cst_601 = arith.constant dense<0.000000e+00> : vector<256xf32>
    %972 = vector.multi_reduction <add>, %958, %cst_601 [0] : vector<4x256xf32> to vector<256xf32>
    %c2_602 = arith.constant 2 : index
    %973 = memref.load %arg5[%c2_602] : memref<4xf32, #tpu.memory_space<smem>>
    %974 = vector.broadcast %973 : f32 to vector<256xf32>
    %975 = arith.addf %972, %974 : vector<256xf32>
    %cst_603 = arith.constant dense<0.000000e+00> : vector<256xf32>
    %976 = vector.multi_reduction <add>, %963, %cst_603 [0] : vector<4x256xf32> to vector<256xf32>
    %c3_604 = arith.constant 3 : index
    %977 = memref.load %arg5[%c3_604] : memref<4xf32, #tpu.memory_space<smem>>
    %978 = vector.broadcast %977 : f32 to vector<256xf32>
    %979 = arith.addf %976, %978 : vector<256xf32>
    %c0_605 = arith.constant 0 : index
    %c17_606 = arith.constant 17 : index
    %980 = vector.load %arg7[%c0_605, %c17_606] : memref<4x290xf32, #tpu.memory_space<vmem>>, vector<1x256xf32>
    %981 = vector.shape_cast %980 : vector<1x256xf32> to vector<256xf32>
    %982 = arith.addf %967, %981 : vector<256xf32>
    %c1_607 = arith.constant 1 : index
    %c0_608 = arith.constant 0 : index
    %c0_609 = arith.constant 0 : index
    %983 = vector.load %arg6[%c1_607, %c0_608, %c0_609] : memref<2x4x256xf32, #tpu.memory_space<vmem>>, vector<1x1x256xf32>
    %984 = vector.shape_cast %983 : vector<1x1x256xf32> to vector<256xf32>
    %985 = vector.shape_cast %982 : vector<256xf32> to vector<1x1x256xf32>
    tpu.vector_store %arg6[%c1_607, %c0_608, %c0_609], %985 {strides = array<i32>} : memref<2x4x256xf32, #tpu.memory_space<vmem>>, vector<1x1x256xf32>,
    %c1_610 = arith.constant 1 : index
    %c17_611 = arith.constant 17 : index
    %986 = vector.load %arg7[%c1_610, %c17_611] : memref<4x290xf32, #tpu.memory_space<vmem>>, vector<1x256xf32>
    %987 = vector.shape_cast %986 : vector<1x256xf32> to vector<256xf32>
    %988 = arith.addf %971, %987 : vector<256xf32>
    %c1_612 = arith.constant 1 : index
    %c1_613 = arith.constant 1 : index
    %c0_614 = arith.constant 0 : index
    %989 = vector.load %arg6[%c1_612, %c1_613, %c0_614] : memref<2x4x256xf32, #tpu.memory_space<vmem>>, vector<1x1x256xf32>
    %990 = vector.shape_cast %989 : vector<1x1x256xf32> to vector<256xf32>
    %991 = vector.shape_cast %988 : vector<256xf32> to vector<1x1x256xf32>
    tpu.vector_store %arg6[%c1_612, %c1_613, %c0_614], %991 {strides = array<i32>} : memref<2x4x256xf32, #tpu.memory_space<vmem>>, vector<1x1x256xf32>,
    %c2_615 = arith.constant 2 : index
    %c17_616 = arith.constant 17 : index
    %992 = vector.load %arg7[%c2_615, %c17_616] : memref<4x290xf32, #tpu.memory_space<vmem>>, vector<1x256xf32>
    %993 = vector.shape_cast %992 : vector<1x256xf32> to vector<256xf32>
    %994 = arith.addf %975, %993 : vector<256xf32>
    %c1_617 = arith.constant 1 : index
    %c2_618 = arith.constant 2 : index
    %c0_619 = arith.constant 0 : index
    %995 = vector.load %arg6[%c1_617, %c2_618, %c0_619] : memref<2x4x256xf32, #tpu.memory_space<vmem>>, vector<1x1x256xf32>
    %996 = vector.shape_cast %995 : vector<1x1x256xf32> to vector<256xf32>
    %997 = vector.shape_cast %994 : vector<256xf32> to vector<1x1x256xf32>
    tpu.vector_store %arg6[%c1_617, %c2_618, %c0_619], %997 {strides = array<i32>} : memref<2x4x256xf32, #tpu.memory_space<vmem>>, vector<1x1x256xf32>,
    %c3_620 = arith.constant 3 : index
    %c17_621 = arith.constant 17 : index
    %998 = vector.load %arg7[%c3_620, %c17_621] : memref<4x290xf32, #tpu.memory_space<vmem>>, vector<1x256xf32>
    %999 = vector.shape_cast %998 : vector<1x256xf32> to vector<256xf32>
    %1000 = arith.addf %979, %999 : vector<256xf32>
    %c1_622 = arith.constant 1 : index
    %c3_623 = arith.constant 3 : index
    %c0_624 = arith.constant 0 : index
    %1001 = vector.load %arg6[%c1_622, %c3_623, %c0_624] : memref<2x4x256xf32, #tpu.memory_space<vmem>>, vector<1x1x256xf32>
    %1002 = vector.shape_cast %1001 : vector<1x1x256xf32> to vector<256xf32>
    %1003 = vector.shape_cast %1000 : vector<256xf32> to vector<1x1x256xf32>
    tpu.vector_store %arg6[%c1_622, %c3_623, %c0_624], %1003 {strides = array<i32>} : memref<2x4x256xf32, #tpu.memory_space<vmem>>, vector<1x1x256xf32>,
    return
  }
  func.func @transform_0(%arg0: i32) -> (i32, i32, i32) {
    %c0_i32 = arith.constant 0 : i32
    %c0_i32_0 = arith.constant 0 : i32
    %c0_i32_1 = arith.constant 0 : i32
    return %arg0, %c0_i32, %c0_i32_0 : i32, i32, i32
  }
  func.func @transform_1(%arg0: i32) -> (i32, i32, i32) {
    %c0_i32 = arith.constant 0 : i32
    %c0_i32_0 = arith.constant 0 : i32
    %c0_i32_1 = arith.constant 0 : i32
    %c0_i32_2 = arith.constant 0 : i32
    return %c0_i32, %c0_i32_0, %c0_i32_1 : i32, i32, i32
  }
  func.func @transform_2(%arg0: i32) -> i32 {
    %c0_i32 = arith.constant 0 : i32
    %c0_i32_0 = arith.constant 0 : i32
    return %c0_i32 : i32
  }
  func.func @transform_3(%arg0: i32) -> (i32, i32, i32) {
    %c0_i32 = arith.constant 0 : i32
    %c0_i32_0 = arith.constant 0 : i32
    %c0_i32_1 = arith.constant 0 : i32
    %c0_i32_2 = arith.constant 0 : i32
    return %c0_i32, %c0_i32_0, %c0_i32_1 : i32, i32, i32
  }
  func.func @transform_4(%arg0: i32) -> i32 {
    %c0_i32 = arith.constant 0 : i32
    %c0_i32_0 = arith.constant 0 : i32
    return %c0_i32 : i32
  }
  func.func @transform_5(%arg0: i32) -> (i32, i32, i32) {
    %c0_i32 = arith.constant 0 : i32
    %c0_i32_0 = arith.constant 0 : i32
    %c0_i32_1 = arith.constant 0 : i32
    return %arg0, %c0_i32, %c0_i32_0 : i32, i32, i32
  }
}

</mosaic_0001>

<llo_original>
// kernel: tpu_custom_call.1
$region0: #{tpu_custom_call.1}
  #allocation0 [shape = 'u32[]', space=smem, size = 0x4, offset = 0x4, fixed_abs, tag = 'smem constant byte address 0x4 - core index']
  #allocation1 [shape = 'u32[144,128]{1,0:T(1,128)}', space=vmem, size = 0x12000, scoped, tag = 'internal scratch']
  #allocation2 [shape = 'f32[4,290]{1,0:T(4,128)}', space=vmem, size = 0x1800, scoped, tag = 'scratch operand']
  #allocation3 [shape = 'f32[4,290]{1,0:T(4,128)}', space=vmem, size = 0x1800, scoped, tag = 'scratch operand']
  %s0 = inlined_call_operand.vmem [shape: f32[2,4,256], index: 0, kind: input, shape index: {}]
  %s1 = inlined_call_operand.vmem [shape: f32[36,4,1], index: 1, kind: input, shape index: {}]
  %s2 = inlined_call_operand.vmem [shape: f32[4], index: 2, kind: input, shape index: {}]
  %s3 = inlined_call_operand.vmem [shape: f32[36,4,1], index: 3, kind: input, shape index: {}]
  %s4 = inlined_call_operand.vmem [shape: f32[4], index: 4, kind: input, shape index: {}]
  %s5 = inlined_call_operand.hbm [shape: f32[2,4,256], index: 5, kind: output, shape index: {}]
  %s6 = sld [smem:[#allocation0]]
  $region38: #{tpu_custom_call.1} parent=0
    _
  %s8 = ssub.s32 1, %s6
  %s9 = scalar_select 0, %s8, %s6
  $region1: #{tpu_custom_call.1} parent=0
    #allocation4 [shape = 'u8[512]{0}', space=smem, size = 0x200, scoped, tag = 'input window, operand 2, single buffered']
    #allocation5 [shape = 's32[1]{0}', space=sflag, size = 0x4, scoped, tag = 'scoped memory for tpu_custom_call.1']
    #allocation6 [shape = 's32[1]{0}', space=sflag, size = 0x4, scoped, tag = 'scoped memory for tpu_custom_call.1']
    #allocation7 [shape = 'u8[512]{0}', space=smem, size = 0x200, scoped, tag = 'input window, operand 4, single buffered']
    #allocation8 [shape = 's32[1]{0}', space=sflag, size = 0x4, scoped, tag = 'scoped memory for tpu_custom_call.1']
    #allocation9 [shape = 'u8[8192]{0}', space=vmem, size = 0x2000, scoped, tag = 'output window, operand 0, single buffered']
    %10 = vsyncpa [#allocation6], 0
    %11 = vsyncpa [#allocation8], 0
    %12 = vsyncpa [#allocation5], 0
    // Predicated region
    $region2: #{tpu_custom_call.1} parent=1 // pred_check
      _
    $region3: #{tpu_custom_call.1} parent=1 // pred_check_branch
      %14 = sbr.rel (0) target = $region5
    $region4: #{tpu_custom_call.1} parent=1 // pred_region
      _
    $region5: #{tpu_custom_call.1} parent=1 // pred_fallthru
      _
    // Predicated region
    $region6: #{tpu_custom_call.1} parent=1 // pred_check
      _
    $region7: #{tpu_custom_call.1} parent=1 // pred_check_branch
      %16 = sbr.rel (0) target = $region9
    $region8: #{tpu_custom_call.1} parent=1 // pred_region
      _
    $region9: #{tpu_custom_call.1} parent=1 // pred_fallthru
      _
    // Predicated region
    $region10: #{tpu_custom_call.1} parent=1 // pred_check
      _
    $region11: #{tpu_custom_call.1} parent=1 // pred_check_branch
      %18 = sbr.rel (0) target = $region13
    $region12: #{tpu_custom_call.1} parent=1 // pred_region
      %s20 = ssub.s32 16, 16
      %21 = vsyncadd [#allocation6], %s20
      %s23 = sshll.u32 %s2, 4
      %s24 = int_to_ptr.vmem [resolvable:$true] %s23
      %26 = dma.vmem_to_smem %s24, 16, [#allocation4], [#allocation6]
    $region13: #{tpu_custom_call.1} parent=1 // pred_fallthru
      _
    // Predicated region
    $region14: #{tpu_custom_call.1} parent=1 // pred_check
      _
    $region15: #{tpu_custom_call.1} parent=1 // pred_check_branch
      %28 = sbr.rel (0) target = $region17
    $region16: #{tpu_custom_call.1} parent=1 // pred_region
      _
    $region17: #{tpu_custom_call.1} parent=1 // pred_fallthru
      _
    // Predicated region
    $region18: #{tpu_custom_call.1} parent=1 // pred_check
      _
    $region19: #{tpu_custom_call.1} parent=1 // pred_check_branch
      %30 = sbr.rel (0) target = $region21
    $region20: #{tpu_custom_call.1} parent=1 // pred_region
      %s32 = ssub.s32 16, 16
      %33 = vsyncadd [#allocation8], %s32
      %s35 = sshll.u32 %s4, 4
      %s36 = int_to_ptr.vmem [resolvable:$true] %s35
      %38 = dma.vmem_to_smem %s36, 16, [#allocation7], [#allocation8]
    $region21: #{tpu_custom_call.1} parent=1 // pred_fallthru
      _
    // Predicated region
    $region22: #{tpu_custom_call.1} parent=1 // pred_check
      _
    $region23: #{tpu_custom_call.1} parent=1 // pred_check_branch
      %40 = sbr.rel (0) target = $region25
    $region24: #{tpu_custom_call.1} parent=1 // pred_region
      %41 = dma.done [#allocation6], 16
    $region25: #{tpu_custom_call.1} parent=1 // pred_fallthru
      _
    // Predicated region
    $region26: #{tpu_custom_call.1} parent=1 // pred_check
      _
    $region27: #{tpu_custom_call.1} parent=1 // pred_check_branch
      %43 = sbr.rel (0) target = $region29
    $region28: #{tpu_custom_call.1} parent=1 // pred_region
      %44 = dma.done [#allocation8], 16
    $region29: #{tpu_custom_call.1} parent=1 // pred_fallthru
      _
    %45 = sfence
    %v46 = vlaneseq
    %v47 = vand.u32 %v46, 127
    %v48 = vadd.s32 %v47, 128
    %vm49 = vcmp.lt.s32.totalorder %v47, 0
    %v50 = vsub.s32 0, %v47
    %v51 = vsel %vm49, %v50, %v47
    %v52 = vshrl.u32 %v51, 4
    %v53 = vand.u32 %v51, 15
    %v54 = vsub.s32 0, %v53
    %v55 = vsel %vm49, %v54, %v53
    %vm56 = vcmp.lt.s32.totalorder %v48, 0
    %v57 = vsub.s32 0, %v48
    %v58 = vsel %vm56, %v57, %v48
    %v59 = vshrl.u32 %v58, 4
    %v60 = vand.u32 %v58, 15
    %v61 = vsub.s32 0, %v60
    %v62 = vsel %vm56, %v61, %v60
    %vm63 = vcmp.ne.s32.totalorder %v55, 0
    %vm64 = vcmp.ne.s32.totalorder %v62, 0
    %vm65 = vcmp.lt.s32.totalorder %v55, 0
    %vm66 = vcmp.lt.s32.totalorder %v62, 0
    %vm67 = vmand %vm65, %vm63
    %vm68 = vmand %vm66, %vm64
    %v69 = vadd.s32 %v55, 16
    %v70 = vadd.s32 %v62, 16
    %v71 = vsel %vm67, %v69, %v55
    %v72 = vsel %vm68, %v70, %v62
    %vm73 = vcmp.ge.s32.totalorder %v71, 1
    %vm74 = vcmp.ge.s32.totalorder %v72, 1
    %vm75 = vcmp.lt.s32.totalorder %v71, 15
    %vm76 = vcmp.lt.s32.totalorder %v72, 15
    %vm77 = vcmask 134144
    %78 = vst.msk [vmem:[#allocation2] sm:$0xf] %vm77, 0.0
    %vm79 = vcmask 273544
    %80 = vst.msk [vmem:[#allocation2 + $0x8] sm:$0xf] %vm79, 0.0
    %81 = vst.msk [vmem:[#allocation3] sm:$0xf] %vm77, 0.0
    %82 = vst.msk [vmem:[#allocation3 + $0x8] sm:$0xf] %vm79, 0.0
    %v83 = vld [vmem:[%s0] sm:$0xff]
    %85 = vrot.lane.b32.xlu0 %v83, 17
    %v86 = vpop.permute.xlu0 %85
    %v87 = vrot.slane %v86, 4
    %vm88 = vcmask 138240
    %v89 = vsel %vm88, %v87, %v86
    %vm92 = vcmask 1043592
    %vm93 = vcmask 1047556
    %vm94 = vmor %vm93, %vm92
    %95 = vst.msk [vmem:[#allocation2] sm:$0xff] %vm94, %v89
    %96 = vst.msk [vmem:[#allocation2 + $0x8] sm:$0xf] %vm77, %v87
    %v97 = vld [vmem:[#allocation2] sm:$0xff]
    %v99 = vcombine.high %v97, %v97
    %v101 = vsel %vm73, %v97, 0.0
    %v102 = vsel %vm74, %v99, 0.0
    %v103 = vld [vmem:[%s1] sm:$0xf]
    %105 = vset.pattern.permute.xlu0 0
    %106 = vperm.xlu0 %105, %v103
    %v107 = vpop.permute.xlu0 %106
    %v109 = vmul.f32 %v107, %v101
    %v110 = vmul.f32 %v107, %v102
    %v111 = vadd.f32 %v109, 0.0
    %v112 = vadd.f32 %v110, 0.0
    %s113 = scalar_lea.vmem %s1, 4
    %v114 = vld [vmem:[%s113] sm:$0xf]
    %116 = vset.pattern.permute.xlu0 0
    %117 = vperm.xlu0 %116, %v114
    %v118 = vpop.permute.xlu0 %117
    %v120 = vmul.f32 %v118, %v101
    %v121 = vmul.f32 %v118, %v102
    %v122 = vadd.f32 %v120, 0.0
    %v123 = vadd.f32 %v121, 0.0
    %s124 = scalar_lea.vmem %s1, 8
    %v125 = vld [vmem:[%s124] sm:$0xf]
    %127 = vset.pattern.permute.xlu0 0
    %128 = vperm.xlu0 %127, %v125
    %v129 = vpop.permute.xlu0 %128
    %v131 = vmul.f32 %v129, %v101
    %v132 = vmul.f32 %v129, %v102
    %v133 = vadd.f32 %v131, 0.0
    %v134 = vadd.f32 %v132, 0.0
    %s135 = scalar_lea.vmem %s1, 12
    %v136 = vld [vmem:[%s135] sm:$0xf]
    %138 = vset.pattern.permute.xlu0 0
    %139 = vperm.xlu0 %138, %v136
    %v140 = vpop.permute.xlu0 %139
    %v142 = vmul.f32 %v140, %v101
    %v143 = vmul.f32 %v140, %v102
    %v144 = vadd.f32 %v142, 0.0
    %v145 = vadd.f32 %v143, 0.0
    %v146 = vld [vmem:[#allocation2] sm:$0xff]
    %v147 = vld [vmem:[#allocation2 + $0x8] sm:$0xf]
    %s148 = scalar_lea.vmem %s1, 16
    %v149 = vld [vmem:[%s148] sm:$0xf]
    %151 = vset.pattern.permute.xlu0 0
    %152 = vperm.xlu0 %151, %v149
    %v153 = vpop.permute.xlu0 %152
    %v157 = vcombine.high %v146, %v146
    %158 = vrot.lane.b32.xlu0 %v146, 127
    %v159 = vpop.permute.xlu0 %158
    %160 = vrot.lane.b32.xlu0 %v157, 127
    %v161 = vpop.permute.xlu0 %160
    %162 = vrot.lane.b32.xlu0 %v147, 127
    %v163 = vpop.permute.xlu0 %162
    %vm164 = vcmask 1039360
    %v165 = vsel %vm164, %v159, %v161
    %v166 = vsel %vm164, %v161, %v163
    %v169 = vmul.f32 %v153, %v165
    %v170 = vmul.f32 %v153, %v166
    %v171 = vadd.f32 %v111, %v169
    %v172 = vadd.f32 %v112, %v170
    %s173 = scalar_lea.vmem %s1, 20
    %v174 = vld [vmem:[%s173] sm:$0xf]
    %176 = vset.pattern.permute.xlu0 0
    %177 = vperm.xlu0 %176, %v174
    %v178 = vpop.permute.xlu0 %177
    %v180 = vmul.f32 %v178, %v165
    %v181 = vmul.f32 %v178, %v166
    %v182 = vadd.f32 %v122, %v180
    %v183 = vadd.f32 %v123, %v181
    %s184 = scalar_lea.vmem %s1, 24
    %v185 = vld [vmem:[%s184] sm:$0xf]
    %187 = vset.pattern.permute.xlu0 0
    %188 = vperm.xlu0 %187, %v185
    %v189 = vpop.permute.xlu0 %188
    %v191 = vmul.f32 %v189, %v165
    %v192 = vmul.f32 %v189, %v166
    %v193 = vadd.f32 %v133, %v191
    %v194 = vadd.f32 %v134, %v192
    %s195 = scalar_lea.vmem %s1, 28
    %v196 = vld [vmem:[%s195] sm:$0xf]
    %198 = vset.pattern.permute.xlu0 0
    %199 = vperm.xlu0 %198, %v196
    %v200 = vpop.permute.xlu0 %199
    %v202 = vmul.f32 %v200, %v165
    %v203 = vmul.f32 %v200, %v166
    %v204 = vadd.f32 %v144, %v202
    %v205 = vadd.f32 %v145, %v203
    %v206 = vld [vmem:[#allocation2] sm:$0xff]
    %v207 = vld [vmem:[#allocation2 + $0x8] sm:$0xf]
    %v210 = vcombine.high %v206, %v206
    %211 = vrot.lane.b32.xlu0 %v206, 126
    %v212 = vpop.permute.xlu0 %211
    %213 = vrot.lane.b32.xlu0 %v210, 126
    %v214 = vpop.permute.xlu0 %213
    %215 = vrot.lane.b32.xlu0 %v207, 126
    %v216 = vpop.permute.xlu0 %215
    %vm217 = vcmask 1031168
    %v218 = vsel %vm217, %v212, %v214
    %v219 = vsel %vm217, %v214, %v216
    %v222 = vsel %vm75, %v218, 0.0
    %v223 = vsel %vm76, %v219, 0.0
    %s224 = scalar_lea.vmem %s1, 32
    %v225 = vld [vmem:[%s224] sm:$0xf]
    %227 = vset.pattern.permute.xlu0 0
    %228 = vperm.xlu0 %227, %v225
    %v229 = vpop.permute.xlu0 %228
    %v231 = vmul.f32 %v229, %v222
    %v232 = vmul.f32 %v229, %v223
    %v233 = vadd.f32 %v171, %v231
    %v234 = vadd.f32 %v172, %v232
    %s235 = scalar_lea.vmem %s1, 36
    %v236 = vld [vmem:[%s235] sm:$0xf]
    %238 = vset.pattern.permute.xlu0 0
    %239 = vperm.xlu0 %238, %v236
    %v240 = vpop.permute.xlu0 %239
    %v242 = vmul.f32 %v240, %v222
    %v243 = vmul.f32 %v240, %v223
    %v244 = vadd.f32 %v182, %v242
    %v245 = vadd.f32 %v183, %v243
    %s246 = scalar_lea.vmem %s1, 40
    %v247 = vld [vmem:[%s246] sm:$0xf]
    %249 = vset.pattern.permute.xlu0 0
    %250 = vperm.xlu0 %249, %v247
    %v251 = vpop.permute.xlu0 %250
    %v253 = vmul.f32 %v251, %v222
    %v254 = vmul.f32 %v251, %v223
    %v255 = vadd.f32 %v193, %v253
    %v256 = vadd.f32 %v194, %v254
    %s257 = scalar_lea.vmem %s1, 44
    %v258 = vld [vmem:[%s257] sm:$0xf]
    %260 = vset.pattern.permute.xlu0 0
    %261 = vperm.xlu0 %260, %v258
    %v262 = vpop.permute.xlu0 %261
    %v264 = vmul.f32 %v262, %v222
    %v265 = vmul.f32 %v262, %v223
    %v266 = vadd.f32 %v204, %v264
    %v267 = vadd.f32 %v205, %v265
    %v268 = vld [vmem:[#allocation2] sm:$0xff]
    %v269 = vld [vmem:[#allocation2 + $0x8] sm:$0xf]
    %v272 = vcombine.high %v268, %v268
    %273 = vrot.lane.b32.xlu0 %v268, 112
    %v274 = vpop.permute.xlu0 %273
    %275 = vrot.lane.b32.xlu0 %v272, 112
    %v276 = vpop.permute.xlu0 %275
    %277 = vrot.lane.b32.xlu0 %v269, 112
    %v278 = vpop.permute.xlu0 %277
    %vm279 = vcmask 916480
    %v280 = vsel %vm279, %v274, %v276
    %v281 = vsel %vm279, %v276, %v278
    %v284 = vsel %vm73, %v280, 0.0
    %v285 = vsel %vm74, %v281, 0.0
    %s286 = scalar_lea.vmem %s1, 48
    %v287 = vld [vmem:[%s286] sm:$0xf]
    %289 = vset.pattern.permute.xlu0 0
    %290 = vperm.xlu0 %289, %v287
    %v291 = vpop.permute.xlu0 %290
    %v293 = vmul.f32 %v291, %v284
    %v294 = vmul.f32 %v291, %v285
    %v295 = vadd.f32 %v233, %v293
    %v296 = vadd.f32 %v234, %v294
    %s297 = scalar_lea.vmem %s1, 52
    %v298 = vld [vmem:[%s297] sm:$0xf]
    %300 = vset.pattern.permute.xlu0 0
    %301 = vperm.xlu0 %300, %v298
    %v302 = vpop.permute.xlu0 %301
    %v304 = vmul.f32 %v302, %v284
    %v305 = vmul.f32 %v302, %v285
    %v306 = vadd.f32 %v244, %v304
    %v307 = vadd.f32 %v245, %v305
    %s308 = scalar_lea.vmem %s1, 56
    %v309 = vld [vmem:[%s308] sm:$0xf]
    %311 = vset.pattern.permute.xlu0 0
    %312 = vperm.xlu0 %311, %v309
    %v313 = vpop.permute.xlu0 %312
    %v315 = vmul.f32 %v313, %v284
    %v316 = vmul.f32 %v313, %v285
    %v317 = vadd.f32 %v255, %v315
    %v318 = vadd.f32 %v256, %v316
    %s319 = scalar_lea.vmem %s1, 60
    %v320 = vld [vmem:[%s319] sm:$0xf]
    %322 = vset.pattern.permute.xlu0 0
    %323 = vperm.xlu0 %322, %v320
    %v324 = vpop.permute.xlu0 %323
    %v326 = vmul.f32 %v324, %v284
    %v327 = vmul.f32 %v324, %v285
    %v328 = vadd.f32 %v266, %v326
    %v329 = vadd.f32 %v267, %v327
    %v330 = vld [vmem:[#allocation2] sm:$0xff]
    %v331 = vld [vmem:[#allocation2 + $0x8] sm:$0xf]
    %s332 = scalar_lea.vmem %s1, 64
    %v333 = vld [vmem:[%s332] sm:$0xf]
    %335 = vset.pattern.permute.xlu0 0
    %336 = vperm.xlu0 %335, %v333
    %v337 = vpop.permute.xlu0 %336
    %v341 = vcombine.high %v330, %v330
    %342 = vrot.lane.b32.xlu0 %v330, 111
    %v343 = vpop.permute.xlu0 %342
    %344 = vrot.lane.b32.xlu0 %v341, 111
    %v345 = vpop.permute.xlu0 %344
    %346 = vrot.lane.b32.xlu0 %v331, 111
    %v347 = vpop.permute.xlu0 %346
    %vm348 = vcmask 908288
    %v349 = vsel %vm348, %v343, %v345
    %v350 = vsel %vm348, %v345, %v347
    %v353 = vmul.f32 %v337, %v349
    %v354 = vmul.f32 %v337, %v350
    %v355 = vadd.f32 %v295, %v353
    %v356 = vadd.f32 %v296, %v354
    %s357 = scalar_lea.vmem %s1, 68
    %v358 = vld [vmem:[%s357] sm:$0xf]
    %360 = vset.pattern.permute.xlu0 0
    %361 = vperm.xlu0 %360, %v358
    %v362 = vpop.permute.xlu0 %361
    %v364 = vmul.f32 %v362, %v349
    %v365 = vmul.f32 %v362, %v350
    %v366 = vadd.f32 %v306, %v364
    %v367 = vadd.f32 %v307, %v365
    %s368 = scalar_lea.vmem %s1, 72
    %v369 = vld [vmem:[%s368] sm:$0xf]
    %371 = vset.pattern.permute.xlu0 0
    %372 = vperm.xlu0 %371, %v369
    %v373 = vpop.permute.xlu0 %372
    %v375 = vmul.f32 %v373, %v349
    %v376 = vmul.f32 %v373, %v350
    %v377 = vadd.f32 %v317, %v375
    %v378 = vadd.f32 %v318, %v376
    %s379 = scalar_lea.vmem %s1, 76
    %v380 = vld [vmem:[%s379] sm:$0xf]
    %382 = vset.pattern.permute.xlu0 0
    %383 = vperm.xlu0 %382, %v380
    %v384 = vpop.permute.xlu0 %383
    %v386 = vmul.f32 %v384, %v349
    %v387 = vmul.f32 %v384, %v350
    %v388 = vadd.f32 %v328, %v386
    %v389 = vadd.f32 %v329, %v387
    %v390 = vld [vmem:[#allocation2] sm:$0xff]
    %v391 = vld [vmem:[#allocation2 + $0x8] sm:$0xf]
    %v394 = vcombine.high %v390, %v390
    %395 = vrot.lane.b32.xlu0 %v390, 110
    %v396 = vpop.permute.xlu0 %395
    %397 = vrot.lane.b32.xlu0 %v394, 110
    %v398 = vpop.permute.xlu0 %397
    %399 = vrot.lane.b32.xlu0 %v391, 110
    %v400 = vpop.permute.xlu0 %399
    %vm401 = vcmask 900096
    %v402 = vsel %vm401, %v396, %v398
    %v403 = vsel %vm401, %v398, %v400
    %v406 = vsel %vm75, %v402, 0.0
    %v407 = vsel %vm76, %v403, 0.0
    %s408 = scalar_lea.vmem %s1, 80
    %v409 = vld [vmem:[%s408] sm:$0xf]
    %411 = vset.pattern.permute.xlu0 0
    %412 = vperm.xlu0 %411, %v409
    %v413 = vpop.permute.xlu0 %412
    %v415 = vmul.f32 %v413, %v406
    %v416 = vmul.f32 %v413, %v407
    %v417 = vadd.f32 %v355, %v415
    %v418 = vadd.f32 %v356, %v416
    %s419 = scalar_lea.vmem %s1, 84
    %v420 = vld [vmem:[%s419] sm:$0xf]
    %422 = vset.pattern.permute.xlu0 0
    %423 = vperm.xlu0 %422, %v420
    %v424 = vpop.permute.xlu0 %423
    %v426 = vmul.f32 %v424, %v406
    %v427 = vmul.f32 %v424, %v407
    %v428 = vadd.f32 %v366, %v426
    %v429 = vadd.f32 %v367, %v427
    %s430 = scalar_lea.vmem %s1, 88
    %v431 = vld [vmem:[%s430] sm:$0xf]
    %433 = vset.pattern.permute.xlu0 0
    %434 = vperm.xlu0 %433, %v431
    %v435 = vpop.permute.xlu0 %434
    %v437 = vmul.f32 %v435, %v406
    %v438 = vmul.f32 %v435, %v407
    %v439 = vadd.f32 %v377, %v437
    %v440 = vadd.f32 %v378, %v438
    %s441 = scalar_lea.vmem %s1, 92
    %v442 = vld [vmem:[%s441] sm:$0xf]
    %444 = vset.pattern.permute.xlu0 0
    %445 = vperm.xlu0 %444, %v442
    %v446 = vpop.permute.xlu0 %445
    %v448 = vmul.f32 %v446, %v406
    %v449 = vmul.f32 %v446, %v407
    %v450 = vadd.f32 %v388, %v448
    %v451 = vadd.f32 %v389, %v449
    %v452 = vld [vmem:[#allocation2] sm:$0xff]
    %v453 = vld [vmem:[#allocation2 + $0x8] sm:$0xf]
    %v456 = vcombine.high %v452, %v452
    %457 = vrot.lane.b32.xlu0 %v452, 96
    %v458 = vpop.permute.xlu0 %457
    %459 = vrot.lane.b32.xlu0 %v456, 96
    %v460 = vpop.permute.xlu0 %459
    %461 = vrot.lane.b32.xlu0 %v453, 96
    %v462 = vpop.permute.xlu0 %461
    %vm463 = vcmask 785408
    %v464 = vsel %vm463, %v458, %v460
    %v465 = vsel %vm463, %v460, %v462
    %v468 = vsel %vm73, %v464, 0.0
    %v469 = vsel %vm74, %v465, 0.0
    %s470 = scalar_lea.vmem %s1, 96
    %v471 = vld [vmem:[%s470] sm:$0xf]
    %473 = vset.pattern.permute.xlu0 0
    %474 = vperm.xlu0 %473, %v471
    %v475 = vpop.permute.xlu0 %474
    %v477 = vmul.f32 %v475, %v468
    %v478 = vmul.f32 %v475, %v469
    %v479 = vadd.f32 %v417, %v477
    %v480 = vadd.f32 %v418, %v478
    %s481 = scalar_lea.vmem %s1, 100
    %v482 = vld [vmem:[%s481] sm:$0xf]
    %484 = vset.pattern.permute.xlu0 0
    %485 = vperm.xlu0 %484, %v482
    %v486 = vpop.permute.xlu0 %485
    %v488 = vmul.f32 %v486, %v468
    %v489 = vmul.f32 %v486, %v469
    %v490 = vadd.f32 %v428, %v488
    %v491 = vadd.f32 %v429, %v489
    %s492 = scalar_lea.vmem %s1, 104
    %v493 = vld [vmem:[%s492] sm:$0xf]
    %495 = vset.pattern.permute.xlu0 0
    %496 = vperm.xlu0 %495, %v493
    %v497 = vpop.permute.xlu0 %496
    %v499 = vmul.f32 %v497, %v468
    %v500 = vmul.f32 %v497, %v469
    %v501 = vadd.f32 %v439, %v499
    %v502 = vadd.f32 %v440, %v500
    %s503 = scalar_lea.vmem %s1, 108
    %v504 = vld [vmem:[%s503] sm:$0xf]
    %506 = vset.pattern.permute.xlu0 0
    %507 = vperm.xlu0 %506, %v504
    %v508 = vpop.permute.xlu0 %507
    %v510 = vmul.f32 %v508, %v468
    %v511 = vmul.f32 %v508, %v469
    %v512 = vadd.f32 %v450, %v510
    %v513 = vadd.f32 %v451, %v511
    %v514 = vld [vmem:[#allocation2] sm:$0xff]
    %v515 = vld [vmem:[#allocation2 + $0x8] sm:$0xf]
    %s516 = scalar_lea.vmem %s1, 112
    %v517 = vld [vmem:[%s516] sm:$0xf]
    %519 = vset.pattern.permute.xlu0 0
    %520 = vperm.xlu0 %519, %v517
    %v521 = vpop.permute.xlu0 %520
    %v525 = vcombine.high %v514, %v514
    %526 = vrot.lane.b32.xlu0 %v514, 95
    %v527 = vpop.permute.xlu0 %526
    %528 = vrot.lane.b32.xlu0 %v525, 95
    %v529 = vpop.permute.xlu0 %528
    %530 = vrot.lane.b32.xlu0 %v515, 95
    %v531 = vpop.permute.xlu0 %530
    %vm532 = vcmask 777216
    %v533 = vsel %vm532, %v527, %v529
    %v534 = vsel %vm532, %v529, %v531
    %v537 = vmul.f32 %v521, %v533
    %v538 = vmul.f32 %v521, %v534
    %v539 = vadd.f32 %v479, %v537
    %v540 = vadd.f32 %v480, %v538
    %s541 = scalar_lea.vmem %s1, 116
    %v542 = vld [vmem:[%s541] sm:$0xf]
    %544 = vset.pattern.permute.xlu0 0
    %545 = vperm.xlu0 %544, %v542
    %v546 = vpop.permute.xlu0 %545
    %v548 = vmul.f32 %v546, %v533
    %v549 = vmul.f32 %v546, %v534
    %v550 = vadd.f32 %v490, %v548
    %v551 = vadd.f32 %v491, %v549
    %s552 = scalar_lea.vmem %s1, 120
    %v553 = vld [vmem:[%s552] sm:$0xf]
    %555 = vset.pattern.permute.xlu0 0
    %556 = vperm.xlu0 %555, %v553
    %v557 = vpop.permute.xlu0 %556
    %v559 = vmul.f32 %v557, %v533
    %v560 = vmul.f32 %v557, %v534
    %v561 = vadd.f32 %v501, %v559
    %v562 = vadd.f32 %v502, %v560
    %s563 = scalar_lea.vmem %s1, 124
    %v564 = vld [vmem:[%s563] sm:$0xf]
    %566 = vset.pattern.permute.xlu0 0
    %567 = vperm.xlu0 %566, %v564
    %v568 = vpop.permute.xlu0 %567
    %v570 = vmul.f32 %v568, %v533
    %v571 = vmul.f32 %v568, %v534
    %v572 = vadd.f32 %v512, %v570
    %v573 = vadd.f32 %v513, %v571
    %v574 = vld [vmem:[#allocation2] sm:$0xff]
    %v575 = vld [vmem:[#allocation2 + $0x8] sm:$0xf]
    %v578 = vcombine.high %v574, %v574
    %579 = vrot.lane.b32.xlu0 %v574, 94
    %v580 = vpop.permute.xlu0 %579
    %581 = vrot.lane.b32.xlu0 %v578, 94
    %v582 = vpop.permute.xlu0 %581
    %583 = vrot.lane.b32.xlu0 %v575, 94
    %v584 = vpop.permute.xlu0 %583
    %vm585 = vcmask 769024
    %v586 = vsel %vm585, %v580, %v582
    %v587 = vsel %vm585, %v582, %v584
    %v590 = vsel %vm75, %v586, 0.0
    %v591 = vsel %vm76, %v587, 0.0
    %s592 = scalar_lea.vmem %s1, 128
    %v593 = vld [vmem:[%s592] sm:$0xf]
    %595 = vset.pattern.permute.xlu0 0
    %596 = vperm.xlu0 %595, %v593
    %v597 = vpop.permute.xlu0 %596
    %v599 = vmul.f32 %v597, %v590
    %v600 = vmul.f32 %v597, %v591
    %v601 = vadd.f32 %v539, %v599
    %v602 = vadd.f32 %v540, %v600
    %s603 = scalar_lea.vmem %s1, 132
    %v604 = vld [vmem:[%s603] sm:$0xf]
    %606 = vset.pattern.permute.xlu0 0
    %607 = vperm.xlu0 %606, %v604
    %v608 = vpop.permute.xlu0 %607
    %v610 = vmul.f32 %v608, %v590
    %v611 = vmul.f32 %v608, %v591
    %v612 = vadd.f32 %v550, %v610
    %v613 = vadd.f32 %v551, %v611
    %s614 = scalar_lea.vmem %s1, 136
    %v615 = vld [vmem:[%s614] sm:$0xf]
    %617 = vset.pattern.permute.xlu0 0
    %618 = vperm.xlu0 %617, %v615
    %v619 = vpop.permute.xlu0 %618
    %v621 = vmul.f32 %v619, %v590
    %v622 = vmul.f32 %v619, %v591
    %v623 = vadd.f32 %v561, %v621
    %v624 = vadd.f32 %v562, %v622
    %s625 = scalar_lea.vmem %s1, 140
    %v626 = vld [vmem:[%s625] sm:$0xf]
    %628 = vset.pattern.permute.xlu0 0
    %629 = vperm.xlu0 %628, %v626
    %v630 = vpop.permute.xlu0 %629
    %v632 = vmul.f32 %v630, %v590
    %v633 = vmul.f32 %v630, %v591
    %v634 = vadd.f32 %v572, %v632
    %v635 = vadd.f32 %v573, %v633
    %vm636 = vcmask 1043456
    %v637 = vsel %vm636, %v601, 0.0
    %v638 = vrot.slane %v637, 4
    %v639 = vadd.f32 %v637, %v638
    %v640 = vrot.slane %v639, 2
    %v641 = vadd.f32 %v639, %v640
    %v642 = vrot.slane %v641, 1
    %v643 = vadd.f32 %v641, %v642
    %v644 = vsel %vm636, %v602, 0.0
    %v645 = vrot.slane %v644, 4
    %v646 = vadd.f32 %v644, %v645
    %v647 = vrot.slane %v646, 2
    %v648 = vadd.f32 %v646, %v647
    %v649 = vrot.slane %v648, 1
    %v650 = vadd.f32 %v648, %v649
    %s651 = sld [smem:[#allocation4]]
    %v652 = vstv %s651
    %v653 = vadd.f32 %v643, %v652
    %v654 = vadd.f32 %v650, %v652
    %v655 = vmax.f32 %v653, 0.0
    %v656 = vmax.f32 %v654, 0.0
    %v657 = vsel %vm636, %v612, 0.0
    %v658 = vrot.slane %v657, 4
    %v659 = vadd.f32 %v657, %v658
    %v660 = vrot.slane %v659, 2
    %v661 = vadd.f32 %v659, %v660
    %v662 = vrot.slane %v661, 1
    %v663 = vadd.f32 %v661, %v662
    %v664 = vsel %vm636, %v613, 0.0
    %v665 = vrot.slane %v664, 4
    %v666 = vadd.f32 %v664, %v665
    %v667 = vrot.slane %v666, 2
    %v668 = vadd.f32 %v666, %v667
    %v669 = vrot.slane %v668, 1
    %v670 = vadd.f32 %v668, %v669
    %s671 = sld [smem:[#allocation4 + $0x1]]
    %v672 = vstv %s671
    %v673 = vadd.f32 %v663, %v672
    %v674 = vadd.f32 %v670, %v672
    %v675 = vmax.f32 %v673, 0.0
    %v676 = vmax.f32 %v674, 0.0
    %v677 = vsel %vm636, %v623, 0.0
    %v678 = vrot.slane %v677, 4
    %v679 = vadd.f32 %v677, %v678
    %v680 = vrot.slane %v679, 2
    %v681 = vadd.f32 %v679, %v680
    %v682 = vrot.slane %v681, 1
    %v683 = vadd.f32 %v681, %v682
    %v684 = vsel %vm636, %v624, 0.0
    %v685 = vrot.slane %v684, 4
    %v686 = vadd.f32 %v684, %v685
    %v687 = vrot.slane %v686, 2
    %v688 = vadd.f32 %v686, %v687
    %v689 = vrot.slane %v688, 1
    %v690 = vadd.f32 %v688, %v689
    %s691 = sld [smem:[#allocation4 + $0x2]]
    %v692 = vstv %s691
    %v693 = vadd.f32 %v683, %v692
    %v694 = vadd.f32 %v690, %v692
    %v695 = vmax.f32 %v693, 0.0
    %v696 = vmax.f32 %v694, 0.0
    %v697 = vsel %vm636, %v634, 0.0
    %v698 = vrot.slane %v697, 4
    %v699 = vadd.f32 %v697, %v698
    %v700 = vrot.slane %v699, 2
    %v701 = vadd.f32 %v699, %v700
    %v702 = vrot.slane %v701, 1
    %v703 = vadd.f32 %v701, %v702
    %v704 = vsel %vm636, %v635, 0.0
    %v705 = vrot.slane %v704, 4
    %v706 = vadd.f32 %v704, %v705
    %v707 = vrot.slane %v706, 2
    %v708 = vadd.f32 %v706, %v707
    %v709 = vrot.slane %v708, 1
    %v710 = vadd.f32 %v708, %v709
    %s711 = sld [smem:[#allocation4 + $0x3]]
    %v712 = vstv %s711
    %v713 = vadd.f32 %v703, %v712
    %v714 = vadd.f32 %v710, %v712
    %v715 = vmax.f32 %v713, 0.0
    %v716 = vmax.f32 %v714, 0.0
    %v719 = vcombine.low %v655, %v656
    %v721 = vunpack.c.l.s4 1966171168
    %v722 = vunpack.c.0.s8 %v721
    %v723 = vlaneseq
    %v724 = vshrl.u32 %v723, 7
    %v725 = vsub.s32 %v722, %v724
    %v726 = vrot.slane %v719, %v725
    %v728 = vunpack.c.l.s4 1966171168
    %v729 = vunpack.c.0.s8 %v728
    %v730 = vlaneseq
    %v731 = vshrl.u32 %v730, 7
    %v732 = vsub.s32 %v729, %v731
    %v733 = vrot.slane %v726, %v732
    %734 = vrot.lane.b32.xlu0 %v733, 17
    %v735 = vpop.permute.xlu0 %734
    %v736 = vrot.slane %v735, 7
    %v737 = vsel %vm88, %v736, %v735
    %v739 = vlaneseq
    %vm740 = vcmp.ge.s32.totalorder %v739, 17
    %vm741 = vcmp.lt.s32.totalorder %v739, 273
    %vm742 = vmand %vm740, %vm741
    %743 = vst.msk [vmem:[#allocation3] ss:$4 sm:$0x7] %vm742, %v737
    %v746 = vcombine.low %v675, %v676
    %v748 = vunpack.c.l.s4 1966171168
    %v749 = vunpack.c.0.s8 %v748
    %v750 = vlaneseq
    %v751 = vshrl.u32 %v750, 7
    %v752 = vsub.s32 %v749, %v751
    %v753 = vrot.slane %v746, %v752
    %v755 = vunpack.c.l.s4 1966171168
    %v756 = vunpack.c.0.s8 %v755
    %v757 = vlaneseq
    %v758 = vshrl.u32 %v757, 7
    %v759 = vsub.s32 %v756, %v758
    %v760 = vrot.slane %v753, %v759
    %761 = vrot.lane.b32.xlu0 %v760, 17
    %v762 = vpop.permute.xlu0 %761
    %v763 = vrot.slane %v762, 7
    %v764 = vsel %vm88, %v763, %v762
    %s766 = scalar_lea.vmem [#allocation3], 1
    %767 = vst.msk [vmem:[%s766] ss:$4 sm:$0x7] %vm742, %v764
    %v770 = vcombine.low %v695, %v696
    %v772 = vunpack.c.l.s4 1966171168
    %v773 = vunpack.c.0.s8 %v772
    %v774 = vlaneseq
    %v775 = vshrl.u32 %v774, 7
    %v776 = vsub.s32 %v773, %v775
    %v777 = vrot.slane %v770, %v776
    %v779 = vunpack.c.l.s4 1966171168
    %v780 = vunpack.c.0.s8 %v779
    %v781 = vlaneseq
    %v782 = vshrl.u32 %v781, 7
    %v783 = vsub.s32 %v780, %v782
    %v784 = vrot.slane %v777, %v783
    %785 = vrot.lane.b32.xlu0 %v784, 17
    %v786 = vpop.permute.xlu0 %785
    %v787 = vrot.slane %v786, 7
    %v788 = vsel %vm88, %v787, %v786
    %s790 = scalar_lea.vmem [#allocation3], 2
    %791 = vst.msk [vmem:[%s790] ss:$4 sm:$0x7] %vm742, %v788
    %v794 = vcombine.low %v715, %v716
    %v796 = vunpack.c.l.s4 1966171168
    %v797 = vunpack.c.0.s8 %v796
    %v798 = vlaneseq
    %v799 = vshrl.u32 %v798, 7
    %v800 = vsub.s32 %v797, %v799
    %v801 = vrot.slane %v794, %v800
    %v803 = vunpack.c.l.s4 1966171168
    %v804 = vunpack.c.0.s8 %v803
    %v805 = vlaneseq
    %v806 = vshrl.u32 %v805, 7
    %v807 = vsub.s32 %v804, %v806
    %v808 = vrot.slane %v801, %v807
    %809 = vrot.lane.b32.xlu0 %v808, 17
    %v810 = vpop.permute.xlu0 %809
    %v811 = vrot.slane %v810, 7
    %v812 = vsel %vm88, %v811, %v810
    %s814 = scalar_lea.vmem [#allocation3], 3
    %815 = vst.msk [vmem:[%s814] ss:$4 sm:$0x7] %vm742, %v812
    %v816 = vld [vmem:[#allocation3] sm:$0xff]
    %v818 = vcombine.high %v816, %v816
    %v820 = vsel %vm73, %v816, 0.0
    %v821 = vsel %vm74, %v818, 0.0
    %v822 = vld [vmem:[%s3] sm:$0xf]
    %824 = vset.pattern.permute.xlu0 0
    %825 = vperm.xlu0 %824, %v822
    %v826 = vpop.permute.xlu0 %825
    %v828 = vmul.f32 %v826, %v820
    %v829 = vmul.f32 %v826, %v821
    %v830 = vadd.f32 %v828, 0.0
    %v831 = vadd.f32 %v829, 0.0
    %s832 = scalar_lea.vmem %s3, 4
    %v833 = vld [vmem:[%s832] sm:$0xf]
    %835 = vset.pattern.permute.xlu0 0
    %836 = vperm.xlu0 %835, %v833
    %v837 = vpop.permute.xlu0 %836
    %v839 = vmul.f32 %v837, %v820
    %v840 = vmul.f32 %v837, %v821
    %v841 = vadd.f32 %v839, 0.0
    %v842 = vadd.f32 %v840, 0.0
    %s843 = scalar_lea.vmem %s3, 8
    %v844 = vld [vmem:[%s843] sm:$0xf]
    %846 = vset.pattern.permute.xlu0 0
    %847 = vperm.xlu0 %846, %v844
    %v848 = vpop.permute.xlu0 %847
    %v850 = vmul.f32 %v848, %v820
    %v851 = vmul.f32 %v848, %v821
    %v852 = vadd.f32 %v850, 0.0
    %v853 = vadd.f32 %v851, 0.0
    %s854 = scalar_lea.vmem %s3, 12
    %v855 = vld [vmem:[%s854] sm:$0xf]
    %857 = vset.pattern.permute.xlu0 0
    %858 = vperm.xlu0 %857, %v855
    %v859 = vpop.permute.xlu0 %858
    %v861 = vmul.f32 %v859, %v820
    %v862 = vmul.f32 %v859, %v821
    %v863 = vadd.f32 %v861, 0.0
    %v864 = vadd.f32 %v862, 0.0
    %v865 = vld [vmem:[#allocation3] sm:$0xff]
    %v866 = vld [vmem:[#allocation3 + $0x8] sm:$0xf]
    %s867 = scalar_lea.vmem %s3, 16
    %v868 = vld [vmem:[%s867] sm:$0xf]
    %870 = vset.pattern.permute.xlu0 0
    %871 = vperm.xlu0 %870, %v868
    %v872 = vpop.permute.xlu0 %871
    %v876 = vcombine.high %v865, %v865
    %877 = vrot.lane.b32.xlu0 %v865, 127
    %v878 = vpop.permute.xlu0 %877
    %879 = vrot.lane.b32.xlu0 %v876, 127
    %v880 = vpop.permute.xlu0 %879
    %881 = vrot.lane.b32.xlu0 %v866, 127
    %v882 = vpop.permute.xlu0 %881
    %v883 = vsel %vm164, %v878, %v880
    %v884 = vsel %vm164, %v880, %v882
    %v887 = vmul.f32 %v872, %v883
    %v888 = vmul.f32 %v872, %v884
    %v889 = vadd.f32 %v830, %v887
    %v890 = vadd.f32 %v831, %v888
    %s891 = scalar_lea.vmem %s3, 20
    %v892 = vld [vmem:[%s891] sm:$0xf]
    %894 = vset.pattern.permute.xlu0 0
    %895 = vperm.xlu0 %894, %v892
    %v896 = vpop.permute.xlu0 %895
    %v898 = vmul.f32 %v896, %v883
    %v899 = vmul.f32 %v896, %v884
    %v900 = vadd.f32 %v841, %v898
    %v901 = vadd.f32 %v842, %v899
    %s902 = scalar_lea.vmem %s3, 24
    %v903 = vld [vmem:[%s902] sm:$0xf]
    %905 = vset.pattern.permute.xlu0 0
    %906 = vperm.xlu0 %905, %v903
    %v907 = vpop.permute.xlu0 %906
    %v909 = vmul.f32 %v907, %v883
    %v910 = vmul.f32 %v907, %v884
    %v911 = vadd.f32 %v852, %v909
    %v912 = vadd.f32 %v853, %v910
    %s913 = scalar_lea.vmem %s3, 28
    %v914 = vld [vmem:[%s913] sm:$0xf]
    %916 = vset.pattern.permute.xlu0 0
    %917 = vperm.xlu0 %916, %v914
    %v918 = vpop.permute.xlu0 %917
    %v920 = vmul.f32 %v918, %v883
    %v921 = vmul.f32 %v918, %v884
    %v922 = vadd.f32 %v863, %v920
    %v923 = vadd.f32 %v864, %v921
    %v924 = vld [vmem:[#allocation3] sm:$0xff]
    %v925 = vld [vmem:[#allocation3 + $0x8] sm:$0xf]
    %v928 = vcombine.high %v924, %v924
    %929 = vrot.lane.b32.xlu0 %v924, 126
    %v930 = vpop.permute.xlu0 %929
    %931 = vrot.lane.b32.xlu0 %v928, 126
    %v932 = vpop.permute.xlu0 %931
    %933 = vrot.lane.b32.xlu0 %v925, 126
    %v934 = vpop.permute.xlu0 %933
    %v935 = vsel %vm217, %v930, %v932
    %v936 = vsel %vm217, %v932, %v934
    %v939 = vsel %vm75, %v935, 0.0
    %v940 = vsel %vm76, %v936, 0.0
    %s941 = scalar_lea.vmem %s3, 32
    %v942 = vld [vmem:[%s941] sm:$0xf]
    %944 = vset.pattern.permute.xlu0 0
    %945 = vperm.xlu0 %944, %v942
    %v946 = vpop.permute.xlu0 %945
    %v948 = vmul.f32 %v946, %v939
    %v949 = vmul.f32 %v946, %v940
    %v950 = vadd.f32 %v889, %v948
    %v951 = vadd.f32 %v890, %v949
    %s952 = scalar_lea.vmem %s3, 36
    %v953 = vld [vmem:[%s952] sm:$0xf]
    %955 = vset.pattern.permute.xlu0 0
    %956 = vperm.xlu0 %955, %v953
    %v957 = vpop.permute.xlu0 %956
    %v959 = vmul.f32 %v957, %v939
    %v960 = vmul.f32 %v957, %v940
    %v961 = vadd.f32 %v900, %v959
    %v962 = vadd.f32 %v901, %v960
    %s963 = scalar_lea.vmem %s3, 40
    %v964 = vld [vmem:[%s963] sm:$0xf]
    %966 = vset.pattern.permute.xlu0 0
    %967 = vperm.xlu0 %966, %v964
    %v968 = vpop.permute.xlu0 %967
    %v970 = vmul.f32 %v968, %v939
    %v971 = vmul.f32 %v968, %v940
    %v972 = vadd.f32 %v911, %v970
    %v973 = vadd.f32 %v912, %v971
    %s974 = scalar_lea.vmem %s3, 44
    %v975 = vld [vmem:[%s974] sm:$0xf]
    %977 = vset.pattern.permute.xlu0 0
    %978 = vperm.xlu0 %977, %v975
    %v979 = vpop.permute.xlu0 %978
    %v981 = vmul.f32 %v979, %v939
    %v982 = vmul.f32 %v979, %v940
    %v983 = vadd.f32 %v922, %v981
    %v984 = vadd.f32 %v923, %v982
    %v985 = vld [vmem:[#allocation3] sm:$0xff]
    %v986 = vld [vmem:[#allocation3 + $0x8] sm:$0xf]
    %v989 = vcombine.high %v985, %v985
    %990 = vrot.lane.b32.xlu0 %v985, 112
    %v991 = vpop.permute.xlu0 %990
    %992 = vrot.lane.b32.xlu0 %v989, 112
    %v993 = vpop.permute.xlu0 %992
    %994 = vrot.lane.b32.xlu0 %v986, 112
    %v995 = vpop.permute.xlu0 %994
    %v996 = vsel %vm279, %v991, %v993
    %v997 = vsel %vm279, %v993, %v995
    %v1000 = vsel %vm73, %v996, 0.0
    %v1001 = vsel %vm74, %v997, 0.0
    %s1002 = scalar_lea.vmem %s3, 48
    %v1003 = vld [vmem:[%s1002] sm:$0xf]
    %1005 = vset.pattern.permute.xlu0 0
    %1006 = vperm.xlu0 %1005, %v1003
    %v1007 = vpop.permute.xlu0 %1006
    %v1009 = vmul.f32 %v1007, %v1000
    %v1010 = vmul.f32 %v1007, %v1001
    %v1011 = vadd.f32 %v950, %v1009
    %v1012 = vadd.f32 %v951, %v1010
    %s1013 = scalar_lea.vmem %s3, 52
    %v1014 = vld [vmem:[%s1013] sm:$0xf]
    %1016 = vset.pattern.permute.xlu0 0
    %1017 = vperm.xlu0 %1016, %v1014
    %v1018 = vpop.permute.xlu0 %1017
    %v1020 = vmul.f32 %v1018, %v1000
    %v1021 = vmul.f32 %v1018, %v1001
    %v1022 = vadd.f32 %v961, %v1020
    %v1023 = vadd.f32 %v962, %v1021
    %s1024 = scalar_lea.vmem %s3, 56
    %v1025 = vld [vmem:[%s1024] sm:$0xf]
    %1027 = vset.pattern.permute.xlu0 0
    %1028 = vperm.xlu0 %1027, %v1025
    %v1029 = vpop.permute.xlu0 %1028
    %v1031 = vmul.f32 %v1029, %v1000
    %v1032 = vmul.f32 %v1029, %v1001
    %v1033 = vadd.f32 %v972, %v1031
    %v1034 = vadd.f32 %v973, %v1032
    %s1035 = scalar_lea.vmem %s3, 60
    %v1036 = vld [vmem:[%s1035] sm:$0xf]
    %1038 = vset.pattern.permute.xlu0 0
    %1039 = vperm.xlu0 %1038, %v1036
    %v1040 = vpop.permute.xlu0 %1039
    %v1042 = vmul.f32 %v1040, %v1000
    %v1043 = vmul.f32 %v1040, %v1001
    %v1044 = vadd.f32 %v983, %v1042
    %v1045 = vadd.f32 %v984, %v1043
    %v1046 = vld [vmem:[#allocation3] sm:$0xff]
    %v1047 = vld [vmem:[#allocation3 + $0x8] sm:$0xf]
    %s1048 = scalar_lea.vmem %s3, 64
    %v1049 = vld [vmem:[%s1048] sm:$0xf]
    %1051 = vset.pattern.permute.xlu0 0
    %1052 = vperm.xlu0 %1051, %v1049
    %v1053 = vpop.permute.xlu0 %1052
    %v1057 = vcombine.high %v1046, %v1046
    %1058 = vrot.lane.b32.xlu0 %v1046, 111
    %v1059 = vpop.permute.xlu0 %1058
    %1060 = vrot.lane.b32.xlu0 %v1057, 111
    %v1061 = vpop.permute.xlu0 %1060
    %1062 = vrot.lane.b32.xlu0 %v1047, 111
    %v1063 = vpop.permute.xlu0 %1062
    %v1064 = vsel %vm348, %v1059, %v1061
    %v1065 = vsel %vm348, %v1061, %v1063
    %v1068 = vmul.f32 %v1053, %v1064
    %v1069 = vmul.f32 %v1053, %v1065
    %v1070 = vadd.f32 %v1011, %v1068
    %v1071 = vadd.f32 %v1012, %v1069
    %s1072 = scalar_lea.vmem %s3, 68
    %v1073 = vld [vmem:[%s1072] sm:$0xf]
    %1075 = vset.pattern.permute.xlu0 0
    %1076 = vperm.xlu0 %1075, %v1073
    %v1077 = vpop.permute.xlu0 %1076
    %v1079 = vmul.f32 %v1077, %v1064
    %v1080 = vmul.f32 %v1077, %v1065
    %v1081 = vadd.f32 %v1022, %v1079
    %v1082 = vadd.f32 %v1023, %v1080
    %s1083 = scalar_lea.vmem %s3, 72
    %v1084 = vld [vmem:[%s1083] sm:$0xf]
    %1086 = vset.pattern.permute.xlu0 0
    %1087 = vperm.xlu0 %1086, %v1084
    %v1088 = vpop.permute.xlu0 %1087
    %v1090 = vmul.f32 %v1088, %v1064
    %v1091 = vmul.f32 %v1088, %v1065
    %v1092 = vadd.f32 %v1033, %v1090
    %v1093 = vadd.f32 %v1034, %v1091
    %s1094 = scalar_lea.vmem %s3, 76
    %v1095 = vld [vmem:[%s1094] sm:$0xf]
    %1097 = vset.pattern.permute.xlu0 0
    %1098 = vperm.xlu0 %1097, %v1095
    %v1099 = vpop.permute.xlu0 %1098
    %v1101 = vmul.f32 %v1099, %v1064
    %v1102 = vmul.f32 %v1099, %v1065
    %v1103 = vadd.f32 %v1044, %v1101
    %v1104 = vadd.f32 %v1045, %v1102
    %v1105 = vld [vmem:[#allocation3] sm:$0xff]
    %v1106 = vld [vmem:[#allocation3 + $0x8] sm:$0xf]
    %v1109 = vcombine.high %v1105, %v1105
    %1110 = vrot.lane.b32.xlu0 %v1105, 110
    %v1111 = vpop.permute.xlu0 %1110
    %1112 = vrot.lane.b32.xlu0 %v1109, 110
    %v1113 = vpop.permute.xlu0 %1112
    %1114 = vrot.lane.b32.xlu0 %v1106, 110
    %v1115 = vpop.permute.xlu0 %1114
    %v1116 = vsel %vm401, %v1111, %v1113
    %v1117 = vsel %vm401, %v1113, %v1115
    %v1120 = vsel %vm75, %v1116, 0.0
    %v1121 = vsel %vm76, %v1117, 0.0
    %s1122 = scalar_lea.vmem %s3, 80
    %v1123 = vld [vmem:[%s1122] sm:$0xf]
    %1125 = vset.pattern.permute.xlu0 0
    %1126 = vperm.xlu0 %1125, %v1123
    %v1127 = vpop.permute.xlu0 %1126
    %v1129 = vmul.f32 %v1127, %v1120
    %v1130 = vmul.f32 %v1127, %v1121
    %v1131 = vadd.f32 %v1070, %v1129
    %v1132 = vadd.f32 %v1071, %v1130
    %s1133 = scalar_lea.vmem %s3, 84
    %v1134 = vld [vmem:[%s1133] sm:$0xf]
    %1136 = vset.pattern.permute.xlu0 0
    %1137 = vperm.xlu0 %1136, %v1134
    %v1138 = vpop.permute.xlu0 %1137
    %v1140 = vmul.f32 %v1138, %v1120
    %v1141 = vmul.f32 %v1138, %v1121
    %v1142 = vadd.f32 %v1081, %v1140
    %v1143 = vadd.f32 %v1082, %v1141
    %s1144 = scalar_lea.vmem %s3, 88
    %v1145 = vld [vmem:[%s1144] sm:$0xf]
    %1147 = vset.pattern.permute.xlu0 0
    %1148 = vperm.xlu0 %1147, %v1145
    %v1149 = vpop.permute.xlu0 %1148
    %v1151 = vmul.f32 %v1149, %v1120
    %v1152 = vmul.f32 %v1149, %v1121
    %v1153 = vadd.f32 %v1092, %v1151
    %v1154 = vadd.f32 %v1093, %v1152
    %s1155 = scalar_lea.vmem %s3, 92
    %v1156 = vld [vmem:[%s1155] sm:$0xf]
    %1158 = vset.pattern.permute.xlu0 0
    %1159 = vperm.xlu0 %1158, %v1156
    %v1160 = vpop.permute.xlu0 %1159
    %v1162 = vmul.f32 %v1160, %v1120
    %v1163 = vmul.f32 %v1160, %v1121
    %v1164 = vadd.f32 %v1103, %v1162
    %v1165 = vadd.f32 %v1104, %v1163
    %v1166 = vld [vmem:[#allocation3] sm:$0xff]
    %v1167 = vld [vmem:[#allocation3 + $0x8] sm:$0xf]
    %v1170 = vcombine.high %v1166, %v1166
    %1171 = vrot.lane.b32.xlu0 %v1166, 96
    %v1172 = vpop.permute.xlu0 %1171
    %1173 = vrot.lane.b32.xlu0 %v1170, 96
    %v1174 = vpop.permute.xlu0 %1173
    %1175 = vrot.lane.b32.xlu0 %v1167, 96
    %v1176 = vpop.permute.xlu0 %1175
    %v1177 = vsel %vm463, %v1172, %v1174
    %v1178 = vsel %vm463, %v1174, %v1176
    %v1181 = vsel %vm73, %v1177, 0.0
    %v1182 = vsel %vm74, %v1178, 0.0
    %s1183 = scalar_lea.vmem %s3, 96
    %v1184 = vld [vmem:[%s1183] sm:$0xf]
    %1186 = vset.pattern.permute.xlu0 0
    %1187 = vperm.xlu0 %1186, %v1184
    %v1188 = vpop.permute.xlu0 %1187
    %v1190 = vmul.f32 %v1188, %v1181
    %v1191 = vmul.f32 %v1188, %v1182
    %v1192 = vadd.f32 %v1131, %v1190
    %v1193 = vadd.f32 %v1132, %v1191
    %s1194 = scalar_lea.vmem %s3, 100
    %v1195 = vld [vmem:[%s1194] sm:$0xf]
    %1197 = vset.pattern.permute.xlu0 0
    %1198 = vperm.xlu0 %1197, %v1195
    %v1199 = vpop.permute.xlu0 %1198
    %v1201 = vmul.f32 %v1199, %v1181
    %v1202 = vmul.f32 %v1199, %v1182
    %v1203 = vadd.f32 %v1142, %v1201
    %v1204 = vadd.f32 %v1143, %v1202
    %s1205 = scalar_lea.vmem %s3, 104
    %v1206 = vld [vmem:[%s1205] sm:$0xf]
    %1208 = vset.pattern.permute.xlu0 0
    %1209 = vperm.xlu0 %1208, %v1206
    %v1210 = vpop.permute.xlu0 %1209
    %v1212 = vmul.f32 %v1210, %v1181
    %v1213 = vmul.f32 %v1210, %v1182
    %v1214 = vadd.f32 %v1153, %v1212
    %v1215 = vadd.f32 %v1154, %v1213
    %s1216 = scalar_lea.vmem %s3, 108
    %v1217 = vld [vmem:[%s1216] sm:$0xf]
    %1219 = vset.pattern.permute.xlu0 0
    %1220 = vperm.xlu0 %1219, %v1217
    %v1221 = vpop.permute.xlu0 %1220
    %v1223 = vmul.f32 %v1221, %v1181
    %v1224 = vmul.f32 %v1221, %v1182
    %v1225 = vadd.f32 %v1164, %v1223
    %v1226 = vadd.f32 %v1165, %v1224
    %v1227 = vld [vmem:[#allocation3] sm:$0xff]
    %v1228 = vld [vmem:[#allocation3 + $0x8] sm:$0xf]
    %s1229 = scalar_lea.vmem %s3, 112
    %v1230 = vld [vmem:[%s1229] sm:$0xf]
    %1232 = vset.pattern.permute.xlu0 0
    %1233 = vperm.xlu0 %1232, %v1230
    %v1234 = vpop.permute.xlu0 %1233
    %v1238 = vcombine.high %v1227, %v1227
    %1239 = vrot.lane.b32.xlu0 %v1227, 95
    %v1240 = vpop.permute.xlu0 %1239
    %1241 = vrot.lane.b32.xlu0 %v1238, 95
    %v1242 = vpop.permute.xlu0 %1241
    %1243 = vrot.lane.b32.xlu0 %v1228, 95
    %v1244 = vpop.permute.xlu0 %1243
    %v1245 = vsel %vm532, %v1240, %v1242
    %v1246 = vsel %vm532, %v1242, %v1244
    %v1249 = vmul.f32 %v1234, %v1245
    %v1250 = vmul.f32 %v1234, %v1246
    %v1251 = vadd.f32 %v1192, %v1249
    %v1252 = vadd.f32 %v1193, %v1250
    %s1253 = scalar_lea.vmem %s3, 116
    %v1254 = vld [vmem:[%s1253] sm:$0xf]
    %1256 = vset.pattern.permute.xlu0 0
    %1257 = vperm.xlu0 %1256, %v1254
    %v1258 = vpop.permute.xlu0 %1257
    %v1260 = vmul.f32 %v1258, %v1245
    %v1261 = vmul.f32 %v1258, %v1246
    %v1262 = vadd.f32 %v1203, %v1260
    %v1263 = vadd.f32 %v1204, %v1261
    %s1264 = scalar_lea.vmem %s3, 120
    %v1265 = vld [vmem:[%s1264] sm:$0xf]
    %1267 = vset.pattern.permute.xlu0 0
    %1268 = vperm.xlu0 %1267, %v1265
    %v1269 = vpop.permute.xlu0 %1268
    %v1271 = vmul.f32 %v1269, %v1245
    %v1272 = vmul.f32 %v1269, %v1246
    %v1273 = vadd.f32 %v1214, %v1271
    %v1274 = vadd.f32 %v1215, %v1272
    %s1275 = scalar_lea.vmem %s3, 124
    %v1276 = vld [vmem:[%s1275] sm:$0xf]
    %1278 = vset.pattern.permute.xlu0 0
    %1279 = vperm.xlu0 %1278, %v1276
    %v1280 = vpop.permute.xlu0 %1279
    %v1282 = vmul.f32 %v1280, %v1245
    %v1283 = vmul.f32 %v1280, %v1246
    %v1284 = vadd.f32 %v1225, %v1282
    %v1285 = vadd.f32 %v1226, %v1283
    %v1286 = vld [vmem:[#allocation3] sm:$0xff]
    %v1287 = vld [vmem:[#allocation3 + $0x8] sm:$0xf]
    %v1290 = vcombine.high %v1286, %v1286
    %1291 = vrot.lane.b32.xlu0 %v1286, 94
    %v1292 = vpop.permute.xlu0 %1291
    %1293 = vrot.lane.b32.xlu0 %v1290, 94
    %v1294 = vpop.permute.xlu0 %1293
    %1295 = vrot.lane.b32.xlu0 %v1287, 94
    %v1296 = vpop.permute.xlu0 %1295
    %v1297 = vsel %vm585, %v1292, %v1294
    %v1298 = vsel %vm585, %v1294, %v1296
    %v1301 = vsel %vm75, %v1297, 0.0
    %v1302 = vsel %vm76, %v1298, 0.0
    %s1303 = scalar_lea.vmem %s3, 128
    %v1304 = vld [vmem:[%s1303] sm:$0xf]
    %1306 = vset.pattern.permute.xlu0 0
    %1307 = vperm.xlu0 %1306, %v1304
    %v1308 = vpop.permute.xlu0 %1307
    %v1310 = vmul.f32 %v1308, %v1301
    %v1311 = vmul.f32 %v1308, %v1302
    %v1312 = vadd.f32 %v1251, %v1310
    %v1313 = vadd.f32 %v1252, %v1311
    %s1314 = scalar_lea.vmem %s3, 132
    %v1315 = vld [vmem:[%s1314] sm:$0xf]
    %1317 = vset.pattern.permute.xlu0 0
    %1318 = vperm.xlu0 %1317, %v1315
    %v1319 = vpop.permute.xlu0 %1318
    %v1321 = vmul.f32 %v1319, %v1301
    %v1322 = vmul.f32 %v1319, %v1302
    %v1323 = vadd.f32 %v1262, %v1321
    %v1324 = vadd.f32 %v1263, %v1322
    %s1325 = scalar_lea.vmem %s3, 136
    %v1326 = vld [vmem:[%s1325] sm:$0xf]
    %1328 = vset.pattern.permute.xlu0 0
    %1329 = vperm.xlu0 %1328, %v1326
    %v1330 = vpop.permute.xlu0 %1329
    %v1332 = vmul.f32 %v1330, %v1301
    %v1333 = vmul.f32 %v1330, %v1302
    %v1334 = vadd.f32 %v1273, %v1332
    %v1335 = vadd.f32 %v1274, %v1333
    %s1336 = scalar_lea.vmem %s3, 140
    %v1337 = vld [vmem:[%s1336] sm:$0xf]
    %1339 = vset.pattern.permute.xlu0 0
    %1340 = vperm.xlu0 %1339, %v1337
    %v1341 = vpop.permute.xlu0 %1340
    %v1343 = vmul.f32 %v1341, %v1301
    %v1344 = vmul.f32 %v1341, %v1302
    %v1345 = vadd.f32 %v1284, %v1343
    %v1346 = vadd.f32 %v1285, %v1344
    %v1347 = vsel %vm636, %v1312, 0.0
    %v1348 = vrot.slane %v1347, 4
    %v1349 = vadd.f32 %v1347, %v1348
    %v1350 = vrot.slane %v1349, 2
    %v1351 = vadd.f32 %v1349, %v1350
    %v1352 = vrot.slane %v1351, 1
    %v1353 = vadd.f32 %v1351, %v1352
    %v1354 = vsel %vm636, %v1313, 0.0
    %v1355 = vrot.slane %v1354, 4
    %v1356 = vadd.f32 %v1354, %v1355
    %v1357 = vrot.slane %v1356, 2
    %v1358 = vadd.f32 %v1356, %v1357
    %v1359 = vrot.slane %v1358, 1
    %v1360 = vadd.f32 %v1358, %v1359
    %s1361 = sld [smem:[#allocation7]]
    %v1362 = vstv %s1361
    %v1363 = vadd.f32 %v1353, %v1362
    %v1364 = vadd.f32 %v1360, %v1362
    %v1365 = vsel %vm636, %v1323, 0.0
    %v1366 = vrot.slane %v1365, 4
    %v1367 = vadd.f32 %v1365, %v1366
    %v1368 = vrot.slane %v1367, 2
    %v1369 = vadd.f32 %v1367, %v1368
    %v1370 = vrot.slane %v1369, 1
    %v1371 = vadd.f32 %v1369, %v1370
    %v1372 = vsel %vm636, %v1324, 0.0
    %v1373 = vrot.slane %v1372, 4
    %v1374 = vadd.f32 %v1372, %v1373
    %v1375 = vrot.slane %v1374, 2
    %v1376 = vadd.f32 %v1374, %v1375
    %v1377 = vrot.slane %v1376, 1
    %v1378 = vadd.f32 %v1376, %v1377
    %s1379 = sld [smem:[#allocation7 + $0x1]]
    %v1380 = vstv %s1379
    %v1381 = vadd.f32 %v1371, %v1380
    %v1382 = vadd.f32 %v1378, %v1380
    %v1383 = vsel %vm636, %v1334, 0.0
    %v1384 = vrot.slane %v1383, 4
    %v1385 = vadd.f32 %v1383, %v1384
    %v1386 = vrot.slane %v1385, 2
    %v1387 = vadd.f32 %v1385, %v1386
    %v1388 = vrot.slane %v1387, 1
    %v1389 = vadd.f32 %v1387, %v1388
    %v1390 = vsel %vm636, %v1335, 0.0
    %v1391 = vrot.slane %v1390, 4
    %v1392 = vadd.f32 %v1390, %v1391
    %v1393 = vrot.slane %v1392, 2
    %v1394 = vadd.f32 %v1392, %v1393
    %v1395 = vrot.slane %v1394, 1
    %v1396 = vadd.f32 %v1394, %v1395
    %s1397 = sld [smem:[#allocation7 + $0x2]]
    %v1398 = vstv %s1397
    %v1399 = vadd.f32 %v1389, %v1398
    %v1400 = vadd.f32 %v1396, %v1398
    %v1401 = vsel %vm636, %v1345, 0.0
    %v1402 = vrot.slane %v1401, 4
    %v1403 = vadd.f32 %v1401, %v1402
    %v1404 = vrot.slane %v1403, 2
    %v1405 = vadd.f32 %v1403, %v1404
    %v1406 = vrot.slane %v1405, 1
    %v1407 = vadd.f32 %v1405, %v1406
    %v1408 = vsel %vm636, %v1346, 0.0
    %v1409 = vrot.slane %v1408, 4
    %v1410 = vadd.f32 %v1408, %v1409
    %v1411 = vrot.slane %v1410, 2
    %v1412 = vadd.f32 %v1410, %v1411
    %v1413 = vrot.slane %v1412, 1
    %v1414 = vadd.f32 %v1412, %v1413
    %s1415 = sld [smem:[#allocation7 + $0x3]]
    %v1416 = vstv %s1415
    %v1417 = vadd.f32 %v1407, %v1416
    %v1418 = vadd.f32 %v1414, %v1416
    %v1419 = vld [vmem:[#allocation2] ss:$4 sm:$0x7]
    %v1421 = vlaneseq
    %v1422 = vshrl.u32 %v1421, 7
    %v1423 = vsub.s32 0, %v1422
    %v1424 = vrot.slane %v1419, %v1423
    %v1425 = vlaneseq
    %v1426 = vshrl.u32 %v1425, 7
    %v1427 = vsub.s32 1, %v1426
    %v1428 = vrot.slane %v1419, %v1427
    %v1429 = vlaneseq
    %v1430 = vshrl.u32 %v1429, 7
    %v1431 = vsub.s32 2, %v1430
    %v1432 = vrot.slane %v1419, %v1431
    %1433 = vrot.lane.b32.xlu0 %v1424, 111
    %v1434 = vpop.permute.xlu0 %1433
    %1435 = vrot.lane.b32.xlu0 %v1428, 111
    %v1436 = vpop.permute.xlu0 %1435
    %1437 = vrot.lane.b32.xlu0 %v1432, 111
    %v1438 = vpop.permute.xlu0 %1437
    %v1439 = vsel %vm348, %v1434, %v1436
    %v1440 = vsel %vm348, %v1436, %v1438
    %v1443 = vadd.f32 %v1363, %v1439
    %v1444 = vadd.f32 %v1364, %v1440
    %v1447 = vcombine.low %v1443, %v1444
    %v1449 = vunpack.c.l.s4 1966171168
    %v1450 = vunpack.c.0.s8 %v1449
    %v1451 = vlaneseq
    %v1452 = vshrl.u32 %v1451, 7
    %v1453 = vsub.s32 %v1450, %v1452
    %v1454 = vrot.slane %v1447, %v1453
    %v1456 = vunpack.c.l.s4 1966171168
    %v1457 = vunpack.c.0.s8 %v1456
    %v1458 = vlaneseq
    %v1459 = vshrl.u32 %v1458, 7
    %v1460 = vsub.s32 %v1457, %v1459
    %v1461 = vrot.slane %v1454, %v1460
    %vm1463 = vcmp.ge.s32.totalorder %v739, 0
    %vm1464 = vcmp.lt.s32.totalorder %v739, 256
    %vm1465 = vmand %vm1463, %vm1464
    %1466 = vst.msk [vmem:[#allocation9] ss:$4 sm:$0x3] %vm1465, %v1461
    %s1467 = scalar_lea.vmem [#allocation2], 1
    %v1468 = vld [vmem:[%s1467] ss:$4 sm:$0x7]
    %v1470 = vlaneseq
    %v1471 = vshrl.u32 %v1470, 7
    %v1472 = vsub.s32 0, %v1471
    %v1473 = vrot.slane %v1468, %v1472
    %v1474 = vlaneseq
    %v1475 = vshrl.u32 %v1474, 7
    %v1476 = vsub.s32 1, %v1475
    %v1477 = vrot.slane %v1468, %v1476
    %v1478 = vlaneseq
    %v1479 = vshrl.u32 %v1478, 7
    %v1480 = vsub.s32 2, %v1479
    %v1481 = vrot.slane %v1468, %v1480
    %1482 = vrot.lane.b32.xlu0 %v1473, 111
    %v1483 = vpop.permute.xlu0 %1482
    %1484 = vrot.lane.b32.xlu0 %v1477, 111
    %v1485 = vpop.permute.xlu0 %1484
    %1486 = vrot.lane.b32.xlu0 %v1481, 111
    %v1487 = vpop.permute.xlu0 %1486
    %v1488 = vsel %vm348, %v1483, %v1485
    %v1489 = vsel %vm348, %v1485, %v1487
    %v1492 = vadd.f32 %v1381, %v1488
    %v1493 = vadd.f32 %v1382, %v1489
    %v1496 = vcombine.low %v1492, %v1493
    %v1498 = vunpack.c.l.s4 1966171168
    %v1499 = vunpack.c.0.s8 %v1498
    %v1500 = vlaneseq
    %v1501 = vshrl.u32 %v1500, 7
    %v1502 = vsub.s32 %v1499, %v1501
    %v1503 = vrot.slane %v1496, %v1502
    %v1505 = vunpack.c.l.s4 1966171168
    %v1506 = vunpack.c.0.s8 %v1505
    %v1507 = vlaneseq
    %v1508 = vshrl.u32 %v1507, 7
    %v1509 = vsub.s32 %v1506, %v1508
    %v1510 = vrot.slane %v1503, %v1509
    %s1512 = scalar_lea.vmem [#allocation9], 1
    %1513 = vst.msk [vmem:[%s1512] ss:$4 sm:$0x3] %vm1465, %v1510
    %s1514 = scalar_lea.vmem [#allocation2], 2
    %v1515 = vld [vmem:[%s1514] ss:$4 sm:$0x7]
    %v1517 = vlaneseq
    %v1518 = vshrl.u32 %v1517, 7
    %v1519 = vsub.s32 0, %v1518
    %v1520 = vrot.slane %v1515, %v1519
    %v1521 = vlaneseq
    %v1522 = vshrl.u32 %v1521, 7
    %v1523 = vsub.s32 1, %v1522
    %v1524 = vrot.slane %v1515, %v1523
    %v1525 = vlaneseq
    %v1526 = vshrl.u32 %v1525, 7
    %v1527 = vsub.s32 2, %v1526
    %v1528 = vrot.slane %v1515, %v1527
    %1529 = vrot.lane.b32.xlu0 %v1520, 111
    %v1530 = vpop.permute.xlu0 %1529
    %1531 = vrot.lane.b32.xlu0 %v1524, 111
    %v1532 = vpop.permute.xlu0 %1531
    %1533 = vrot.lane.b32.xlu0 %v1528, 111
    %v1534 = vpop.permute.xlu0 %1533
    %v1535 = vsel %vm348, %v1530, %v1532
    %v1536 = vsel %vm348, %v1532, %v1534
    %v1539 = vadd.f32 %v1399, %v1535
    %v1540 = vadd.f32 %v1400, %v1536
    %v1543 = vcombine.low %v1539, %v1540
    %v1545 = vunpack.c.l.s4 1966171168
    %v1546 = vunpack.c.0.s8 %v1545
    %v1547 = vlaneseq
    %v1548 = vshrl.u32 %v1547, 7
    %v1549 = vsub.s32 %v1546, %v1548
    %v1550 = vrot.slane %v1543, %v1549
    %v1552 = vunpack.c.l.s4 1966171168
    %v1553 = vunpack.c.0.s8 %v1552
    %v1554 = vlaneseq
    %v1555 = vshrl.u32 %v1554, 7
    %v1556 = vsub.s32 %v1553, %v1555
    %v1557 = vrot.slane %v1550, %v1556
    %s1559 = scalar_lea.vmem [#allocation9], 2
    %1560 = vst.msk [vmem:[%s1559] ss:$4 sm:$0x3] %vm1465, %v1557
    %s1561 = scalar_lea.vmem [#allocation2], 3
    %v1562 = vld [vmem:[%s1561] ss:$4 sm:$0x7]
    %v1564 = vlaneseq
    %v1565 = vshrl.u32 %v1564, 7
    %v1566 = vsub.s32 0, %v1565
    %v1567 = vrot.slane %v1562, %v1566
    %v1568 = vlaneseq
    %v1569 = vshrl.u32 %v1568, 7
    %v1570 = vsub.s32 1, %v1569
    %v1571 = vrot.slane %v1562, %v1570
    %v1572 = vlaneseq
    %v1573 = vshrl.u32 %v1572, 7
    %v1574 = vsub.s32 2, %v1573
    %v1575 = vrot.slane %v1562, %v1574
    %1576 = vrot.lane.b32.xlu0 %v1567, 111
    %v1577 = vpop.permute.xlu0 %1576
    %1578 = vrot.lane.b32.xlu0 %v1571, 111
    %v1579 = vpop.permute.xlu0 %1578
    %1580 = vrot.lane.b32.xlu0 %v1575, 111
    %v1581 = vpop.permute.xlu0 %1580
    %v1582 = vsel %vm348, %v1577, %v1579
    %v1583 = vsel %vm348, %v1579, %v1581
    %v1586 = vadd.f32 %v1417, %v1582
    %v1587 = vadd.f32 %v1418, %v1583
    %v1590 = vcombine.low %v1586, %v1587
    %v1592 = vunpack.c.l.s4 1966171168
    %v1593 = vunpack.c.0.s8 %v1592
    %v1594 = vlaneseq
    %v1595 = vshrl.u32 %v1594, 7
    %v1596 = vsub.s32 %v1593, %v1595
    %v1597 = vrot.slane %v1590, %v1596
    %v1599 = vunpack.c.l.s4 1966171168
    %v1600 = vunpack.c.0.s8 %v1599
    %v1601 = vlaneseq
    %v1602 = vshrl.u32 %v1601, 7
    %v1603 = vsub.s32 %v1600, %v1602
    %v1604 = vrot.slane %v1597, %v1603
    %s1606 = scalar_lea.vmem [#allocation9], 3
    %1607 = vst.msk [vmem:[%s1606] ss:$4 sm:$0x3] %vm1465, %v1604
    %s1608 = scalar_lea.vmem %s0, 8
    %v1609 = vld [vmem:[%s1608] sm:$0xff]
    %1611 = vrot.lane.b32.xlu0 %v1609, 17
    %v1612 = vpop.permute.xlu0 %1611
    %v1613 = vrot.slane %v1612, 4
    %v1614 = vsel %vm88, %v1613, %v1612
    %1617 = vst.msk [vmem:[#allocation2] sm:$0xff] %vm94, %v1614
    %1618 = vst.msk [vmem:[#allocation2 + $0x8] sm:$0xf] %vm77, %v1613
    %v1619 = vld [vmem:[#allocation2] sm:$0xff]
    %v1621 = vcombine.high %v1619, %v1619
    %v1623 = vsel %vm73, %v1619, 0.0
    %v1624 = vsel %vm74, %v1621, 0.0
    %v1625 = vld [vmem:[%s1] sm:$0xf]
    %1627 = vset.pattern.permute.xlu0 0
    %1628 = vperm.xlu0 %1627, %v1625
    %v1629 = vpop.permute.xlu0 %1628
    %v1631 = vmul.f32 %v1629, %v1623
    %v1632 = vmul.f32 %v1629, %v1624
    %v1633 = vadd.f32 %v1631, 0.0
    %v1634 = vadd.f32 %v1632, 0.0
    %v1635 = vld [vmem:[%s113] sm:$0xf]
    %1637 = vset.pattern.permute.xlu0 0
    %1638 = vperm.xlu0 %1637, %v1635
    %v1639 = vpop.permute.xlu0 %1638
    %v1641 = vmul.f32 %v1639, %v1623
    %v1642 = vmul.f32 %v1639, %v1624
    %v1643 = vadd.f32 %v1641, 0.0
    %v1644 = vadd.f32 %v1642, 0.0
    %v1645 = vld [vmem:[%s124] sm:$0xf]
    %1647 = vset.pattern.permute.xlu0 0
    %1648 = vperm.xlu0 %1647, %v1645
    %v1649 = vpop.permute.xlu0 %1648
    %v1651 = vmul.f32 %v1649, %v1623
    %v1652 = vmul.f32 %v1649, %v1624
    %v1653 = vadd.f32 %v1651, 0.0
    %v1654 = vadd.f32 %v1652, 0.0
    %v1655 = vld [vmem:[%s135] sm:$0xf]
    %1657 = vset.pattern.permute.xlu0 0
    %1658 = vperm.xlu0 %1657, %v1655
    %v1659 = vpop.permute.xlu0 %1658
    %v1661 = vmul.f32 %v1659, %v1623
    %v1662 = vmul.f32 %v1659, %v1624
    %v1663 = vadd.f32 %v1661, 0.0
    %v1664 = vadd.f32 %v1662, 0.0
    %v1665 = vld [vmem:[#allocation2] sm:$0xff]
    %v1666 = vld [vmem:[#allocation2 + $0x8] sm:$0xf]
    %v1667 = vld [vmem:[%s148] sm:$0xf]
    %1669 = vset.pattern.permute.xlu0 0
    %1670 = vperm.xlu0 %1669, %v1667
    %v1671 = vpop.permute.xlu0 %1670
    %v1675 = vcombine.high %v1665, %v1665
    %1676 = vrot.lane.b32.xlu0 %v1665, 127
    %v1677 = vpop.permute.xlu0 %1676
    %1678 = vrot.lane.b32.xlu0 %v1675, 127
    %v1679 = vpop.permute.xlu0 %1678
    %1680 = vrot.lane.b32.xlu0 %v1666, 127
    %v1681 = vpop.permute.xlu0 %1680
    %v1682 = vsel %vm164, %v1677, %v1679
    %v1683 = vsel %vm164, %v1679, %v1681
    %v1686 = vmul.f32 %v1671, %v1682
    %v1687 = vmul.f32 %v1671, %v1683
    %v1688 = vadd.f32 %v1633, %v1686
    %v1689 = vadd.f32 %v1634, %v1687
    %v1690 = vld [vmem:[%s173] sm:$0xf]
    %1692 = vset.pattern.permute.xlu0 0
    %1693 = vperm.xlu0 %1692, %v1690
    %v1694 = vpop.permute.xlu0 %1693
    %v1696 = vmul.f32 %v1694, %v1682
    %v1697 = vmul.f32 %v1694, %v1683
    %v1698 = vadd.f32 %v1643, %v1696
    %v1699 = vadd.f32 %v1644, %v1697
    %v1700 = vld [vmem:[%s184] sm:$0xf]
    %1702 = vset.pattern.permute.xlu0 0
    %1703 = vperm.xlu0 %1702, %v1700
    %v1704 = vpop.permute.xlu0 %1703
    %v1706 = vmul.f32 %v1704, %v1682
    %v1707 = vmul.f32 %v1704, %v1683
    %v1708 = vadd.f32 %v1653, %v1706
    %v1709 = vadd.f32 %v1654, %v1707
    %v1710 = vld [vmem:[%s195] sm:$0xf]
    %1712 = vset.pattern.permute.xlu0 0
    %1713 = vperm.xlu0 %1712, %v1710
    %v1714 = vpop.permute.xlu0 %1713
    %v1716 = vmul.f32 %v1714, %v1682
    %v1717 = vmul.f32 %v1714, %v1683
    %v1718 = vadd.f32 %v1663, %v1716
    %v1719 = vadd.f32 %v1664, %v1717
    %v1720 = vld [vmem:[#allocation2] sm:$0xff]
    %v1721 = vld [vmem:[#allocation2 + $0x8] sm:$0xf]
    %v1724 = vcombine.high %v1720, %v1720
    %1725 = vrot.lane.b32.xlu0 %v1720, 126
    %v1726 = vpop.permute.xlu0 %1725
    %1727 = vrot.lane.b32.xlu0 %v1724, 126
    %v1728 = vpop.permute.xlu0 %1727
    %1729 = vrot.lane.b32.xlu0 %v1721, 126
    %v1730 = vpop.permute.xlu0 %1729
    %v1731 = vsel %vm217, %v1726, %v1728
    %v1732 = vsel %vm217, %v1728, %v1730
    %v1735 = vsel %vm75, %v1731, 0.0
    %v1736 = vsel %vm76, %v1732, 0.0
    %v1737 = vld [vmem:[%s224] sm:$0xf]
    %1739 = vset.pattern.permute.xlu0 0
    %1740 = vperm.xlu0 %1739, %v1737
    %v1741 = vpop.permute.xlu0 %1740
    %v1743 = vmul.f32 %v1741, %v1735
    %v1744 = vmul.f32 %v1741, %v1736
    %v1745 = vadd.f32 %v1688, %v1743
    %v1746 = vadd.f32 %v1689, %v1744
    %v1747 = vld [vmem:[%s235] sm:$0xf]
    %1749 = vset.pattern.permute.xlu0 0
    %1750 = vperm.xlu0 %1749, %v1747
    %v1751 = vpop.permute.xlu0 %1750
    %v1753 = vmul.f32 %v1751, %v1735
    %v1754 = vmul.f32 %v1751, %v1736
    %v1755 = vadd.f32 %v1698, %v1753
    %v1756 = vadd.f32 %v1699, %v1754
    %v1757 = vld [vmem:[%s246] sm:$0xf]
    %1759 = vset.pattern.permute.xlu0 0
    %1760 = vperm.xlu0 %1759, %v1757
    %v1761 = vpop.permute.xlu0 %1760
    %v1763 = vmul.f32 %v1761, %v1735
    %v1764 = vmul.f32 %v1761, %v1736
    %v1765 = vadd.f32 %v1708, %v1763
    %v1766 = vadd.f32 %v1709, %v1764
    %v1767 = vld [vmem:[%s257] sm:$0xf]
    %1769 = vset.pattern.permute.xlu0 0
    %1770 = vperm.xlu0 %1769, %v1767
    %v1771 = vpop.permute.xlu0 %1770
    %v1773 = vmul.f32 %v1771, %v1735
    %v1774 = vmul.f32 %v1771, %v1736
    %v1775 = vadd.f32 %v1718, %v1773
    %v1776 = vadd.f32 %v1719, %v1774
    %v1777 = vld [vmem:[#allocation2] sm:$0xff]
    %v1778 = vld [vmem:[#allocation2 + $0x8] sm:$0xf]
    %v1781 = vcombine.high %v1777, %v1777
    %1782 = vrot.lane.b32.xlu0 %v1777, 112
    %v1783 = vpop.permute.xlu0 %1782
    %1784 = vrot.lane.b32.xlu0 %v1781, 112
    %v1785 = vpop.permute.xlu0 %1784
    %1786 = vrot.lane.b32.xlu0 %v1778, 112
    %v1787 = vpop.permute.xlu0 %1786
    %v1788 = vsel %vm279, %v1783, %v1785
    %v1789 = vsel %vm279, %v1785, %v1787
    %v1792 = vsel %vm73, %v1788, 0.0
    %v1793 = vsel %vm74, %v1789, 0.0
    %v1794 = vld [vmem:[%s286] sm:$0xf]
    %1796 = vset.pattern.permute.xlu0 0
    %1797 = vperm.xlu0 %1796, %v1794
    %v1798 = vpop.permute.xlu0 %1797
    %v1800 = vmul.f32 %v1798, %v1792
    %v1801 = vmul.f32 %v1798, %v1793
    %v1802 = vadd.f32 %v1745, %v1800
    %v1803 = vadd.f32 %v1746, %v1801
    %v1804 = vld [vmem:[%s297] sm:$0xf]
    %1806 = vset.pattern.permute.xlu0 0
    %1807 = vperm.xlu0 %1806, %v1804
    %v1808 = vpop.permute.xlu0 %1807
    %v1810 = vmul.f32 %v1808, %v1792
    %v1811 = vmul.f32 %v1808, %v1793
    %v1812 = vadd.f32 %v1755, %v1810
    %v1813 = vadd.f32 %v1756, %v1811
    %v1814 = vld [vmem:[%s308] sm:$0xf]
    %1816 = vset.pattern.permute.xlu0 0
    %1817 = vperm.xlu0 %1816, %v1814
    %v1818 = vpop.permute.xlu0 %1817
    %v1820 = vmul.f32 %v1818, %v1792
    %v1821 = vmul.f32 %v1818, %v1793
    %v1822 = vadd.f32 %v1765, %v1820
    %v1823 = vadd.f32 %v1766, %v1821
    %v1824 = vld [vmem:[%s319] sm:$0xf]
    %1826 = vset.pattern.permute.xlu0 0
    %1827 = vperm.xlu0 %1826, %v1824
    %v1828 = vpop.permute.xlu0 %1827
    %v1830 = vmul.f32 %v1828, %v1792
    %v1831 = vmul.f32 %v1828, %v1793
    %v1832 = vadd.f32 %v1775, %v1830
    %v1833 = vadd.f32 %v1776, %v1831
    %v1834 = vld [vmem:[#allocation2] sm:$0xff]
    %v1835 = vld [vmem:[#allocation2 + $0x8] sm:$0xf]
    %v1836 = vld [vmem:[%s332] sm:$0xf]
    %1838 = vset.pattern.permute.xlu0 0
    %1839 = vperm.xlu0 %1838, %v1836
    %v1840 = vpop.permute.xlu0 %1839
    %v1844 = vcombine.high %v1834, %v1834
    %1845 = vrot.lane.b32.xlu0 %v1834, 111
    %v1846 = vpop.permute.xlu0 %1845
    %1847 = vrot.lane.b32.xlu0 %v1844, 111
    %v1848 = vpop.permute.xlu0 %1847
    %1849 = vrot.lane.b32.xlu0 %v1835, 111
    %v1850 = vpop.permute.xlu0 %1849
    %v1851 = vsel %vm348, %v1846, %v1848
    %v1852 = vsel %vm348, %v1848, %v1850
    %v1855 = vmul.f32 %v1840, %v1851
    %v1856 = vmul.f32 %v1840, %v1852
    %v1857 = vadd.f32 %v1802, %v1855
    %v1858 = vadd.f32 %v1803, %v1856
    %v1859 = vld [vmem:[%s357] sm:$0xf]
    %1861 = vset.pattern.permute.xlu0 0
    %1862 = vperm.xlu0 %1861, %v1859
    %v1863 = vpop.permute.xlu0 %1862
    %v1865 = vmul.f32 %v1863, %v1851
    %v1866 = vmul.f32 %v1863, %v1852
    %v1867 = vadd.f32 %v1812, %v1865
    %v1868 = vadd.f32 %v1813, %v1866
    %v1869 = vld [vmem:[%s368] sm:$0xf]
    %1871 = vset.pattern.permute.xlu0 0
    %1872 = vperm.xlu0 %1871, %v1869
    %v1873 = vpop.permute.xlu0 %1872
    %v1875 = vmul.f32 %v1873, %v1851
    %v1876 = vmul.f32 %v1873, %v1852
    %v1877 = vadd.f32 %v1822, %v1875
    %v1878 = vadd.f32 %v1823, %v1876
    %v1879 = vld [vmem:[%s379] sm:$0xf]
    %1881 = vset.pattern.permute.xlu0 0
    %1882 = vperm.xlu0 %1881, %v1879
    %v1883 = vpop.permute.xlu0 %1882
    %v1885 = vmul.f32 %v1883, %v1851
    %v1886 = vmul.f32 %v1883, %v1852
    %v1887 = vadd.f32 %v1832, %v1885
    %v1888 = vadd.f32 %v1833, %v1886
    %v1889 = vld [vmem:[#allocation2] sm:$0xff]
    %v1890 = vld [vmem:[#allocation2 + $0x8] sm:$0xf]
    %v1893 = vcombine.high %v1889, %v1889
    %1894 = vrot.lane.b32.xlu0 %v1889, 110
    %v1895 = vpop.permute.xlu0 %1894
    %1896 = vrot.lane.b32.xlu0 %v1893, 110
    %v1897 = vpop.permute.xlu0 %1896
    %1898 = vrot.lane.b32.xlu0 %v1890, 110
    %v1899 = vpop.permute.xlu0 %1898
    %v1900 = vsel %vm401, %v1895, %v1897
    %v1901 = vsel %vm401, %v1897, %v1899
    %v1904 = vsel %vm75, %v1900, 0.0
    %v1905 = vsel %vm76, %v1901, 0.0
    %v1906 = vld [vmem:[%s408] sm:$0xf]
    %1908 = vset.pattern.permute.xlu0 0
    %1909 = vperm.xlu0 %1908, %v1906
    %v1910 = vpop.permute.xlu0 %1909
    %v1912 = vmul.f32 %v1910, %v1904
    %v1913 = vmul.f32 %v1910, %v1905
    %v1914 = vadd.f32 %v1857, %v1912
    %v1915 = vadd.f32 %v1858, %v1913
    %v1916 = vld [vmem:[%s419] sm:$0xf]
    %1918 = vset.pattern.permute.xlu0 0
    %1919 = vperm.xlu0 %1918, %v1916
    %v1920 = vpop.permute.xlu0 %1919
    %v1922 = vmul.f32 %v1920, %v1904
    %v1923 = vmul.f32 %v1920, %v1905
    %v1924 = vadd.f32 %v1867, %v1922
    %v1925 = vadd.f32 %v1868, %v1923
    %v1926 = vld [vmem:[%s430] sm:$0xf]
    %1928 = vset.pattern.permute.xlu0 0
    %1929 = vperm.xlu0 %1928, %v1926
    %v1930 = vpop.permute.xlu0 %1929
    %v1932 = vmul.f32 %v1930, %v1904
    %v1933 = vmul.f32 %v1930, %v1905
    %v1934 = vadd.f32 %v1877, %v1932
    %v1935 = vadd.f32 %v1878, %v1933
    %v1936 = vld [vmem:[%s441] sm:$0xf]
    %1938 = vset.pattern.permute.xlu0 0
    %1939 = vperm.xlu0 %1938, %v1936
    %v1940 = vpop.permute.xlu0 %1939
    %v1942 = vmul.f32 %v1940, %v1904
    %v1943 = vmul.f32 %v1940, %v1905
    %v1944 = vadd.f32 %v1887, %v1942
    %v1945 = vadd.f32 %v1888, %v1943
    %v1946 = vld [vmem:[#allocation2] sm:$0xff]
    %v1947 = vld [vmem:[#allocation2 + $0x8] sm:$0xf]
    %v1950 = vcombine.high %v1946, %v1946
    %1951 = vrot.lane.b32.xlu0 %v1946, 96
    %v1952 = vpop.permute.xlu0 %1951
    %1953 = vrot.lane.b32.xlu0 %v1950, 96
    %v1954 = vpop.permute.xlu0 %1953
    %1955 = vrot.lane.b32.xlu0 %v1947, 96
    %v1956 = vpop.permute.xlu0 %1955
    %v1957 = vsel %vm463, %v1952, %v1954
    %v1958 = vsel %vm463, %v1954, %v1956
    %v1961 = vsel %vm73, %v1957, 0.0
    %v1962 = vsel %vm74, %v1958, 0.0
    %v1963 = vld [vmem:[%s470] sm:$0xf]
    %1965 = vset.pattern.permute.xlu0 0
    %1966 = vperm.xlu0 %1965, %v1963
    %v1967 = vpop.permute.xlu0 %1966
    %v1969 = vmul.f32 %v1967, %v1961
    %v1970 = vmul.f32 %v1967, %v1962
    %v1971 = vadd.f32 %v1914, %v1969
    %v1972 = vadd.f32 %v1915, %v1970
    %v1973 = vld [vmem:[%s481] sm:$0xf]
    %1975 = vset.pattern.permute.xlu0 0
    %1976 = vperm.xlu0 %1975, %v1973
    %v1977 = vpop.permute.xlu0 %1976
    %v1979 = vmul.f32 %v1977, %v1961
    %v1980 = vmul.f32 %v1977, %v1962
    %v1981 = vadd.f32 %v1924, %v1979
    %v1982 = vadd.f32 %v1925, %v1980
    %v1983 = vld [vmem:[%s492] sm:$0xf]
    %1985 = vset.pattern.permute.xlu0 0
    %1986 = vperm.xlu0 %1985, %v1983
    %v1987 = vpop.permute.xlu0 %1986
    %v1989 = vmul.f32 %v1987, %v1961
    %v1990 = vmul.f32 %v1987, %v1962
    %v1991 = vadd.f32 %v1934, %v1989
    %v1992 = vadd.f32 %v1935, %v1990
    %v1993 = vld [vmem:[%s503] sm:$0xf]
    %1995 = vset.pattern.permute.xlu0 0
    %1996 = vperm.xlu0 %1995, %v1993
    %v1997 = vpop.permute.xlu0 %1996
    %v1999 = vmul.f32 %v1997, %v1961
    %v2000 = vmul.f32 %v1997, %v1962
    %v2001 = vadd.f32 %v1944, %v1999
    %v2002 = vadd.f32 %v1945, %v2000
    %v2003 = vld [vmem:[#allocation2] sm:$0xff]
    %v2004 = vld [vmem:[#allocation2 + $0x8] sm:$0xf]
    %v2005 = vld [vmem:[%s516] sm:$0xf]
    %2007 = vset.pattern.permute.xlu0 0
    %2008 = vperm.xlu0 %2007, %v2005
    %v2009 = vpop.permute.xlu0 %2008
    %v2013 = vcombine.high %v2003, %v2003
    %2014 = vrot.lane.b32.xlu0 %v2003, 95
    %v2015 = vpop.permute.xlu0 %2014
    %2016 = vrot.lane.b32.xlu0 %v2013, 95
    %v2017 = vpop.permute.xlu0 %2016
    %2018 = vrot.lane.b32.xlu0 %v2004, 95
    %v2019 = vpop.permute.xlu0 %2018
    %v2020 = vsel %vm532, %v2015, %v2017
    %v2021 = vsel %vm532, %v2017, %v2019
    %v2024 = vmul.f32 %v2009, %v2020
    %v2025 = vmul.f32 %v2009, %v2021
    %v2026 = vadd.f32 %v1971, %v2024
    %v2027 = vadd.f32 %v1972, %v2025
    %v2028 = vld [vmem:[%s541] sm:$0xf]
    %2030 = vset.pattern.permute.xlu0 0
    %2031 = vperm.xlu0 %2030, %v2028
    %v2032 = vpop.permute.xlu0 %2031
    %v2034 = vmul.f32 %v2032, %v2020
    %v2035 = vmul.f32 %v2032, %v2021
    %v2036 = vadd.f32 %v1981, %v2034
    %v2037 = vadd.f32 %v1982, %v2035
    %v2038 = vld [vmem:[%s552] sm:$0xf]
    %2040 = vset.pattern.permute.xlu0 0
    %2041 = vperm.xlu0 %2040, %v2038
    %v2042 = vpop.permute.xlu0 %2041
    %v2044 = vmul.f32 %v2042, %v2020
    %v2045 = vmul.f32 %v2042, %v2021
    %v2046 = vadd.f32 %v1991, %v2044
    %v2047 = vadd.f32 %v1992, %v2045
    %v2048 = vld [vmem:[%s563] sm:$0xf]
    %2050 = vset.pattern.permute.xlu0 0
    %2051 = vperm.xlu0 %2050, %v2048
    %v2052 = vpop.permute.xlu0 %2051
    %v2054 = vmul.f32 %v2052, %v2020
    %v2055 = vmul.f32 %v2052, %v2021
    %v2056 = vadd.f32 %v2001, %v2054
    %v2057 = vadd.f32 %v2002, %v2055
    %v2058 = vld [vmem:[#allocation2] sm:$0xff]
    %v2059 = vld [vmem:[#allocation2 + $0x8] sm:$0xf]
    %v2062 = vcombine.high %v2058, %v2058
    %2063 = vrot.lane.b32.xlu0 %v2058, 94
    %v2064 = vpop.permute.xlu0 %2063
    %2065 = vrot.lane.b32.xlu0 %v2062, 94
    %v2066 = vpop.permute.xlu0 %2065
    %2067 = vrot.lane.b32.xlu0 %v2059, 94
    %v2068 = vpop.permute.xlu0 %2067
    %v2069 = vsel %vm585, %v2064, %v2066
    %v2070 = vsel %vm585, %v2066, %v2068
    %v2073 = vsel %vm75, %v2069, 0.0
    %v2074 = vsel %vm76, %v2070, 0.0
    %v2075 = vld [vmem:[%s592] sm:$0xf]
    %2077 = vset.pattern.permute.xlu0 0
    %2078 = vperm.xlu0 %2077, %v2075
    %v2079 = vpop.permute.xlu0 %2078
    %v2081 = vmul.f32 %v2079, %v2073
    %v2082 = vmul.f32 %v2079, %v2074
    %v2083 = vadd.f32 %v2026, %v2081
    %v2084 = vadd.f32 %v2027, %v2082
    %v2085 = vld [vmem:[%s603] sm:$0xf]
    %2087 = vset.pattern.permute.xlu0 0
    %2088 = vperm.xlu0 %2087, %v2085
    %v2089 = vpop.permute.xlu0 %2088
    %v2091 = vmul.f32 %v2089, %v2073
    %v2092 = vmul.f32 %v2089, %v2074
    %v2093 = vadd.f32 %v2036, %v2091
    %v2094 = vadd.f32 %v2037, %v2092
    %v2095 = vld [vmem:[%s614] sm:$0xf]
    %2097 = vset.pattern.permute.xlu0 0
    %2098 = vperm.xlu0 %2097, %v2095
    %v2099 = vpop.permute.xlu0 %2098
    %v2101 = vmul.f32 %v2099, %v2073
    %v2102 = vmul.f32 %v2099, %v2074
    %v2103 = vadd.f32 %v2046, %v2101
    %v2104 = vadd.f32 %v2047, %v2102
    %v2105 = vld [vmem:[%s625] sm:$0xf]
    %2107 = vset.pattern.permute.xlu0 0
    %2108 = vperm.xlu0 %2107, %v2105
    %v2109 = vpop.permute.xlu0 %2108
    %v2111 = vmul.f32 %v2109, %v2073
    %v2112 = vmul.f32 %v2109, %v2074
    %v2113 = vadd.f32 %v2056, %v2111
    %v2114 = vadd.f32 %v2057, %v2112
    %v2115 = vsel %vm636, %v2083, 0.0
    %v2116 = vrot.slane %v2115, 4
    %v2117 = vadd.f32 %v2115, %v2116
    %v2118 = vrot.slane %v2117, 2
    %v2119 = vadd.f32 %v2117, %v2118
    %v2120 = vrot.slane %v2119, 1
    %v2121 = vadd.f32 %v2119, %v2120
    %v2122 = vsel %vm636, %v2084, 0.0
    %v2123 = vrot.slane %v2122, 4
    %v2124 = vadd.f32 %v2122, %v2123
    %v2125 = vrot.slane %v2124, 2
    %v2126 = vadd.f32 %v2124, %v2125
    %v2127 = vrot.slane %v2126, 1
    %v2128 = vadd.f32 %v2126, %v2127
    %s2129 = sld [smem:[#allocation4]]
    %v2130 = vstv %s2129
    %v2131 = vadd.f32 %v2121, %v2130
    %v2132 = vadd.f32 %v2128, %v2130
    %v2133 = vmax.f32 %v2131, 0.0
    %v2134 = vmax.f32 %v2132, 0.0
    %v2135 = vsel %vm636, %v2093, 0.0
    %v2136 = vrot.slane %v2135, 4
    %v2137 = vadd.f32 %v2135, %v2136
    %v2138 = vrot.slane %v2137, 2
    %v2139 = vadd.f32 %v2137, %v2138
    %v2140 = vrot.slane %v2139, 1
    %v2141 = vadd.f32 %v2139, %v2140
    %v2142 = vsel %vm636, %v2094, 0.0
    %v2143 = vrot.slane %v2142, 4
    %v2144 = vadd.f32 %v2142, %v2143
    %v2145 = vrot.slane %v2144, 2
    %v2146 = vadd.f32 %v2144, %v2145
    %v2147 = vrot.slane %v2146, 1
    %v2148 = vadd.f32 %v2146, %v2147
    %s2149 = sld [smem:[#allocation4 + $0x1]]
    %v2150 = vstv %s2149
    %v2151 = vadd.f32 %v2141, %v2150
    %v2152 = vadd.f32 %v2148, %v2150
    %v2153 = vmax.f32 %v2151, 0.0
    %v2154 = vmax.f32 %v2152, 0.0
    %v2155 = vsel %vm636, %v2103, 0.0
    %v2156 = vrot.slane %v2155, 4
    %v2157 = vadd.f32 %v2155, %v2156
    %v2158 = vrot.slane %v2157, 2
    %v2159 = vadd.f32 %v2157, %v2158
    %v2160 = vrot.slane %v2159, 1
    %v2161 = vadd.f32 %v2159, %v2160
    %v2162 = vsel %vm636, %v2104, 0.0
    %v2163 = vrot.slane %v2162, 4
    %v2164 = vadd.f32 %v2162, %v2163
    %v2165 = vrot.slane %v2164, 2
    %v2166 = vadd.f32 %v2164, %v2165
    %v2167 = vrot.slane %v2166, 1
    %v2168 = vadd.f32 %v2166, %v2167
    %s2169 = sld [smem:[#allocation4 + $0x2]]
    %v2170 = vstv %s2169
    %v2171 = vadd.f32 %v2161, %v2170
    %v2172 = vadd.f32 %v2168, %v2170
    %v2173 = vmax.f32 %v2171, 0.0
    %v2174 = vmax.f32 %v2172, 0.0
    %v2175 = vsel %vm636, %v2113, 0.0
    %v2176 = vrot.slane %v2175, 4
    %v2177 = vadd.f32 %v2175, %v2176
    %v2178 = vrot.slane %v2177, 2
    %v2179 = vadd.f32 %v2177, %v2178
    %v2180 = vrot.slane %v2179, 1
    %v2181 = vadd.f32 %v2179, %v2180
    %v2182 = vsel %vm636, %v2114, 0.0
    %v2183 = vrot.slane %v2182, 4
    %v2184 = vadd.f32 %v2182, %v2183
    %v2185 = vrot.slane %v2184, 2
    %v2186 = vadd.f32 %v2184, %v2185
    %v2187 = vrot.slane %v2186, 1
    %v2188 = vadd.f32 %v2186, %v2187
    %s2189 = sld [smem:[#allocation4 + $0x3]]
    %v2190 = vstv %s2189
    %v2191 = vadd.f32 %v2181, %v2190
    %v2192 = vadd.f32 %v2188, %v2190
    %v2193 = vmax.f32 %v2191, 0.0
    %v2194 = vmax.f32 %v2192, 0.0
    %v2197 = vcombine.low %v2133, %v2134
    %v2199 = vunpack.c.l.s4 1966171168
    %v2200 = vunpack.c.0.s8 %v2199
    %v2201 = vlaneseq
    %v2202 = vshrl.u32 %v2201, 7
    %v2203 = vsub.s32 %v2200, %v2202
    %v2204 = vrot.slane %v2197, %v2203
    %v2206 = vunpack.c.l.s4 1966171168
    %v2207 = vunpack.c.0.s8 %v2206
    %v2208 = vlaneseq
    %v2209 = vshrl.u32 %v2208, 7
    %v2210 = vsub.s32 %v2207, %v2209
    %v2211 = vrot.slane %v2204, %v2210
    %2212 = vrot.lane.b32.xlu0 %v2211, 17
    %v2213 = vpop.permute.xlu0 %2212
    %v2214 = vrot.slane %v2213, 7
    %v2215 = vsel %vm88, %v2214, %v2213
    %2217 = vst.msk [vmem:[#allocation3] ss:$4 sm:$0x7] %vm742, %v2215
    %v2220 = vcombine.low %v2153, %v2154
    %v2222 = vunpack.c.l.s4 1966171168
    %v2223 = vunpack.c.0.s8 %v2222
    %v2224 = vlaneseq
    %v2225 = vshrl.u32 %v2224, 7
    %v2226 = vsub.s32 %v2223, %v2225
    %v2227 = vrot.slane %v2220, %v2226
    %v2229 = vunpack.c.l.s4 1966171168
    %v2230 = vunpack.c.0.s8 %v2229
    %v2231 = vlaneseq
    %v2232 = vshrl.u32 %v2231, 7
    %v2233 = vsub.s32 %v2230, %v2232
    %v2234 = vrot.slane %v2227, %v2233
    %2235 = vrot.lane.b32.xlu0 %v2234, 17
    %v2236 = vpop.permute.xlu0 %2235
    %v2237 = vrot.slane %v2236, 7
    %v2238 = vsel %vm88, %v2237, %v2236
    %2240 = vst.msk [vmem:[%s766] ss:$4 sm:$0x7] %vm742, %v2238
    %v2243 = vcombine.low %v2173, %v2174
    %v2245 = vunpack.c.l.s4 1966171168
    %v2246 = vunpack.c.0.s8 %v2245
    %v2247 = vlaneseq
    %v2248 = vshrl.u32 %v2247, 7
    %v2249 = vsub.s32 %v2246, %v2248
    %v2250 = vrot.slane %v2243, %v2249
    %v2252 = vunpack.c.l.s4 1966171168
    %v2253 = vunpack.c.0.s8 %v2252
    %v2254 = vlaneseq
    %v2255 = vshrl.u32 %v2254, 7
    %v2256 = vsub.s32 %v2253, %v2255
    %v2257 = vrot.slane %v2250, %v2256
    %2258 = vrot.lane.b32.xlu0 %v2257, 17
    %v2259 = vpop.permute.xlu0 %2258
    %v2260 = vrot.slane %v2259, 7
    %v2261 = vsel %vm88, %v2260, %v2259
    %2263 = vst.msk [vmem:[%s790] ss:$4 sm:$0x7] %vm742, %v2261
    %v2266 = vcombine.low %v2193, %v2194
    %v2268 = vunpack.c.l.s4 1966171168
    %v2269 = vunpack.c.0.s8 %v2268
    %v2270 = vlaneseq
    %v2271 = vshrl.u32 %v2270, 7
    %v2272 = vsub.s32 %v2269, %v2271
    %v2273 = vrot.slane %v2266, %v2272
    %v2275 = vunpack.c.l.s4 1966171168
    %v2276 = vunpack.c.0.s8 %v2275
    %v2277 = vlaneseq
    %v2278 = vshrl.u32 %v2277, 7
    %v2279 = vsub.s32 %v2276, %v2278
    %v2280 = vrot.slane %v2273, %v2279
    %2281 = vrot.lane.b32.xlu0 %v2280, 17
    %v2282 = vpop.permute.xlu0 %2281
    %v2283 = vrot.slane %v2282, 7
    %v2284 = vsel %vm88, %v2283, %v2282
    %2286 = vst.msk [vmem:[%s814] ss:$4 sm:$0x7] %vm742, %v2284
    %v2287 = vld [vmem:[#allocation3] sm:$0xff]
    %v2289 = vcombine.high %v2287, %v2287
    %v2291 = vsel %vm73, %v2287, 0.0
    %v2292 = vsel %vm74, %v2289, 0.0
    %v2293 = vld [vmem:[%s3] sm:$0xf]
    %2295 = vset.pattern.permute.xlu0 0
    %2296 = vperm.xlu0 %2295, %v2293
    %v2297 = vpop.permute.xlu0 %2296
    %v2299 = vmul.f32 %v2297, %v2291
    %v2300 = vmul.f32 %v2297, %v2292
    %v2301 = vadd.f32 %v2299, 0.0
    %v2302 = vadd.f32 %v2300, 0.0
    %v2303 = vld [vmem:[%s832] sm:$0xf]
    %2305 = vset.pattern.permute.xlu0 0
    %2306 = vperm.xlu0 %2305, %v2303
    %v2307 = vpop.permute.xlu0 %2306
    %v2309 = vmul.f32 %v2307, %v2291
    %v2310 = vmul.f32 %v2307, %v2292
    %v2311 = vadd.f32 %v2309, 0.0
    %v2312 = vadd.f32 %v2310, 0.0
    %v2313 = vld [vmem:[%s843] sm:$0xf]
    %2315 = vset.pattern.permute.xlu0 0
    %2316 = vperm.xlu0 %2315, %v2313
    %v2317 = vpop.permute.xlu0 %2316
    %v2319 = vmul.f32 %v2317, %v2291
    %v2320 = vmul.f32 %v2317, %v2292
    %v2321 = vadd.f32 %v2319, 0.0
    %v2322 = vadd.f32 %v2320, 0.0
    %v2323 = vld [vmem:[%s854] sm:$0xf]
    %2325 = vset.pattern.permute.xlu0 0
    %2326 = vperm.xlu0 %2325, %v2323
    %v2327 = vpop.permute.xlu0 %2326
    %v2329 = vmul.f32 %v2327, %v2291
    %v2330 = vmul.f32 %v2327, %v2292
    %v2331 = vadd.f32 %v2329, 0.0
    %v2332 = vadd.f32 %v2330, 0.0
    %v2333 = vld [vmem:[#allocation3] sm:$0xff]
    %v2334 = vld [vmem:[#allocation3 + $0x8] sm:$0xf]
    %v2335 = vld [vmem:[%s867] sm:$0xf]
    %2337 = vset.pattern.permute.xlu0 0
    %2338 = vperm.xlu0 %2337, %v2335
    %v2339 = vpop.permute.xlu0 %2338
    %v2343 = vcombine.high %v2333, %v2333
    %2344 = vrot.lane.b32.xlu0 %v2333, 127
    %v2345 = vpop.permute.xlu0 %2344
    %2346 = vrot.lane.b32.xlu0 %v2343, 127
    %v2347 = vpop.permute.xlu0 %2346
    %2348 = vrot.lane.b32.xlu0 %v2334, 127
    %v2349 = vpop.permute.xlu0 %2348
    %v2350 = vsel %vm164, %v2345, %v2347
    %v2351 = vsel %vm164, %v2347, %v2349
    %v2354 = vmul.f32 %v2339, %v2350
    %v2355 = vmul.f32 %v2339, %v2351
    %v2356 = vadd.f32 %v2301, %v2354
    %v2357 = vadd.f32 %v2302, %v2355
    %v2358 = vld [vmem:[%s891] sm:$0xf]
    %2360 = vset.pattern.permute.xlu0 0
    %2361 = vperm.xlu0 %2360, %v2358
    %v2362 = vpop.permute.xlu0 %2361
    %v2364 = vmul.f32 %v2362, %v2350
    %v2365 = vmul.f32 %v2362, %v2351
    %v2366 = vadd.f32 %v2311, %v2364
    %v2367 = vadd.f32 %v2312, %v2365
    %v2368 = vld [vmem:[%s902] sm:$0xf]
    %2370 = vset.pattern.permute.xlu0 0
    %2371 = vperm.xlu0 %2370, %v2368
    %v2372 = vpop.permute.xlu0 %2371
    %v2374 = vmul.f32 %v2372, %v2350
    %v2375 = vmul.f32 %v2372, %v2351
    %v2376 = vadd.f32 %v2321, %v2374
    %v2377 = vadd.f32 %v2322, %v2375
    %v2378 = vld [vmem:[%s913] sm:$0xf]
    %2380 = vset.pattern.permute.xlu0 0
    %2381 = vperm.xlu0 %2380, %v2378
    %v2382 = vpop.permute.xlu0 %2381
    %v2384 = vmul.f32 %v2382, %v2350
    %v2385 = vmul.f32 %v2382, %v2351
    %v2386 = vadd.f32 %v2331, %v2384
    %v2387 = vadd.f32 %v2332, %v2385
    %v2388 = vld [vmem:[#allocation3] sm:$0xff]
    %v2389 = vld [vmem:[#allocation3 + $0x8] sm:$0xf]
    %v2392 = vcombine.high %v2388, %v2388
    %2393 = vrot.lane.b32.xlu0 %v2388, 126
    %v2394 = vpop.permute.xlu0 %2393
    %2395 = vrot.lane.b32.xlu0 %v2392, 126
    %v2396 = vpop.permute.xlu0 %2395
    %2397 = vrot.lane.b32.xlu0 %v2389, 126
    %v2398 = vpop.permute.xlu0 %2397
    %v2399 = vsel %vm217, %v2394, %v2396
    %v2400 = vsel %vm217, %v2396, %v2398
    %v2403 = vsel %vm75, %v2399, 0.0
    %v2404 = vsel %vm76, %v2400, 0.0
    %v2405 = vld [vmem:[%s941] sm:$0xf]
    %2407 = vset.pattern.permute.xlu0 0
    %2408 = vperm.xlu0 %2407, %v2405
    %v2409 = vpop.permute.xlu0 %2408
    %v2411 = vmul.f32 %v2409, %v2403
    %v2412 = vmul.f32 %v2409, %v2404
    %v2413 = vadd.f32 %v2356, %v2411
    %v2414 = vadd.f32 %v2357, %v2412
    %v2415 = vld [vmem:[%s952] sm:$0xf]
    %2417 = vset.pattern.permute.xlu0 0
    %2418 = vperm.xlu0 %2417, %v2415
    %v2419 = vpop.permute.xlu0 %2418
    %v2421 = vmul.f32 %v2419, %v2403
    %v2422 = vmul.f32 %v2419, %v2404
    %v2423 = vadd.f32 %v2366, %v2421
    %v2424 = vadd.f32 %v2367, %v2422
    %v2425 = vld [vmem:[%s963] sm:$0xf]
    %2427 = vset.pattern.permute.xlu0 0
    %2428 = vperm.xlu0 %2427, %v2425
    %v2429 = vpop.permute.xlu0 %2428
    %v2431 = vmul.f32 %v2429, %v2403
    %v2432 = vmul.f32 %v2429, %v2404
    %v2433 = vadd.f32 %v2376, %v2431
    %v2434 = vadd.f32 %v2377, %v2432
    %v2435 = vld [vmem:[%s974] sm:$0xf]
    %2437 = vset.pattern.permute.xlu0 0
    %2438 = vperm.xlu0 %2437, %v2435
    %v2439 = vpop.permute.xlu0 %2438
    %v2441 = vmul.f32 %v2439, %v2403
    %v2442 = vmul.f32 %v2439, %v2404
    %v2443 = vadd.f32 %v2386, %v2441
    %v2444 = vadd.f32 %v2387, %v2442
    %v2445 = vld [vmem:[#allocation3] sm:$0xff]
    %v2446 = vld [vmem:[#allocation3 + $0x8] sm:$0xf]
    %v2449 = vcombine.high %v2445, %v2445
    %2450 = vrot.lane.b32.xlu0 %v2445, 112
    %v2451 = vpop.permute.xlu0 %2450
    %2452 = vrot.lane.b32.xlu0 %v2449, 112
    %v2453 = vpop.permute.xlu0 %2452
    %2454 = vrot.lane.b32.xlu0 %v2446, 112
    %v2455 = vpop.permute.xlu0 %2454
    %v2456 = vsel %vm279, %v2451, %v2453
    %v2457 = vsel %vm279, %v2453, %v2455
    %v2460 = vsel %vm73, %v2456, 0.0
    %v2461 = vsel %vm74, %v2457, 0.0
    %v2462 = vld [vmem:[%s1002] sm:$0xf]
    %2464 = vset.pattern.permute.xlu0 0
    %2465 = vperm.xlu0 %2464, %v2462
    %v2466 = vpop.permute.xlu0 %2465
    %v2468 = vmul.f32 %v2466, %v2460
    %v2469 = vmul.f32 %v2466, %v2461
    %v2470 = vadd.f32 %v2413, %v2468
    %v2471 = vadd.f32 %v2414, %v2469
    %v2472 = vld [vmem:[%s1013] sm:$0xf]
    %2474 = vset.pattern.permute.xlu0 0
    %2475 = vperm.xlu0 %2474, %v2472
    %v2476 = vpop.permute.xlu0 %2475
    %v2478 = vmul.f32 %v2476, %v2460
    %v2479 = vmul.f32 %v2476, %v2461
    %v2480 = vadd.f32 %v2423, %v2478
    %v2481 = vadd.f32 %v2424, %v2479
    %v2482 = vld [vmem:[%s1024] sm:$0xf]
    %2484 = vset.pattern.permute.xlu0 0
    %2485 = vperm.xlu0 %2484, %v2482
    %v2486 = vpop.permute.xlu0 %2485
    %v2488 = vmul.f32 %v2486, %v2460
    %v2489 = vmul.f32 %v2486, %v2461
    %v2490 = vadd.f32 %v2433, %v2488
    %v2491 = vadd.f32 %v2434, %v2489
    %v2492 = vld [vmem:[%s1035] sm:$0xf]
    %2494 = vset.pattern.permute.xlu0 0
    %2495 = vperm.xlu0 %2494, %v2492
    %v2496 = vpop.permute.xlu0 %2495
    %v2498 = vmul.f32 %v2496, %v2460
    %v2499 = vmul.f32 %v2496, %v2461
    %v2500 = vadd.f32 %v2443, %v2498
    %v2501 = vadd.f32 %v2444, %v2499
    %v2502 = vld [vmem:[#allocation3] sm:$0xff]
    %v2503 = vld [vmem:[#allocation3 + $0x8] sm:$0xf]
    %v2504 = vld [vmem:[%s1048] sm:$0xf]
    %2506 = vset.pattern.permute.xlu0 0
    %2507 = vperm.xlu0 %2506, %v2504
    %v2508 = vpop.permute.xlu0 %2507
    %v2512 = vcombine.high %v2502, %v2502
    %2513 = vrot.lane.b32.xlu0 %v2502, 111
    %v2514 = vpop.permute.xlu0 %2513
    %2515 = vrot.lane.b32.xlu0 %v2512, 111
    %v2516 = vpop.permute.xlu0 %2515
    %2517 = vrot.lane.b32.xlu0 %v2503, 111
    %v2518 = vpop.permute.xlu0 %2517
    %v2519 = vsel %vm348, %v2514, %v2516
    %v2520 = vsel %vm348, %v2516, %v2518
    %v2523 = vmul.f32 %v2508, %v2519
    %v2524 = vmul.f32 %v2508, %v2520
    %v2525 = vadd.f32 %v2470, %v2523
    %v2526 = vadd.f32 %v2471, %v2524
    %v2527 = vld [vmem:[%s1072] sm:$0xf]
    %2529 = vset.pattern.permute.xlu0 0
    %2530 = vperm.xlu0 %2529, %v2527
    %v2531 = vpop.permute.xlu0 %2530
    %v2533 = vmul.f32 %v2531, %v2519
    %v2534 = vmul.f32 %v2531, %v2520
    %v2535 = vadd.f32 %v2480, %v2533
    %v2536 = vadd.f32 %v2481, %v2534
    %v2537 = vld [vmem:[%s1083] sm:$0xf]
    %2539 = vset.pattern.permute.xlu0 0
    %2540 = vperm.xlu0 %2539, %v2537
    %v2541 = vpop.permute.xlu0 %2540
    %v2543 = vmul.f32 %v2541, %v2519
    %v2544 = vmul.f32 %v2541, %v2520
    %v2545 = vadd.f32 %v2490, %v2543
    %v2546 = vadd.f32 %v2491, %v2544
    %v2547 = vld [vmem:[%s1094] sm:$0xf]
    %2549 = vset.pattern.permute.xlu0 0
    %2550 = vperm.xlu0 %2549, %v2547
    %v2551 = vpop.permute.xlu0 %2550
    %v2553 = vmul.f32 %v2551, %v2519
    %v2554 = vmul.f32 %v2551, %v2520
    %v2555 = vadd.f32 %v2500, %v2553
    %v2556 = vadd.f32 %v2501, %v2554
    %v2557 = vld [vmem:[#allocation3] sm:$0xff]
    %v2558 = vld [vmem:[#allocation3 + $0x8] sm:$0xf]
    %v2561 = vcombine.high %v2557, %v2557
    %2562 = vrot.lane.b32.xlu0 %v2557, 110
    %v2563 = vpop.permute.xlu0 %2562
    %2564 = vrot.lane.b32.xlu0 %v2561, 110
    %v2565 = vpop.permute.xlu0 %2564
    %2566 = vrot.lane.b32.xlu0 %v2558, 110
    %v2567 = vpop.permute.xlu0 %2566
    %v2568 = vsel %vm401, %v2563, %v2565
    %v2569 = vsel %vm401, %v2565, %v2567
    %v2572 = vsel %vm75, %v2568, 0.0
    %v2573 = vsel %vm76, %v2569, 0.0
    %v2574 = vld [vmem:[%s1122] sm:$0xf]
    %2576 = vset.pattern.permute.xlu0 0
    %2577 = vperm.xlu0 %2576, %v2574
    %v2578 = vpop.permute.xlu0 %2577
    %v2580 = vmul.f32 %v2578, %v2572
    %v2581 = vmul.f32 %v2578, %v2573
    %v2582 = vadd.f32 %v2525, %v2580
    %v2583 = vadd.f32 %v2526, %v2581
    %v2584 = vld [vmem:[%s1133] sm:$0xf]
    %2586 = vset.pattern.permute.xlu0 0
    %2587 = vperm.xlu0 %2586, %v2584
    %v2588 = vpop.permute.xlu0 %2587
    %v2590 = vmul.f32 %v2588, %v2572
    %v2591 = vmul.f32 %v2588, %v2573
    %v2592 = vadd.f32 %v2535, %v2590
    %v2593 = vadd.f32 %v2536, %v2591
    %v2594 = vld [vmem:[%s1144] sm:$0xf]
    %2596 = vset.pattern.permute.xlu0 0
    %2597 = vperm.xlu0 %2596, %v2594
    %v2598 = vpop.permute.xlu0 %2597
    %v2600 = vmul.f32 %v2598, %v2572
    %v2601 = vmul.f32 %v2598, %v2573
    %v2602 = vadd.f32 %v2545, %v2600
    %v2603 = vadd.f32 %v2546, %v2601
    %v2604 = vld [vmem:[%s1155] sm:$0xf]
    %2606 = vset.pattern.permute.xlu0 0
    %2607 = vperm.xlu0 %2606, %v2604
    %v2608 = vpop.permute.xlu0 %2607
    %v2610 = vmul.f32 %v2608, %v2572
    %v2611 = vmul.f32 %v2608, %v2573
    %v2612 = vadd.f32 %v2555, %v2610
    %v2613 = vadd.f32 %v2556, %v2611
    %v2614 = vld [vmem:[#allocation3] sm:$0xff]
    %v2615 = vld [vmem:[#allocation3 + $0x8] sm:$0xf]
    %v2618 = vcombine.high %v2614, %v2614
    %2619 = vrot.lane.b32.xlu0 %v2614, 96
    %v2620 = vpop.permute.xlu0 %2619
    %2621 = vrot.lane.b32.xlu0 %v2618, 96
    %v2622 = vpop.permute.xlu0 %2621
    %2623 = vrot.lane.b32.xlu0 %v2615, 96
    %v2624 = vpop.permute.xlu0 %2623
    %v2625 = vsel %vm463, %v2620, %v2622
    %v2626 = vsel %vm463, %v2622, %v2624
    %v2629 = vsel %vm73, %v2625, 0.0
    %v2630 = vsel %vm74, %v2626, 0.0
    %v2631 = vld [vmem:[%s1183] sm:$0xf]
    %2633 = vset.pattern.permute.xlu0 0
    %2634 = vperm.xlu0 %2633, %v2631
    %v2635 = vpop.permute.xlu0 %2634
    %v2637 = vmul.f32 %v2635, %v2629
    %v2638 = vmul.f32 %v2635, %v2630
    %v2639 = vadd.f32 %v2582, %v2637
    %v2640 = vadd.f32 %v2583, %v2638
    %v2641 = vld [vmem:[%s1194] sm:$0xf]
    %2643 = vset.pattern.permute.xlu0 0
    %2644 = vperm.xlu0 %2643, %v2641
    %v2645 = vpop.permute.xlu0 %2644
    %v2647 = vmul.f32 %v2645, %v2629
    %v2648 = vmul.f32 %v2645, %v2630
    %v2649 = vadd.f32 %v2592, %v2647
    %v2650 = vadd.f32 %v2593, %v2648
    %v2651 = vld [vmem:[%s1205] sm:$0xf]
    %2653 = vset.pattern.permute.xlu0 0
    %2654 = vperm.xlu0 %2653, %v2651
    %v2655 = vpop.permute.xlu0 %2654
    %v2657 = vmul.f32 %v2655, %v2629
    %v2658 = vmul.f32 %v2655, %v2630
    %v2659 = vadd.f32 %v2602, %v2657
    %v2660 = vadd.f32 %v2603, %v2658
    %v2661 = vld [vmem:[%s1216] sm:$0xf]
    %2663 = vset.pattern.permute.xlu0 0
    %2664 = vperm.xlu0 %2663, %v2661
    %v2665 = vpop.permute.xlu0 %2664
    %v2667 = vmul.f32 %v2665, %v2629
    %v2668 = vmul.f32 %v2665, %v2630
    %v2669 = vadd.f32 %v2612, %v2667
    %v2670 = vadd.f32 %v2613, %v2668
    %v2671 = vld [vmem:[#allocation3] sm:$0xff]
    %v2672 = vld [vmem:[#allocation3 + $0x8] sm:$0xf]
    %v2673 = vld [vmem:[%s1229] sm:$0xf]
    %2675 = vset.pattern.permute.xlu0 0
    %2676 = vperm.xlu0 %2675, %v2673
    %v2677 = vpop.permute.xlu0 %2676
    %v2681 = vcombine.high %v2671, %v2671
    %2682 = vrot.lane.b32.xlu0 %v2671, 95
    %v2683 = vpop.permute.xlu0 %2682
    %2684 = vrot.lane.b32.xlu0 %v2681, 95
    %v2685 = vpop.permute.xlu0 %2684
    %2686 = vrot.lane.b32.xlu0 %v2672, 95
    %v2687 = vpop.permute.xlu0 %2686
    %v2688 = vsel %vm532, %v2683, %v2685
    %v2689 = vsel %vm532, %v2685, %v2687
    %v2692 = vmul.f32 %v2677, %v2688
    %v2693 = vmul.f32 %v2677, %v2689
    %v2694 = vadd.f32 %v2639, %v2692
    %v2695 = vadd.f32 %v2640, %v2693
    %v2696 = vld [vmem:[%s1253] sm:$0xf]
    %2698 = vset.pattern.permute.xlu0 0
    %2699 = vperm.xlu0 %2698, %v2696
    %v2700 = vpop.permute.xlu0 %2699
    %v2702 = vmul.f32 %v2700, %v2688
    %v2703 = vmul.f32 %v2700, %v2689
    %v2704 = vadd.f32 %v2649, %v2702
    %v2705 = vadd.f32 %v2650, %v2703
    %v2706 = vld [vmem:[%s1264] sm:$0xf]
    %2708 = vset.pattern.permute.xlu0 0
    %2709 = vperm.xlu0 %2708, %v2706
    %v2710 = vpop.permute.xlu0 %2709
    %v2712 = vmul.f32 %v2710, %v2688
    %v2713 = vmul.f32 %v2710, %v2689
    %v2714 = vadd.f32 %v2659, %v2712
    %v2715 = vadd.f32 %v2660, %v2713
    %v2716 = vld [vmem:[%s1275] sm:$0xf]
    %2718 = vset.pattern.permute.xlu0 0
    %2719 = vperm.xlu0 %2718, %v2716
    %v2720 = vpop.permute.xlu0 %2719
    %v2722 = vmul.f32 %v2720, %v2688
    %v2723 = vmul.f32 %v2720, %v2689
    %v2724 = vadd.f32 %v2669, %v2722
    %v2725 = vadd.f32 %v2670, %v2723
    %v2726 = vld [vmem:[#allocation3] sm:$0xff]
    %v2727 = vld [vmem:[#allocation3 + $0x8] sm:$0xf]
    %v2730 = vcombine.high %v2726, %v2726
    %2731 = vrot.lane.b32.xlu0 %v2726, 94
    %v2732 = vpop.permute.xlu0 %2731
    %2733 = vrot.lane.b32.xlu0 %v2730, 94
    %v2734 = vpop.permute.xlu0 %2733
    %2735 = vrot.lane.b32.xlu0 %v2727, 94
    %v2736 = vpop.permute.xlu0 %2735
    %v2737 = vsel %vm585, %v2732, %v2734
    %v2738 = vsel %vm585, %v2734, %v2736
    %v2741 = vsel %vm75, %v2737, 0.0
    %v2742 = vsel %vm76, %v2738, 0.0
    %v2743 = vld [vmem:[%s1303] sm:$0xf]
    %2745 = vset.pattern.permute.xlu0 0
    %2746 = vperm.xlu0 %2745, %v2743
    %v2747 = vpop.permute.xlu0 %2746
    %v2749 = vmul.f32 %v2747, %v2741
    %v2750 = vmul.f32 %v2747, %v2742
    %v2751 = vadd.f32 %v2694, %v2749
    %v2752 = vadd.f32 %v2695, %v2750
    %v2753 = vld [vmem:[%s1314] sm:$0xf]
    %2755 = vset.pattern.permute.xlu0 0
    %2756 = vperm.xlu0 %2755, %v2753
    %v2757 = vpop.permute.xlu0 %2756
    %v2759 = vmul.f32 %v2757, %v2741
    %v2760 = vmul.f32 %v2757, %v2742
    %v2761 = vadd.f32 %v2704, %v2759
    %v2762 = vadd.f32 %v2705, %v2760
    %v2763 = vld [vmem:[%s1325] sm:$0xf]
    %2765 = vset.pattern.permute.xlu0 0
    %2766 = vperm.xlu0 %2765, %v2763
    %v2767 = vpop.permute.xlu0 %2766
    %v2769 = vmul.f32 %v2767, %v2741
    %v2770 = vmul.f32 %v2767, %v2742
    %v2771 = vadd.f32 %v2714, %v2769
    %v2772 = vadd.f32 %v2715, %v2770
    %v2773 = vld [vmem:[%s1336] sm:$0xf]
    %2775 = vset.pattern.permute.xlu0 0
    %2776 = vperm.xlu0 %2775, %v2773
    %v2777 = vpop.permute.xlu0 %2776
    %v2779 = vmul.f32 %v2777, %v2741
    %v2780 = vmul.f32 %v2777, %v2742
    %v2781 = vadd.f32 %v2724, %v2779
    %v2782 = vadd.f32 %v2725, %v2780
    %v2783 = vsel %vm636, %v2751, 0.0
    %v2784 = vrot.slane %v2783, 4
    %v2785 = vadd.f32 %v2783, %v2784
    %v2786 = vrot.slane %v2785, 2
    %v2787 = vadd.f32 %v2785, %v2786
    %v2788 = vrot.slane %v2787, 1
    %v2789 = vadd.f32 %v2787, %v2788
    %v2790 = vsel %vm636, %v2752, 0.0
    %v2791 = vrot.slane %v2790, 4
    %v2792 = vadd.f32 %v2790, %v2791
    %v2793 = vrot.slane %v2792, 2
    %v2794 = vadd.f32 %v2792, %v2793
    %v2795 = vrot.slane %v2794, 1
    %v2796 = vadd.f32 %v2794, %v2795
    %s2797 = sld [smem:[#allocation7]]
    %v2798 = vstv %s2797
    %v2799 = vadd.f32 %v2789, %v2798
    %v2800 = vadd.f32 %v2796, %v2798
    %v2801 = vsel %vm636, %v2761, 0.0
    %v2802 = vrot.slane %v2801, 4
    %v2803 = vadd.f32 %v2801, %v2802
    %v2804 = vrot.slane %v2803, 2
    %v2805 = vadd.f32 %v2803, %v2804
    %v2806 = vrot.slane %v2805, 1
    %v2807 = vadd.f32 %v2805, %v2806
    %v2808 = vsel %vm636, %v2762, 0.0
    %v2809 = vrot.slane %v2808, 4
    %v2810 = vadd.f32 %v2808, %v2809
    %v2811 = vrot.slane %v2810, 2
    %v2812 = vadd.f32 %v2810, %v2811
    %v2813 = vrot.slane %v2812, 1
    %v2814 = vadd.f32 %v2812, %v2813
    %s2815 = sld [smem:[#allocation7 + $0x1]]
    %v2816 = vstv %s2815
    %v2817 = vadd.f32 %v2807, %v2816
    %v2818 = vadd.f32 %v2814, %v2816
    %v2819 = vsel %vm636, %v2771, 0.0
    %v2820 = vrot.slane %v2819, 4
    %v2821 = vadd.f32 %v2819, %v2820
    %v2822 = vrot.slane %v2821, 2
    %v2823 = vadd.f32 %v2821, %v2822
    %v2824 = vrot.slane %v2823, 1
    %v2825 = vadd.f32 %v2823, %v2824
    %v2826 = vsel %vm636, %v2772, 0.0
    %v2827 = vrot.slane %v2826, 4
    %v2828 = vadd.f32 %v2826, %v2827
    %v2829 = vrot.slane %v2828, 2
    %v2830 = vadd.f32 %v2828, %v2829
    %v2831 = vrot.slane %v2830, 1
    %v2832 = vadd.f32 %v2830, %v2831
    %s2833 = sld [smem:[#allocation7 + $0x2]]
    %v2834 = vstv %s2833
    %v2835 = vadd.f32 %v2825, %v2834
    %v2836 = vadd.f32 %v2832, %v2834
    %v2837 = vsel %vm636, %v2781, 0.0
    %v2838 = vrot.slane %v2837, 4
    %v2839 = vadd.f32 %v2837, %v2838
    %v2840 = vrot.slane %v2839, 2
    %v2841 = vadd.f32 %v2839, %v2840
    %v2842 = vrot.slane %v2841, 1
    %v2843 = vadd.f32 %v2841, %v2842
    %v2844 = vsel %vm636, %v2782, 0.0
    %v2845 = vrot.slane %v2844, 4
    %v2846 = vadd.f32 %v2844, %v2845
    %v2847 = vrot.slane %v2846, 2
    %v2848 = vadd.f32 %v2846, %v2847
    %v2849 = vrot.slane %v2848, 1
    %v2850 = vadd.f32 %v2848, %v2849
    %s2851 = sld [smem:[#allocation7 + $0x3]]
    %v2852 = vstv %s2851
    %v2853 = vadd.f32 %v2843, %v2852
    %v2854 = vadd.f32 %v2850, %v2852
    %v2855 = vld [vmem:[#allocation2] ss:$4 sm:$0x7]
    %v2857 = vlaneseq
    %v2858 = vshrl.u32 %v2857, 7
    %v2859 = vsub.s32 0, %v2858
    %v2860 = vrot.slane %v2855, %v2859
    %v2861 = vlaneseq
    %v2862 = vshrl.u32 %v2861, 7
    %v2863 = vsub.s32 1, %v2862
    %v2864 = vrot.slane %v2855, %v2863
    %v2865 = vlaneseq
    %v2866 = vshrl.u32 %v2865, 7
    %v2867 = vsub.s32 2, %v2866
    %v2868 = vrot.slane %v2855, %v2867
    %2869 = vrot.lane.b32.xlu0 %v2860, 111
    %v2870 = vpop.permute.xlu0 %2869
    %2871 = vrot.lane.b32.xlu0 %v2864, 111
    %v2872 = vpop.permute.xlu0 %2871
    %2873 = vrot.lane.b32.xlu0 %v2868, 111
    %v2874 = vpop.permute.xlu0 %2873
    %v2875 = vsel %vm348, %v2870, %v2872
    %v2876 = vsel %vm348, %v2872, %v2874
    %v2879 = vadd.f32 %v2799, %v2875
    %v2880 = vadd.f32 %v2800, %v2876
    %v2883 = vcombine.low %v2879, %v2880
    %v2885 = vunpack.c.l.s4 1966171168
    %v2886 = vunpack.c.0.s8 %v2885
    %v2887 = vlaneseq
    %v2888 = vshrl.u32 %v2887, 7
    %v2889 = vsub.s32 %v2886, %v2888
    %v2890 = vrot.slane %v2883, %v2889
    %v2892 = vunpack.c.l.s4 1966171168
    %v2893 = vunpack.c.0.s8 %v2892
    %v2894 = vlaneseq
    %v2895 = vshrl.u32 %v2894, 7
    %v2896 = vsub.s32 %v2893, %v2895
    %v2897 = vrot.slane %v2890, %v2896
    %s2899 = scalar_lea.vmem [#allocation9], 8
    %2900 = vst.msk [vmem:[%s2899] ss:$4 sm:$0x3] %vm1465, %v2897
    %v2901 = vld [vmem:[%s1467] ss:$4 sm:$0x7]
    %v2903 = vlaneseq
    %v2904 = vshrl.u32 %v2903, 7
    %v2905 = vsub.s32 0, %v2904
    %v2906 = vrot.slane %v2901, %v2905
    %v2907 = vlaneseq
    %v2908 = vshrl.u32 %v2907, 7
    %v2909 = vsub.s32 1, %v2908
    %v2910 = vrot.slane %v2901, %v2909
    %v2911 = vlaneseq
    %v2912 = vshrl.u32 %v2911, 7
    %v2913 = vsub.s32 2, %v2912
    %v2914 = vrot.slane %v2901, %v2913
    %2915 = vrot.lane.b32.xlu0 %v2906, 111
    %v2916 = vpop.permute.xlu0 %2915
    %2917 = vrot.lane.b32.xlu0 %v2910, 111
    %v2918 = vpop.permute.xlu0 %2917
    %2919 = vrot.lane.b32.xlu0 %v2914, 111
    %v2920 = vpop.permute.xlu0 %2919
    %v2921 = vsel %vm348, %v2916, %v2918
    %v2922 = vsel %vm348, %v2918, %v2920
    %v2925 = vadd.f32 %v2817, %v2921
    %v2926 = vadd.f32 %v2818, %v2922
    %v2929 = vcombine.low %v2925, %v2926
    %v2931 = vunpack.c.l.s4 1966171168
    %v2932 = vunpack.c.0.s8 %v2931
    %v2933 = vlaneseq
    %v2934 = vshrl.u32 %v2933, 7
    %v2935 = vsub.s32 %v2932, %v2934
    %v2936 = vrot.slane %v2929, %v2935
    %v2938 = vunpack.c.l.s4 1966171168
    %v2939 = vunpack.c.0.s8 %v2938
    %v2940 = vlaneseq
    %v2941 = vshrl.u32 %v2940, 7
    %v2942 = vsub.s32 %v2939, %v2941
    %v2943 = vrot.slane %v2936, %v2942
    %s2945 = scalar_lea.vmem %s2899, 1 [#allocation9]
    %2946 = vst.msk [vmem:[%s2945] ss:$4 sm:$0x3] %vm1465, %v2943
    %v2947 = vld [vmem:[%s1514] ss:$4 sm:$0x7]
    %v2949 = vlaneseq
    %v2950 = vshrl.u32 %v2949, 7
    %v2951 = vsub.s32 0, %v2950
    %v2952 = vrot.slane %v2947, %v2951
    %v2953 = vlaneseq
    %v2954 = vshrl.u32 %v2953, 7
    %v2955 = vsub.s32 1, %v2954
    %v2956 = vrot.slane %v2947, %v2955
    %v2957 = vlaneseq
    %v2958 = vshrl.u32 %v2957, 7
    %v2959 = vsub.s32 2, %v2958
    %v2960 = vrot.slane %v2947, %v2959
    %2961 = vrot.lane.b32.xlu0 %v2952, 111
    %v2962 = vpop.permute.xlu0 %2961
    %2963 = vrot.lane.b32.xlu0 %v2956, 111
    %v2964 = vpop.permute.xlu0 %2963
    %2965 = vrot.lane.b32.xlu0 %v2960, 111
    %v2966 = vpop.permute.xlu0 %2965
    %v2967 = vsel %vm348, %v2962, %v2964
    %v2968 = vsel %vm348, %v2964, %v2966
    %v2971 = vadd.f32 %v2835, %v2967
    %v2972 = vadd.f32 %v2836, %v2968
    %v2975 = vcombine.low %v2971, %v2972
    %v2977 = vunpack.c.l.s4 1966171168
    %v2978 = vunpack.c.0.s8 %v2977
    %v2979 = vlaneseq
    %v2980 = vshrl.u32 %v2979, 7
    %v2981 = vsub.s32 %v2978, %v2980
    %v2982 = vrot.slane %v2975, %v2981
    %v2984 = vunpack.c.l.s4 1966171168
    %v2985 = vunpack.c.0.s8 %v2984
    %v2986 = vlaneseq
    %v2987 = vshrl.u32 %v2986, 7
    %v2988 = vsub.s32 %v2985, %v2987
    %v2989 = vrot.slane %v2982, %v2988
    %s2991 = scalar_lea.vmem %s2899, 2 [#allocation9]
    %2992 = vst.msk [vmem:[%s2991] ss:$4 sm:$0x3] %vm1465, %v2989
    %v2993 = vld [vmem:[%s1561] ss:$4 sm:$0x7]
    %v2995 = vlaneseq
    %v2996 = vshrl.u32 %v2995, 7
    %v2997 = vsub.s32 0, %v2996
    %v2998 = vrot.slane %v2993, %v2997
    %v2999 = vlaneseq
    %v3000 = vshrl.u32 %v2999, 7
    %v3001 = vsub.s32 1, %v3000
    %v3002 = vrot.slane %v2993, %v3001
    %v3003 = vlaneseq
    %v3004 = vshrl.u32 %v3003, 7
    %v3005 = vsub.s32 2, %v3004
    %v3006 = vrot.slane %v2993, %v3005
    %3007 = vrot.lane.b32.xlu0 %v2998, 111
    %v3008 = vpop.permute.xlu0 %3007
    %3009 = vrot.lane.b32.xlu0 %v3002, 111
    %v3010 = vpop.permute.xlu0 %3009
    %3011 = vrot.lane.b32.xlu0 %v3006, 111
    %v3012 = vpop.permute.xlu0 %3011
    %v3013 = vsel %vm348, %v3008, %v3010
    %v3014 = vsel %vm348, %v3010, %v3012
    %v3017 = vadd.f32 %v2853, %v3013
    %v3018 = vadd.f32 %v2854, %v3014
    %v3021 = vcombine.low %v3017, %v3018
    %v3023 = vunpack.c.l.s4 1966171168
    %v3024 = vunpack.c.0.s8 %v3023
    %v3025 = vlaneseq
    %v3026 = vshrl.u32 %v3025, 7
    %v3027 = vsub.s32 %v3024, %v3026
    %v3028 = vrot.slane %v3021, %v3027
    %v3030 = vunpack.c.l.s4 1966171168
    %v3031 = vunpack.c.0.s8 %v3030
    %v3032 = vlaneseq
    %v3033 = vshrl.u32 %v3032, 7
    %v3034 = vsub.s32 %v3031, %v3033
    %v3035 = vrot.slane %v3028, %v3034
    %s3037 = scalar_lea.vmem %s2899, 3 [#allocation9]
    %3038 = vst.msk [vmem:[%s3037] ss:$4 sm:$0x3] %vm1465, %v3035
    // Predicated region
    $region30: #{tpu_custom_call.1} parent=1 // pred_check
      _
    $region31: #{tpu_custom_call.1} parent=1 // pred_check_branch
      %3040 = sbr.rel (0) target = $region33
    $region32: #{tpu_custom_call.1} parent=1 // pred_region
      %s3042 = ssub.s32 256, 256
      %3043 = vsyncadd [#allocation5], %s3042
      %s3044 = sshll.u32 [#allocation9], 4
      %s3045 = int_to_ptr.vmem [resolvable:$true] %s3044
      %3050 = dma.vmem_to_hbm [thread:$0]  %s3045, 256, %s5, [#allocation5], 128, 128, 8
    $region33: #{tpu_custom_call.1} parent=1 // pred_fallthru
      _
    // Predicated region
    $region34: #{tpu_custom_call.1} parent=1 // pred_check
      _
    $region35: #{tpu_custom_call.1} parent=1 // pred_check_branch
      %3052 = sbr.rel (0) target = $region37
    $region36: #{tpu_custom_call.1} parent=1 // pred_region
      %3053 = dma.done [#allocation5], 256
    $region37: #{tpu_custom_call.1} parent=1 // pred_fallthru
      _
    %3054 = vsyncpa [#allocation5], 1
    %3055 = vsyncpa [#allocation6], 1
    %3056 = vsyncpa [#allocation8], 1

</llo_original>
